<compile_context>
chip_gen: v7x
topology: tpu7x:2x2x1
jax: 0.10.0
libtpu: 0.0.40
codegen_flags: <defaults>
</compile_context>

<pallas_src>
import functools
import math

import jax
import jax.numpy as jnp
from jax.experimental import pallas as pl
from jax.experimental.pallas import tpu as pltpu

LN_EPS = 1e-5

# Constant-index weight blocks are requested single-buffered so the pipeline
# does not allocate a useless second VMEM copy of every DxD weight (matters on
# v7x with 64 MiB VMEM at realistic D).  If this JAX/Mosaic build rejects
# single buffering, main() flips this flag and re-runs with default buffering.
_SINGLE_BUFFER_WEIGHTS = [True]


def _const_spec(shape):
    """BlockSpec for an operand that is identical at every grid step."""
    zeros = (0,) * len(shape)
    index_map = lambda *_: zeros
    if _SINGLE_BUFFER_WEIGHTS[0] and hasattr(pl, "Buffered"):
        try:
            return pl.BlockSpec(shape, index_map, pipeline_mode=pl.Buffered(1))
        except TypeError:
            pass
    return pl.BlockSpec(shape, index_map)


def _layernorm_f32(x, gamma, beta, eps):
    mu = jnp.mean(x, axis=-1, keepdims=True)
    xc = x - mu
    var = jnp.mean(xc * xc, axis=-1, keepdims=True)
    return xc * jax.lax.rsqrt(var + eps) * gamma + beta


def _gelu_tanh(x):
    # GELU, tanh approximation (EUP-native tanh); exact erf-GELU differs <3e-3.
    c = math.sqrt(2.0 / math.pi)
    return 0.5 * x * (1.0 + jnp.tanh(c * (x + 0.044715 * (x * x * x))))


def _vmem_limit_bytes(L, D, Hd, weight_itemsize=2):
    """Derive a per-call VMEM budget from actual buffer sizes (review item)."""
    io = 2 * (L * D * 4) * 2                              # x-in + out, double buffered
    weights = (4 * D * D + 2 * D * Hd) * weight_itemsize  # WQ/WK/WV/WY + W1/W2
    if not _SINGLE_BUFFER_WEIGHTS[0]:
        weights *= 2
    vectors = (10 * D + 2 * Hd) * 4 * 2                   # LN params + biases
    scratch = L * D * 4                                   # attention accumulator
    live = 8 * L * D * 4 + 2 * L * L * 4 + L * Hd * 4     # in-body temporaries
    need = io + weights + vectors + scratch + live + (4 << 20)
    return int(min(100 << 20, max(need, 16 << 20)))


# ---------------------------------------------------------------------------
# Kernels
# ---------------------------------------------------------------------------
def _prenorm_layer_kernel(x_ref,
                          ln1_g, ln1_b,
                          wq_ref, wk_ref, wv_ref, bq_ref, bk_ref, bv_ref,
                          wy_ref, by_ref,
                          ln2_g, ln2_b,
                          w1_ref, b1_ref, w2_ref, b2_ref,
                          o_ref, att_scr,
                          *, num_heads, head_size, q_scale, compute_dtype):
    """Fully fused PreNormAttentionBlock for one batch element (mask=None).

    Grid: (batch,), marked "parallel".  The whole sequence (L rows) is one
    tile, so attention uses a plain softmax over a single (L, L) score block
    per head -- no online-softmax rescale, no m/l scratch.
    """
    x = x_ref[0].astype(jnp.float32)                          # (L, D) residual stream

    # ---- pre-LayerNorm 1 + fused Q/K/V projections -------------------------
    xn = _layernorm_f32(x, ln1_g[0], ln1_b[0], LN_EPS).astype(compute_dtype)
    q = jnp.dot(xn, wq_ref[...], preferred_element_type=jnp.float32) + bq_ref[0]
    k = jnp.dot(xn, wk_ref[...], preferred_element_type=jnp.float32) + bk_ref[0]
    v = jnp.dot(xn, wv_ref[...], preferred_element_type=jnp.float32) + bv_ref[0]
    # Fold the 1/sqrt(head_size) attention scale into Q once (O(L*D)) instead
    # of scaling the O(H*L^2) score tensor.
    q = (q * q_scale).astype(compute_dtype)
    k = k.astype(compute_dtype)
    v = v.astype(compute_dtype)

    # ---- per-head attention, single KV block (full softmax) ----------------
    # Heads are lane-contiguous 128-wide column blocks of the (L, D) layout:
    # no (L,H,hd) <-> (H,L,hd) transposes.  Static unroll is fine for tiny H;
    # switch to lax.fori_loop(..., unroll=True) for many heads.
    for h in range(num_heads):
        cs = slice(h * head_size, (h + 1) * head_size)
        s = jax.lax.dot_general(                              # (L, L) = q_h . k_h^T
            q[:, cs], k[:, cs],
            dimension_numbers=(((1,), (1,)), ((), ())),
            preferred_element_type=jnp.float32)
        s = s - jnp.max(s, axis=-1, keepdims=True)
        p = jnp.exp(s)
        inv = pl.reciprocal(jnp.sum(p, axis=-1, keepdims=True), approx=True)
        p = p * inv
        att_scr[:, cs] = jnp.dot(p.astype(compute_dtype), v[:, cs],
                                 preferred_element_type=jnp.float32)

    # ---- output projection + residual ---------------------------------------
    y = jnp.dot(att_scr[...].astype(compute_dtype), wy_ref[...],
                preferred_element_type=jnp.float32) + by_ref[0]
    x = x + y

    # ---- pre-LayerNorm 2 + Linear/GELU/Linear + residual --------------------
    xn2 = _layernorm_f32(x, ln2_g[0], ln2_b[0], LN_EPS).astype(compute_dtype)
    h1 = jnp.dot(xn2, w1_ref[...], preferred_element_type=jnp.float32) + b1_ref[0]
    h1 = _gelu_tanh(h1)
    y2 = jnp.dot(h1.astype(compute_dtype), w2_ref[...],
                 preferred_element_type=jnp.float32) + b2_ref[0]
    o_ref[0] = (x + y2).astype(o_ref.dtype)


def _layernorm_kernel(x_ref, g_ref, b_ref, o_ref):
    x = x_ref[...].astype(jnp.float32)
    o_ref[...] = _layernorm_f32(x, g_ref[0], b_ref[0], LN_EPS).astype(o_ref.dtype)


# ---------------------------------------------------------------------------
# pallas_call wrappers
# ---------------------------------------------------------------------------
def prenorm_layer(x, lp, cfg):
    """One fused PreNormAttentionBlock (dropout = identity, mask = None)."""
    B, L, D = x.shape
    Hd = lp["W1"].shape[1]
    nh, hs = cfg["num_heads"], cfg["head_size"]
    cd = cfg["compute_dtype"]

    x_spec = pl.BlockSpec((1, L, D), lambda b: (b, 0, 0))
    d_spec = _const_spec((1, D))
    hd_spec = _const_spec((1, Hd))
    dd_spec = _const_spec((D, D))

    kernel = functools.partial(_prenorm_layer_kernel,
                               num_heads=nh, head_size=hs,
                               q_scale=1.0 / math.sqrt(hs),
                               compute_dtype=cd)
    cost = pl.CostEstimate(
        flops=B * (8 * L * D * D + 4 * L * L * D + 4 * L * D * Hd + 24 * L * D),
        transcendentals=B * (nh * L * L + L * Hd + 3 * L),
        bytes_accessed=(2 * B * L * D * 4 + (4 * D * D + 2 * D * Hd) * 2
                        + (10 * D + 2 * Hd) * 4))

    return pl.pallas_call(
        kernel,
        out_shape=jax.ShapeDtypeStruct((B, L, D), x.dtype),
        grid_spec=pltpu.PrefetchScalarGridSpec(
            num_scalar_prefetch=0,
            grid=(B,),
            in_specs=[x_spec,
                      d_spec, d_spec,                       # ln1 gamma/beta
                      dd_spec, dd_spec, dd_spec,            # WQ, WK, WV
                      d_spec, d_spec, d_spec,               # bQ, bK, bV
                      dd_spec, d_spec,                      # WY, bY
                      d_spec, d_spec,                       # ln2 gamma/beta
                      _const_spec((D, Hd)), hd_spec,        # W1, b1
                      _const_spec((Hd, D)), d_spec],        # W2, b2
            out_specs=x_spec,
            scratch_shapes=[pltpu.VMEM((L, D), jnp.float32)],   # attention acc
        ),
        compiler_params=pltpu.CompilerParams(
            dimension_semantics=("parallel",),              # >=2 steps -> both v7x TCs
            vmem_limit_bytes=_vmem_limit_bytes(L, D, Hd)),
        cost_estimate=cost,
    )(x,
      lp["ln1_w"].reshape(1, D), lp["ln1_b"].reshape(1, D),
      lp["WQ"], lp["WK"], lp["WV"],
      lp["bQ"].reshape(1, D), lp["bK"].reshape(1, D), lp["bV"].reshape(1, D),
      lp["WY"], lp["bY"].reshape(1, D),
      lp["ln2_w"].reshape(1, D), lp["ln2_b"].reshape(1, D),
      lp["W1"], lp["b1"].reshape(1, Hd), lp["W2"], lp["b2"].reshape(1, D))


def layer_norm_rows(x2d, gamma, beta):
    """mlp_head LayerNorm on the [CLS] rows (tiny: full block, one step)."""
    R, D = x2d.shape
    spec = pl.BlockSpec((R, D), lambda i: (0, 0))
    return pl.pallas_call(
        _layernorm_kernel,
        out_shape=jax.ShapeDtypeStruct((R, D), x2d.dtype),
        grid_spec=pltpu.PrefetchScalarGridSpec(
            num_scalar_prefetch=0,
            grid=(1,),
            in_specs=[spec, _const_spec((1, D)), _const_spec((1, D))],
            out_specs=spec,
        ),
        compiler_params=pltpu.CompilerParams(
            dimension_semantics=("arbitrary",),
            vmem_limit_bytes=16 << 20),
    )(x2d, gamma.reshape(1, D), beta.reshape(1, D))


# ---------------------------------------------------------------------------
# Full Transformer forward (prenorm, inference)
# ---------------------------------------------------------------------------
def transformer_forward(tokens, params, cfg):
    # TODO(synk): token-embedding gather has no clean BlockSpec form; left to XLA.
    x = jnp.take(params["embedding"], tokens, axis=0)            # (B, T, D) f32
    B, T, D = x.shape
    cls = jnp.broadcast_to(params["cls_token"], (B, 1, D))
    x = jnp.concatenate([cls, x], axis=1)                        # (B, T+1, D)
    x = x + params["pos_embedding"][:, :T + 1]
    # TODO(synk): dropout (training mode) and the padding-mask (mask != None)
    # path are not implemented; this is the inference forward with mask=None.
    # TODO(synk): block='postnorm' variant not implemented (default is 'prenorm').
    for lp in params["layers"]:
        x = prenorm_layer(x, lp, cfg)
    cls_out = x[:, 0]                                            # (B, D)
    return layer_norm_rows(cls_out, params["head_ln_w"], params["head_ln_b"])


# ---------------------------------------------------------------------------
# Pure-JAX f32 reference (mirrors the PyTorch module forward)
# ---------------------------------------------------------------------------
def reference_forward(tokens, params, cfg):
    f32 = jnp.float32
    D, H, hd = cfg["embed_dim"], cfg["num_heads"], cfg["head_size"]

    def ln(t, w, b):
        mu = jnp.mean(t, axis=-1, keepdims=True)
        var = jnp.mean((t - mu) ** 2, axis=-1, keepdims=True)
        return (t - mu) / jnp.sqrt(var + LN_EPS) * w + b

    x = jnp.take(params["embedding"], tokens, axis=0).astype(f32)
    B, T, _ = x.shape
    L = T + 1
    cls = jnp.broadcast_to(params["cls_token"].astype(f32), (B, 1, D))
    x = jnp.concatenate([cls, x], axis=1) + params["pos_embedding"][:, :L]

    def split(t):
        return t.reshape(B, L, H, hd).transpose(0, 2, 1, 3)

    for lp in params["layers"]:
        xn = ln(x, lp["ln1_w"], lp["ln1_b"])
        q = split(xn @ lp["WQ"].astype(f32) + lp["bQ"])
        k = split(xn @ lp["WK"].astype(f32) + lp["bK"])
        v = split(xn @ lp["WV"].astype(f32) + lp["bV"])
        w_att = jax.nn.softmax(q @ k.transpose(0, 1, 3, 2) / math.sqrt(hd), axis=-1)
        att = (w_att @ v).transpose(0, 2, 1, 3).reshape(B, L, D)
        x = x + (att @ lp["WY"].astype(f32) + lp["bY"])
        xn2 = ln(x, lp["ln2_w"], lp["ln2_b"])
        h = jax.nn.gelu(xn2 @ lp["W1"].astype(f32) + lp["b1"], approximate=False)
        x = x + (h @ lp["W2"].astype(f32) + lp["b2"])
    return ln(x[:, 0], params["head_ln_w"], params["head_ln_b"])


# ---------------------------------------------------------------------------
# Parameter init (deterministic; matmul weights stored in bf16 for the MXU)
# ---------------------------------------------------------------------------
def init_params(key, cfg):
    D, Hd, V = cfg["embed_dim"], cfg["hidden_dim"], cfg["vocab_size"]
    n_layers, T = cfg["num_layers"], cfg["seq_len"]
    wdt = cfg["compute_dtype"]
    keys = iter(jax.random.split(key, 8 + 16 * n_layers))

    def nrm(shape):
        return jax.random.normal(next(keys), shape, jnp.float32)

    def uni(shape, bound):
        return jax.random.uniform(next(keys), shape, jnp.float32, -bound, bound)

    params = {
        "embedding": nrm((V, D)),                 # nn.Embedding default ~ N(0, 1)
        "cls_token": nrm((1, 1, D)),
        "pos_embedding": nrm((1, T + 1, D)),
        # LN params randomized slightly (module init is ones/zeros) so the
        # affine path is actually exercised by the check.
        "head_ln_w": 1.0 + 0.1 * nrm((D,)),
        "head_ln_b": 0.1 * nrm((D,)),
        "layers": [],
    }
    xav = math.sqrt(6.0 / (D + D))                # xavier_uniform_ for D x D weights
    lin1 = 1.0 / math.sqrt(D)                     # nn.Linear default bound
    lin2 = 1.0 / math.sqrt(Hd)
    for _ in range(n_layers):
        params["layers"].append({
            "ln1_w": 1.0 + 0.1 * nrm((D,)), "ln1_b": 0.1 * nrm((D,)),
            "WQ": uni((D, D), xav).astype(wdt), "bQ": 0.01 * nrm((D,)),
            "WK": uni((D, D), xav).astype(wdt), "bK": 0.01 * nrm((D,)),
            "WV": uni((D, D), xav).astype(wdt), "bV": 0.01 * nrm((D,)),
            "WY": uni((D, D), xav).astype(wdt), "bY": 0.01 * nrm((D,)),
            "ln2_w": 1.0 + 0.1 * nrm((D,)), "ln2_b": 0.1 * nrm((D,)),
            "W1": uni((D, Hd), lin1).astype(wdt), "b1": uni((Hd,), lin1),
            "W2": uni((Hd, D), lin2).astype(wdt), "b2": uni((D,), lin2),
        })
    return params


if __name__ == "__main__":
    cfg = dict(
        vocab_size=1000,
        embed_dim=256,        # multiple of 128 -> lane-dense blocks everywhere
        hidden_dim=256,
        num_heads=2,
        head_size=128,        # 128-aligned MXU contraction for Q.K^T
        num_layers=2,
        seq_len=31,           # +1 [CLS] token -> L = 32 (single KV block)
        compute_dtype=jnp.bfloat16,
    )
    assert cfg["num_heads"] * cfg["head_size"] == cfg["embed_dim"]

    key = jax.random.PRNGKey(0)
    kp, kt = jax.random.split(key)
    params = init_params(kp, cfg)
    tokens = jax.random.randint(kt, (2, cfg["seq_len"]), 0, cfg["vocab_size"],
                                dtype=jnp.int32)

    def run():
        fwd = jax.jit(lambda t, p: transformer_forward(t, p, cfg))
        return jax.block_until_ready(fwd(tokens, params))

    try:
        out = run()
    except Exception:
        # Fallback: this JAX/Mosaic build rejected single-buffered constant
        # weight blocks -> retry with default double buffering.
        _SINGLE_BUFFER_WEIGHTS[0] = False
        out = run()

    ref = reference_forward(tokens, params, cfg)
    assert out.shape == (2, cfg["embed_dim"])
    err = float(jnp.max(jnp.abs(out.astype(jnp.float32) - ref)))
    # bf16 MXU inputs (f32 accumulation) + tanh-GELU + approx reciprocal loosen
    # the match vs the pure-f32 / exact-GELU reference; expected ~1e-2.
    assert err < 3e-2, f"max abs error {err} vs reference"
    print("KERNEL_OK")
</pallas_src>

<mosaic_0001>
module attributes {stable_mosaic.version = 11 : i64} {
  func.func @_layernorm_kernel(%arg0: i32, %arg1: memref<2x256xf32, #tpu.memory_space<vmem>>, %arg2: memref<1x256xf32, #tpu.memory_space<vmem>>, %arg3: memref<1x256xf32, #tpu.memory_space<vmem>>, %arg4: memref<2x256xf32, #tpu.memory_space<vmem>>) attributes {dimension_semantics = [#tpu.dimension_semantics<arbitrary>], iteration_bounds = array<i64: 1>, scalar_prefetch = 0 : i64, scratch_operands = 0 : i64, tpu.core_type = #tpu.core_type<tc>, window_params = [{pipeline_mode = #tpu.pipeline_mode<synchronous>, transform_indices = @transform_0, window_bounds = array<i64: 2, 256>}, {pipeline_mode = #tpu.pipeline_mode<synchronous>, transform_indices = @transform_1, window_bounds = array<i64: 1, 256>}, {pipeline_mode = #tpu.pipeline_mode<synchronous>, transform_indices = @transform_2, window_bounds = array<i64: 1, 256>}, {pipeline_mode = #tpu.pipeline_mode<synchronous>, transform_indices = @transform_3, window_bounds = array<i64: 2, 256>}]} {
    %c0 = arith.constant 0 : index
    %c0_0 = arith.constant 0 : index
    %0 = vector.load %arg1[%c0, %c0_0] : memref<2x256xf32, #tpu.memory_space<vmem>>, vector<2x256xf32>
    %c0_1 = arith.constant 0 : index
    %c0_2 = arith.constant 0 : index
    %1 = vector.load %arg2[%c0_1, %c0_2] : memref<1x256xf32, #tpu.memory_space<vmem>>, vector<1x256xf32>
    %2 = vector.shape_cast %1 : vector<1x256xf32> to vector<256xf32>
    %c0_3 = arith.constant 0 : index
    %c0_4 = arith.constant 0 : index
    %3 = vector.load %arg3[%c0_3, %c0_4] : memref<1x256xf32, #tpu.memory_space<vmem>>, vector<1x256xf32>
    %4 = vector.shape_cast %3 : vector<1x256xf32> to vector<256xf32>
    %cst = arith.constant dense<0.000000e+00> : vector<2xf32>
    %5 = vector.multi_reduction <add>, %0, %cst [1] : vector<2x256xf32> to vector<2xf32>
    %6 = vector.shape_cast %5 : vector<2xf32> to vector<2x1xf32>
    %cst_5 = arith.constant 2.560000e+02 : f32
    %7 = vector.broadcast %cst_5 : f32 to vector<2x1xf32>
    %8 = arith.divf %6, %7 : vector<2x1xf32>
    %9 = vector.broadcast %8 : vector<2x1xf32> to vector<2x256xf32>
    %10 = arith.subf %0, %9 : vector<2x256xf32>
    %11 = arith.mulf %10, %10 : vector<2x256xf32>
    %cst_6 = arith.constant dense<0.000000e+00> : vector<2xf32>
    %12 = vector.multi_reduction <add>, %11, %cst_6 [1] : vector<2x256xf32> to vector<2xf32>
    %13 = vector.shape_cast %12 : vector<2xf32> to vector<2x1xf32>
    %cst_7 = arith.constant 2.560000e+02 : f32
    %14 = vector.broadcast %cst_7 : f32 to vector<2x1xf32>
    %15 = arith.divf %13, %14 : vector<2x1xf32>
    %cst_8 = arith.constant 9.99999974E-6 : f32
    %16 = vector.broadcast %cst_8 : f32 to vector<2x1xf32>
    %17 = arith.addf %15, %16 : vector<2x1xf32>
    %18 = math.rsqrt %17 : vector<2x1xf32>
    %19 = vector.broadcast %18 : vector<2x1xf32> to vector<2x256xf32>
    %20 = arith.mulf %10, %19 : vector<2x256xf32>
    %21 = vector.shape_cast %2 : vector<256xf32> to vector<1x256xf32>
    %22 = vector.broadcast %21 : vector<1x256xf32> to vector<2x256xf32>
    %23 = arith.mulf %20, %22 : vector<2x256xf32>
    %24 = vector.shape_cast %4 : vector<256xf32> to vector<1x256xf32>
    %25 = vector.broadcast %24 : vector<1x256xf32> to vector<2x256xf32>
    %26 = arith.addf %23, %25 : vector<2x256xf32>
    %c0_9 = arith.constant 0 : index
    %c0_10 = arith.constant 0 : index
    %27 = vector.load %arg4[%c0_9, %c0_10] : memref<2x256xf32, #tpu.memory_space<vmem>>, vector<2x256xf32>
    tpu.vector_store %arg4[%c0_9, %c0_10], %26 {strides = array<i32>} : memref<2x256xf32, #tpu.memory_space<vmem>>, vector<2x256xf32>,
    return
  }
  func.func @transform_0(%arg0: i32) -> (i32, i32) {
    %c0_i32 = arith.constant 0 : i32
    %c0_i32_0 = arith.constant 0 : i32
    %c0_i32_1 = arith.constant 0 : i32
    return %c0_i32, %c0_i32_0 : i32, i32
  }
  func.func @transform_1(%arg0: i32) -> (i32, i32) {
    %c0_i32 = arith.constant 0 : i32
    %c0_i32_0 = arith.constant 0 : i32
    %c0_i32_1 = arith.constant 0 : i32
    return %c0_i32, %c0_i32_0 : i32, i32
  }
  func.func @transform_2(%arg0: i32) -> (i32, i32) {
    %c0_i32 = arith.constant 0 : i32
    %c0_i32_0 = arith.constant 0 : i32
    %c0_i32_1 = arith.constant 0 : i32
    return %c0_i32, %c0_i32_0 : i32, i32
  }
  func.func @transform_3(%arg0: i32) -> (i32, i32) {
    %c0_i32 = arith.constant 0 : i32
    %c0_i32_0 = arith.constant 0 : i32
    %c0_i32_1 = arith.constant 0 : i32
    return %c0_i32, %c0_i32_0 : i32, i32
  }
}

module attributes {stable_mosaic.version = 11 : i64} {
  func.func @_prenorm_layer_kernel(%arg0: i32, %arg1: memref<1x32x256xf32, #tpu.memory_space<vmem>>, %arg2: memref<1x256xf32, #tpu.memory_space<vmem>>, %arg3: memref<1x256xf32, #tpu.memory_space<vmem>>, %arg4: memref<256x256xbf16, #tpu.memory_space<vmem>>, %arg5: memref<256x256xbf16, #tpu.memory_space<vmem>>, %arg6: memref<256x256xbf16, #tpu.memory_space<vmem>>, %arg7: memref<1x256xf32, #tpu.memory_space<vmem>>, %arg8: memref<1x256xf32, #tpu.memory_space<vmem>>, %arg9: memref<1x256xf32, #tpu.memory_space<vmem>>, %arg10: memref<256x256xbf16, #tpu.memory_space<vmem>>, %arg11: memref<1x256xf32, #tpu.memory_space<vmem>>, %arg12: memref<1x256xf32, #tpu.memory_space<vmem>>, %arg13: memref<1x256xf32, #tpu.memory_space<vmem>>, %arg14: memref<256x256xbf16, #tpu.memory_space<vmem>>, %arg15: memref<1x256xf32, #tpu.memory_space<vmem>>, %arg16: memref<256x256xbf16, #tpu.memory_space<vmem>>, %arg17: memref<1x256xf32, #tpu.memory_space<vmem>>, %arg18: memref<1x32x256xf32, #tpu.memory_space<vmem>>, %arg19: memref<32x256xf32, #tpu.memory_space<vmem>>) attributes {dimension_semantics = [#tpu.dimension_semantics<parallel>], iteration_bounds = array<i64: 2>, scalar_prefetch = 0 : i64, scratch_operands = 1 : i64, tpu.core_type = #tpu.core_type<tc>, window_params = [{transform_indices = @transform_0, window_bounds = array<i64: 1, 32, 256>}, {pipeline_mode = #tpu.pipeline_mode<synchronous>, transform_indices = @transform_1, window_bounds = array<i64: 1, 256>}, {pipeline_mode = #tpu.pipeline_mode<synchronous>, transform_indices = @transform_2, window_bounds = array<i64: 1, 256>}, {pipeline_mode = #tpu.pipeline_mode<synchronous>, transform_indices = @transform_3, window_bounds = array<i64: 256, 256>}, {pipeline_mode = #tpu.pipeline_mode<synchronous>, transform_indices = @transform_4, window_bounds = array<i64: 256, 256>}, {pipeline_mode = #tpu.pipeline_mode<synchronous>, transform_indices = @transform_5, window_bounds = array<i64: 256, 256>}, {pipeline_mode = #tpu.pipeline_mode<synchronous>, transform_indices = @transform_6, window_bounds = array<i64: 1, 256>}, {pipeline_mode = #tpu.pipeline_mode<synchronous>, transform_indices = @transform_7, window_bounds = array<i64: 1, 256>}, {pipeline_mode = #tpu.pipeline_mode<synchronous>, transform_indices = @transform_8, window_bounds = array<i64: 1, 256>}, {pipeline_mode = #tpu.pipeline_mode<synchronous>, transform_indices = @transform_9, window_bounds = array<i64: 256, 256>}, {pipeline_mode = #tpu.pipeline_mode<synchronous>, transform_indices = @transform_10, window_bounds = array<i64: 1, 256>}, {pipeline_mode = #tpu.pipeline_mode<synchronous>, transform_indices = @transform_11, window_bounds = array<i64: 1, 256>}, {pipeline_mode = #tpu.pipeline_mode<synchronous>, transform_indices = @transform_12, window_bounds = array<i64: 1, 256>}, {pipeline_mode = #tpu.pipeline_mode<synchronous>, transform_indices = @transform_13, window_bounds = array<i64: 256, 256>}, {pipeline_mode = #tpu.pipeline_mode<synchronous>, transform_indices = @transform_14, window_bounds = array<i64: 1, 256>}, {pipeline_mode = #tpu.pipeline_mode<synchronous>, transform_indices = @transform_15, window_bounds = array<i64: 256, 256>}, {pipeline_mode = #tpu.pipeline_mode<synchronous>, transform_indices = @transform_16, window_bounds = array<i64: 1, 256>}, {transform_indices = @transform_17, window_bounds = array<i64: 1, 32, 256>}]} {
    %c0 = arith.constant 0 : index
    %c0_0 = arith.constant 0 : index
    %c0_1 = arith.constant 0 : index
    %0 = vector.load %arg1[%c0, %c0_0, %c0_1] : memref<1x32x256xf32, #tpu.memory_space<vmem>>, vector<1x32x256xf32>
    %1 = vector.shape_cast %0 : vector<1x32x256xf32> to vector<32x256xf32>
    %c0_2 = arith.constant 0 : index
    %c0_3 = arith.constant 0 : index
    %2 = vector.load %arg2[%c0_2, %c0_3] : memref<1x256xf32, #tpu.memory_space<vmem>>, vector<1x256xf32>
    %3 = vector.shape_cast %2 : vector<1x256xf32> to vector<256xf32>
    %c0_4 = arith.constant 0 : index
    %c0_5 = arith.constant 0 : index
    %4 = vector.load %arg3[%c0_4, %c0_5] : memref<1x256xf32, #tpu.memory_space<vmem>>, vector<1x256xf32>
    %5 = vector.shape_cast %4 : vector<1x256xf32> to vector<256xf32>
    %cst = arith.constant dense<0.000000e+00> : vector<32xf32>
    %6 = vector.multi_reduction <add>, %1, %cst [1] : vector<32x256xf32> to vector<32xf32>
    %7 = vector.shape_cast %6 : vector<32xf32> to vector<32x1xf32>
    %cst_6 = arith.constant 2.560000e+02 : f32
    %8 = vector.broadcast %cst_6 : f32 to vector<32x1xf32>
    %9 = arith.divf %7, %8 : vector<32x1xf32>
    %10 = vector.broadcast %9 : vector<32x1xf32> to vector<32x256xf32>
    %11 = arith.subf %1, %10 : vector<32x256xf32>
    %12 = arith.mulf %11, %11 : vector<32x256xf32>
    %cst_7 = arith.constant dense<0.000000e+00> : vector<32xf32>
    %13 = vector.multi_reduction <add>, %12, %cst_7 [1] : vector<32x256xf32> to vector<32xf32>
    %14 = vector.shape_cast %13 : vector<32xf32> to vector<32x1xf32>
    %cst_8 = arith.constant 2.560000e+02 : f32
    %15 = vector.broadcast %cst_8 : f32 to vector<32x1xf32>
    %16 = arith.divf %14, %15 : vector<32x1xf32>
    %cst_9 = arith.constant 9.99999974E-6 : f32
    %17 = vector.broadcast %cst_9 : f32 to vector<32x1xf32>
    %18 = arith.addf %16, %17 : vector<32x1xf32>
    %19 = math.rsqrt %18 : vector<32x1xf32>
    %20 = vector.broadcast %19 : vector<32x1xf32> to vector<32x256xf32>
    %21 = arith.mulf %11, %20 : vector<32x256xf32>
    %22 = vector.shape_cast %3 : vector<256xf32> to vector<1x256xf32>
    %23 = vector.broadcast %22 : vector<1x256xf32> to vector<32x256xf32>
    %24 = arith.mulf %21, %23 : vector<32x256xf32>
    %25 = vector.shape_cast %5 : vector<256xf32> to vector<1x256xf32>
    %26 = vector.broadcast %25 : vector<1x256xf32> to vector<32x256xf32>
    %27 = arith.addf %24, %26 : vector<32x256xf32>
    %28 = arith.truncf %27 : vector<32x256xf32> to vector<32x256xbf16>
    %c0_10 = arith.constant 0 : index
    %c0_11 = arith.constant 0 : index
    %29 = vector.load %arg4[%c0_10, %c0_11] : memref<256x256xbf16, #tpu.memory_space<vmem>>, vector<256x256xbf16>
    %cst_12 = arith.constant dense<0.000000e+00> : vector<32x256xf32>
    %30 = tpu.matmul %28, %29, %cst_12 {dimension_numbers = #tpu.dot_dimension_numbers<[1], [0], [0], [1], [0, 0, 1, 1], [], []>} : vector<32x256xbf16>, vector<256x256xbf16>, vector<32x256xf32> -> vector<32x256xf32>
    %c0_13 = arith.constant 0 : index
    %c0_14 = arith.constant 0 : index
    %31 = vector.load %arg7[%c0_13, %c0_14] : memref<1x256xf32, #tpu.memory_space<vmem>>, vector<1x256xf32>
    %32 = vector.shape_cast %31 : vector<1x256xf32> to vector<256xf32>
    %33 = vector.shape_cast %32 : vector<256xf32> to vector<1x256xf32>
    %34 = vector.broadcast %33 : vector<1x256xf32> to vector<32x256xf32>
    %35 = arith.addf %30, %34 : vector<32x256xf32>
    %c0_15 = arith.constant 0 : index
    %c0_16 = arith.constant 0 : index
    %36 = vector.load %arg5[%c0_15, %c0_16] : memref<256x256xbf16, #tpu.memory_space<vmem>>, vector<256x256xbf16>
    %cst_17 = arith.constant dense<0.000000e+00> : vector<32x256xf32>
    %37 = tpu.matmul %28, %36, %cst_17 {dimension_numbers = #tpu.dot_dimension_numbers<[1], [0], [0], [1], [0, 0, 1, 1], [], []>} : vector<32x256xbf16>, vector<256x256xbf16>, vector<32x256xf32> -> vector<32x256xf32>
    %c0_18 = arith.constant 0 : index
    %c0_19 = arith.constant 0 : index
    %38 = vector.load %arg8[%c0_18, %c0_19] : memref<1x256xf32, #tpu.memory_space<vmem>>, vector<1x256xf32>
    %39 = vector.shape_cast %38 : vector<1x256xf32> to vector<256xf32>
    %40 = vector.shape_cast %39 : vector<256xf32> to vector<1x256xf32>
    %41 = vector.broadcast %40 : vector<1x256xf32> to vector<32x256xf32>
    %42 = arith.addf %37, %41 : vector<32x256xf32>
    %c0_20 = arith.constant 0 : index
    %c0_21 = arith.constant 0 : index
    %43 = vector.load %arg6[%c0_20, %c0_21] : memref<256x256xbf16, #tpu.memory_space<vmem>>, vector<256x256xbf16>
    %cst_22 = arith.constant dense<0.000000e+00> : vector<32x256xf32>
    %44 = tpu.matmul %28, %43, %cst_22 {dimension_numbers = #tpu.dot_dimension_numbers<[1], [0], [0], [1], [0, 0, 1, 1], [], []>} : vector<32x256xbf16>, vector<256x256xbf16>, vector<32x256xf32> -> vector<32x256xf32>
    %c0_23 = arith.constant 0 : index
    %c0_24 = arith.constant 0 : index
    %45 = vector.load %arg9[%c0_23, %c0_24] : memref<1x256xf32, #tpu.memory_space<vmem>>, vector<1x256xf32>
    %46 = vector.shape_cast %45 : vector<1x256xf32> to vector<256xf32>
    %47 = vector.shape_cast %46 : vector<256xf32> to vector<1x256xf32>
    %48 = vector.broadcast %47 : vector<1x256xf32> to vector<32x256xf32>
    %49 = arith.addf %44, %48 : vector<32x256xf32>
    %cst_25 = arith.constant 0.0883883461 : f32
    %50 = vector.broadcast %cst_25 : f32 to vector<32x256xf32>
    %51 = arith.mulf %35, %50 : vector<32x256xf32>
    %52 = arith.truncf %51 : vector<32x256xf32> to vector<32x256xbf16>
    %53 = arith.truncf %42 : vector<32x256xf32> to vector<32x256xbf16>
    %54 = arith.truncf %49 : vector<32x256xf32> to vector<32x256xbf16>
    %55 = vector.extract_strided_slice %52 {offsets = [0, 0], sizes = [32, 128], strides = [1, 1]} : vector<32x256xbf16> to vector<32x128xbf16>
    %56 = vector.extract_strided_slice %53 {offsets = [0, 0], sizes = [32, 128], strides = [1, 1]} : vector<32x256xbf16> to vector<32x128xbf16>
    %cst_26 = arith.constant dense<0.000000e+00> : vector<32x32xf32>
    %57 = tpu.matmul %55, %56, %cst_26 {dimension_numbers = #tpu.dot_dimension_numbers<[1], [1], [0], [0], [0, 0, 1, 0], [], []>} : vector<32x128xbf16>, vector<32x128xbf16>, vector<32x32xf32> -> vector<32x32xf32>
    %cst_27 = arith.constant dense<0xFF800000> : vector<32xf32>
    %58 = vector.multi_reduction <maximumf>, %57, %cst_27 [1] : vector<32x32xf32> to vector<32xf32>
    %59 = vector.shape_cast %58 : vector<32xf32> to vector<32x1xf32>
    %60 = vector.broadcast %59 : vector<32x1xf32> to vector<32x32xf32>
    %61 = arith.subf %57, %60 : vector<32x32xf32>
    %62 = math.exp %61 : vector<32x32xf32>
    %cst_28 = arith.constant dense<0.000000e+00> : vector<32xf32>
    %63 = vector.multi_reduction <add>, %62, %cst_28 [1] : vector<32x32xf32> to vector<32xf32>
    %64 = vector.shape_cast %63 : vector<32xf32> to vector<32x1xf32>
    %65 = tpu.reciprocal %64 {approx = true} : vector<32x1xf32> -> vector<32x1xf32>
    %66 = vector.broadcast %65 : vector<32x1xf32> to vector<32x32xf32>
    %67 = arith.mulf %62, %66 : vector<32x32xf32>
    %68 = arith.truncf %67 : vector<32x32xf32> to vector<32x32xbf16>
    %69 = vector.extract_strided_slice %54 {offsets = [0, 0], sizes = [32, 128], strides = [1, 1]} : vector<32x256xbf16> to vector<32x128xbf16>
    %cst_29 = arith.constant dense<0.000000e+00> : vector<32x128xf32>
    %70 = tpu.matmul %68, %69, %cst_29 {dimension_numbers = #tpu.dot_dimension_numbers<[1], [0], [0], [1], [0, 0, 1, 1], [], []>} : vector<32x32xbf16>, vector<32x128xbf16>, vector<32x128xf32> -> vector<32x128xf32>
    %c0_30 = arith.constant 0 : index
    %c0_31 = arith.constant 0 : index
    %71 = vector.load %arg19[%c0_30, %c0_31] : memref<32x256xf32, #tpu.memory_space<vmem>>, vector<32x128xf32>
    tpu.vector_store %arg19[%c0_30, %c0_31], %70 {strides = array<i32>} : memref<32x256xf32, #tpu.memory_space<vmem>>, vector<32x128xf32>,
    %72 = vector.extract_strided_slice %52 {offsets = [0, 128], sizes = [32, 128], strides = [1, 1]} : vector<32x256xbf16> to vector<32x128xbf16>
    %73 = vector.extract_strided_slice %53 {offsets = [0, 128], sizes = [32, 128], strides = [1, 1]} : vector<32x256xbf16> to vector<32x128xbf16>
    %cst_32 = arith.constant dense<0.000000e+00> : vector<32x32xf32>
    %74 = tpu.matmul %72, %73, %cst_32 {dimension_numbers = #tpu.dot_dimension_numbers<[1], [1], [0], [0], [0, 0, 1, 0], [], []>} : vector<32x128xbf16>, vector<32x128xbf16>, vector<32x32xf32> -> vector<32x32xf32>
    %cst_33 = arith.constant dense<0xFF800000> : vector<32xf32>
    %75 = vector.multi_reduction <maximumf>, %74, %cst_33 [1] : vector<32x32xf32> to vector<32xf32>
    %76 = vector.shape_cast %75 : vector<32xf32> to vector<32x1xf32>
    %77 = vector.broadcast %76 : vector<32x1xf32> to vector<32x32xf32>
    %78 = arith.subf %74, %77 : vector<32x32xf32>
    %79 = math.exp %78 : vector<32x32xf32>
    %cst_34 = arith.constant dense<0.000000e+00> : vector<32xf32>
    %80 = vector.multi_reduction <add>, %79, %cst_34 [1] : vector<32x32xf32> to vector<32xf32>
    %81 = vector.shape_cast %80 : vector<32xf32> to vector<32x1xf32>
    %82 = tpu.reciprocal %81 {approx = true} : vector<32x1xf32> -> vector<32x1xf32>
    %83 = vector.broadcast %82 : vector<32x1xf32> to vector<32x32xf32>
    %84 = arith.mulf %79, %83 : vector<32x32xf32>
    %85 = arith.truncf %84 : vector<32x32xf32> to vector<32x32xbf16>
    %86 = vector.extract_strided_slice %54 {offsets = [0, 128], sizes = [32, 128], strides = [1, 1]} : vector<32x256xbf16> to vector<32x128xbf16>
    %cst_35 = arith.constant dense<0.000000e+00> : vector<32x128xf32>
    %87 = tpu.matmul %85, %86, %cst_35 {dimension_numbers = #tpu.dot_dimension_numbers<[1], [0], [0], [1], [0, 0, 1, 1], [], []>} : vector<32x32xbf16>, vector<32x128xbf16>, vector<32x128xf32> -> vector<32x128xf32>
    %c0_36 = arith.constant 0 : index
    %c128 = arith.constant 128 : index
    %88 = vector.load %arg19[%c0_36, %c128] : memref<32x256xf32, #tpu.memory_space<vmem>>, vector<32x128xf32>
    tpu.vector_store %arg19[%c0_36, %c128], %87 {strides = array<i32>} : memref<32x256xf32, #tpu.memory_space<vmem>>, vector<32x128xf32>,
    %c0_37 = arith.constant 0 : index
    %c0_38 = arith.constant 0 : index
    %89 = vector.load %arg19[%c0_37, %c0_38] : memref<32x256xf32, #tpu.memory_space<vmem>>, vector<32x256xf32>
    %90 = arith.truncf %89 : vector<32x256xf32> to vector<32x256xbf16>
    %c0_39 = arith.constant 0 : index
    %c0_40 = arith.constant 0 : index
    %91 = vector.load %arg10[%c0_39, %c0_40] : memref<256x256xbf16, #tpu.memory_space<vmem>>, vector<256x256xbf16>
    %cst_41 = arith.constant dense<0.000000e+00> : vector<32x256xf32>
    %92 = tpu.matmul %90, %91, %cst_41 {dimension_numbers = #tpu.dot_dimension_numbers<[1], [0], [0], [1], [0, 0, 1, 1], [], []>} : vector<32x256xbf16>, vector<256x256xbf16>, vector<32x256xf32> -> vector<32x256xf32>
    %c0_42 = arith.constant 0 : index
    %c0_43 = arith.constant 0 : index
    %93 = vector.load %arg11[%c0_42, %c0_43] : memref<1x256xf32, #tpu.memory_space<vmem>>, vector<1x256xf32>
    %94 = vector.shape_cast %93 : vector<1x256xf32> to vector<256xf32>
    %95 = vector.shape_cast %94 : vector<256xf32> to vector<1x256xf32>
    %96 = vector.broadcast %95 : vector<1x256xf32> to vector<32x256xf32>
    %97 = arith.addf %92, %96 : vector<32x256xf32>
    %98 = arith.addf %1, %97 : vector<32x256xf32>
    %c0_44 = arith.constant 0 : index
    %c0_45 = arith.constant 0 : index
    %99 = vector.load %arg12[%c0_44, %c0_45] : memref<1x256xf32, #tpu.memory_space<vmem>>, vector<1x256xf32>
    %100 = vector.shape_cast %99 : vector<1x256xf32> to vector<256xf32>
    %c0_46 = arith.constant 0 : index
    %c0_47 = arith.constant 0 : index
    %101 = vector.load %arg13[%c0_46, %c0_47] : memref<1x256xf32, #tpu.memory_space<vmem>>, vector<1x256xf32>
    %102 = vector.shape_cast %101 : vector<1x256xf32> to vector<256xf32>
    %cst_48 = arith.constant dense<0.000000e+00> : vector<32xf32>
    %103 = vector.multi_reduction <add>, %98, %cst_48 [1] : vector<32x256xf32> to vector<32xf32>
    %104 = vector.shape_cast %103 : vector<32xf32> to vector<32x1xf32>
    %cst_49 = arith.constant 2.560000e+02 : f32
    %105 = vector.broadcast %cst_49 : f32 to vector<32x1xf32>
    %106 = arith.divf %104, %105 : vector<32x1xf32>
    %107 = vector.broadcast %106 : vector<32x1xf32> to vector<32x256xf32>
    %108 = arith.subf %98, %107 : vector<32x256xf32>
    %109 = arith.mulf %108, %108 : vector<32x256xf32>
    %cst_50 = arith.constant dense<0.000000e+00> : vector<32xf32>
    %110 = vector.multi_reduction <add>, %109, %cst_50 [1] : vector<32x256xf32> to vector<32xf32>
    %111 = vector.shape_cast %110 : vector<32xf32> to vector<32x1xf32>
    %cst_51 = arith.constant 2.560000e+02 : f32
    %112 = vector.broadcast %cst_51 : f32 to vector<32x1xf32>
    %113 = arith.divf %111, %112 : vector<32x1xf32>
    %cst_52 = arith.constant 9.99999974E-6 : f32
    %114 = vector.broadcast %cst_52 : f32 to vector<32x1xf32>
    %115 = arith.addf %113, %114 : vector<32x1xf32>
    %116 = math.rsqrt %115 : vector<32x1xf32>
    %117 = vector.broadcast %116 : vector<32x1xf32> to vector<32x256xf32>
    %118 = arith.mulf %108, %117 : vector<32x256xf32>
    %119 = vector.shape_cast %100 : vector<256xf32> to vector<1x256xf32>
    %120 = vector.broadcast %119 : vector<1x256xf32> to vector<32x256xf32>
    %121 = arith.mulf %118, %120 : vector<32x256xf32>
    %122 = vector.shape_cast %102 : vector<256xf32> to vector<1x256xf32>
    %123 = vector.broadcast %122 : vector<1x256xf32> to vector<32x256xf32>
    %124 = arith.addf %121, %123 : vector<32x256xf32>
    %125 = arith.truncf %124 : vector<32x256xf32> to vector<32x256xbf16>
    %c0_53 = arith.constant 0 : index
    %c0_54 = arith.constant 0 : index
    %126 = vector.load %arg14[%c0_53, %c0_54] : memref<256x256xbf16, #tpu.memory_space<vmem>>, vector<256x256xbf16>
    %cst_55 = arith.constant dense<0.000000e+00> : vector<32x256xf32>
    %127 = tpu.matmul %125, %126, %cst_55 {dimension_numbers = #tpu.dot_dimension_numbers<[1], [0], [0], [1], [0, 0, 1, 1], [], []>} : vector<32x256xbf16>, vector<256x256xbf16>, vector<32x256xf32> -> vector<32x256xf32>
    %c0_56 = arith.constant 0 : index
    %c0_57 = arith.constant 0 : index
    %128 = vector.load %arg15[%c0_56, %c0_57] : memref<1x256xf32, #tpu.memory_space<vmem>>, vector<1x256xf32>
    %129 = vector.shape_cast %128 : vector<1x256xf32> to vector<256xf32>
    %130 = vector.shape_cast %129 : vector<256xf32> to vector<1x256xf32>
    %131 = vector.broadcast %130 : vector<1x256xf32> to vector<32x256xf32>
    %132 = arith.addf %127, %131 : vector<32x256xf32>
    %cst_58 = arith.constant 5.000000e-01 : f32
    %133 = vector.broadcast %cst_58 : f32 to vector<32x256xf32>
    %134 = arith.mulf %133, %132 : vector<32x256xf32>
    %135 = arith.mulf %132, %132 : vector<32x256xf32>
    %136 = arith.mulf %135, %132 : vector<32x256xf32>
    %cst_59 = arith.constant 4.471500e-02 : f32
    %137 = vector.broadcast %cst_59 : f32 to vector<32x256xf32>
    %138 = arith.mulf %137, %136 : vector<32x256xf32>
    %139 = arith.addf %132, %138 : vector<32x256xf32>
    %cst_60 = arith.constant 0.797884583 : f32
    %140 = vector.broadcast %cst_60 : f32 to vector<32x256xf32>
    %141 = arith.mulf %140, %139 : vector<32x256xf32>
    %142 = math.tanh %141 : vector<32x256xf32>
    %cst_61 = arith.constant 1.000000e+00 : f32
    %143 = vector.broadcast %cst_61 : f32 to vector<32x256xf32>
    %144 = arith.addf %143, %142 : vector<32x256xf32>
    %145 = arith.mulf %134, %144 : vector<32x256xf32>
    %146 = arith.truncf %145 : vector<32x256xf32> to vector<32x256xbf16>
    %c0_62 = arith.constant 0 : index
    %c0_63 = arith.constant 0 : index
    %147 = vector.load %arg16[%c0_62, %c0_63] : memref<256x256xbf16, #tpu.memory_space<vmem>>, vector<256x256xbf16>
    %cst_64 = arith.constant dense<0.000000e+00> : vector<32x256xf32>
    %148 = tpu.matmul %146, %147, %cst_64 {dimension_numbers = #tpu.dot_dimension_numbers<[1], [0], [0], [1], [0, 0, 1, 1], [], []>} : vector<32x256xbf16>, vector<256x256xbf16>, vector<32x256xf32> -> vector<32x256xf32>
    %c0_65 = arith.constant 0 : index
    %c0_66 = arith.constant 0 : index
    %149 = vector.load %arg17[%c0_65, %c0_66] : memref<1x256xf32, #tpu.memory_space<vmem>>, vector<1x256xf32>
    %150 = vector.shape_cast %149 : vector<1x256xf32> to vector<256xf32>
    %151 = vector.shape_cast %150 : vector<256xf32> to vector<1x256xf32>
    %152 = vector.broadcast %151 : vector<1x256xf32> to vector<32x256xf32>
    %153 = arith.addf %148, %152 : vector<32x256xf32>
    %154 = arith.addf %98, %153 : vector<32x256xf32>
    %c0_67 = arith.constant 0 : index
    %c0_68 = arith.constant 0 : index
    %c0_69 = arith.constant 0 : index
    %155 = vector.load %arg18[%c0_67, %c0_68, %c0_69] : memref<1x32x256xf32, #tpu.memory_space<vmem>>, vector<1x32x256xf32>
    %156 = vector.shape_cast %155 : vector<1x32x256xf32> to vector<32x256xf32>
    %157 = vector.shape_cast %154 : vector<32x256xf32> to vector<1x32x256xf32>
    tpu.vector_store %arg18[%c0_67, %c0_68, %c0_69], %157 {strides = array<i32>} : memref<1x32x256xf32, #tpu.memory_space<vmem>>, vector<1x32x256xf32>,
    return
  }
  func.func @transform_0(%arg0: i32) -> (i32, i32, i32) {
    %c0_i32 = arith.constant 0 : i32
    %c0_i32_0 = arith.constant 0 : i32
    %c0_i32_1 = arith.constant 0 : i32
    return %arg0, %c0_i32, %c0_i32_0 : i32, i32, i32
  }
  func.func @transform_1(%arg0: i32) -> (i32, i32) {
    %c0_i32 = arith.constant 0 : i32
    %c0_i32_0 = arith.constant 0 : i32
    %c0_i32_1 = arith.constant 0 : i32
    return %c0_i32, %c0_i32_0 : i32, i32
  }
  func.func @transform_2(%arg0: i32) -> (i32, i32) {
    %c0_i32 = arith.constant 0 : i32
    %c0_i32_0 = arith.constant 0 : i32
    %c0_i32_1 = arith.constant 0 : i32
    return %c0_i32, %c0_i32_0 : i32, i32
  }
  func.func @transform_3(%arg0: i32) -> (i32, i32) {
    %c0_i32 = arith.constant 0 : i32
    %c0_i32_0 = arith.constant 0 : i32
    %c0_i32_1 = arith.constant 0 : i32
    return %c0_i32, %c0_i32_0 : i32, i32
  }
  func.func @transform_4(%arg0: i32) -> (i32, i32) {
    %c0_i32 = arith.constant 0 : i32
    %c0_i32_0 = arith.constant 0 : i32
    %c0_i32_1 = arith.constant 0 : i32
    return %c0_i32, %c0_i32_0 : i32, i32
  }
  func.func @transform_5(%arg0: i32) -> (i32, i32) {
    %c0_i32 = arith.constant 0 : i32
    %c0_i32_0 = arith.constant 0 : i32
    %c0_i32_1 = arith.constant 0 : i32
    return %c0_i32, %c0_i32_0 : i32, i32
  }
  func.func @transform_6(%arg0: i32) -> (i32, i32) {
    %c0_i32 = arith.constant 0 : i32
    %c0_i32_0 = arith.constant 0 : i32
    %c0_i32_1 = arith.constant 0 : i32
    return %c0_i32, %c0_i32_0 : i32, i32
  }
  func.func @transform_7(%arg0: i32) -> (i32, i32) {
    %c0_i32 = arith.constant 0 : i32
    %c0_i32_0 = arith.constant 0 : i32
    %c0_i32_1 = arith.constant 0 : i32
    return %c0_i32, %c0_i32_0 : i32, i32
  }
  func.func @transform_8(%arg0: i32) -> (i32, i32) {
    %c0_i32 = arith.constant 0 : i32
    %c0_i32_0 = arith.constant 0 : i32
    %c0_i32_1 = arith.constant 0 : i32
    return %c0_i32, %c0_i32_0 : i32, i32
  }
  func.func @transform_9(%arg0: i32) -> (i32, i32) {
    %c0_i32 = arith.constant 0 : i32
    %c0_i32_0 = arith.constant 0 : i32
    %c0_i32_1 = arith.constant 0 : i32
    return %c0_i32, %c0_i32_0 : i32, i32
  }
  func.func @transform_10(%arg0: i32) -> (i32, i32) {
    %c0_i32 = arith.constant 0 : i32
    %c0_i32_0 = arith.constant 0 : i32
    %c0_i32_1 = arith.constant 0 : i32
    return %c0_i32, %c0_i32_0 : i32, i32
  }
  func.func @transform_11(%arg0: i32) -> (i32, i32) {
    %c0_i32 = arith.constant 0 : i32
    %c0_i32_0 = arith.constant 0 : i32
    %c0_i32_1 = arith.constant 0 : i32
    return %c0_i32, %c0_i32_0 : i32, i32
  }
  func.func @transform_12(%arg0: i32) -> (i32, i32) {
    %c0_i32 = arith.constant 0 : i32
    %c0_i32_0 = arith.constant 0 : i32
    %c0_i32_1 = arith.constant 0 : i32
    return %c0_i32, %c0_i32_0 : i32, i32
  }
  func.func @transform_13(%arg0: i32) -> (i32, i32) {
    %c0_i32 = arith.constant 0 : i32
    %c0_i32_0 = arith.constant 0 : i32
    %c0_i32_1 = arith.constant 0 : i32
    return %c0_i32, %c0_i32_0 : i32, i32
  }
  func.func @transform_14(%arg0: i32) -> (i32, i32) {
    %c0_i32 = arith.constant 0 : i32
    %c0_i32_0 = arith.constant 0 : i32
    %c0_i32_1 = arith.constant 0 : i32
    return %c0_i32, %c0_i32_0 : i32, i32
  }
  func.func @transform_15(%arg0: i32) -> (i32, i32) {
    %c0_i32 = arith.constant 0 : i32
    %c0_i32_0 = arith.constant 0 : i32
    %c0_i32_1 = arith.constant 0 : i32
    return %c0_i32, %c0_i32_0 : i32, i32
  }
  func.func @transform_16(%arg0: i32) -> (i32, i32) {
    %c0_i32 = arith.constant 0 : i32
    %c0_i32_0 = arith.constant 0 : i32
    %c0_i32_1 = arith.constant 0 : i32
    return %c0_i32, %c0_i32_0 : i32, i32
  }
  func.func @transform_17(%arg0: i32) -> (i32, i32, i32) {
    %c0_i32 = arith.constant 0 : i32
    %c0_i32_0 = arith.constant 0 : i32
    %c0_i32_1 = arith.constant 0 : i32
    return %arg0, %c0_i32, %c0_i32_0 : i32, i32, i32
  }
}

module attributes {stable_mosaic.version = 11 : i64} {
  func.func @_prenorm_layer_kernel(%arg0: i32, %arg1: memref<1x32x256xf32, #tpu.memory_space<vmem>>, %arg2: memref<1x256xf32, #tpu.memory_space<vmem>>, %arg3: memref<1x256xf32, #tpu.memory_space<vmem>>, %arg4: memref<256x256xbf16, #tpu.memory_space<vmem>>, %arg5: memref<256x256xbf16, #tpu.memory_space<vmem>>, %arg6: memref<256x256xbf16, #tpu.memory_space<vmem>>, %arg7: memref<1x256xf32, #tpu.memory_space<vmem>>, %arg8: memref<1x256xf32, #tpu.memory_space<vmem>>, %arg9: memref<1x256xf32, #tpu.memory_space<vmem>>, %arg10: memref<256x256xbf16, #tpu.memory_space<vmem>>, %arg11: memref<1x256xf32, #tpu.memory_space<vmem>>, %arg12: memref<1x256xf32, #tpu.memory_space<vmem>>, %arg13: memref<1x256xf32, #tpu.memory_space<vmem>>, %arg14: memref<256x256xbf16, #tpu.memory_space<vmem>>, %arg15: memref<1x256xf32, #tpu.memory_space<vmem>>, %arg16: memref<256x256xbf16, #tpu.memory_space<vmem>>, %arg17: memref<1x256xf32, #tpu.memory_space<vmem>>, %arg18: memref<1x32x256xf32, #tpu.memory_space<vmem>>, %arg19: memref<32x256xf32, #tpu.memory_space<vmem>>) attributes {dimension_semantics = [#tpu.dimension_semantics<parallel>], iteration_bounds = array<i64: 2>, scalar_prefetch = 0 : i64, scratch_operands = 1 : i64, tpu.core_type = #tpu.core_type<tc>, window_params = [{transform_indices = @transform_0, window_bounds = array<i64: 1, 32, 256>}, {pipeline_mode = #tpu.pipeline_mode<synchronous>, transform_indices = @transform_1, window_bounds = array<i64: 1, 256>}, {pipeline_mode = #tpu.pipeline_mode<synchronous>, transform_indices = @transform_2, window_bounds = array<i64: 1, 256>}, {pipeline_mode = #tpu.pipeline_mode<synchronous>, transform_indices = @transform_3, window_bounds = array<i64: 256, 256>}, {pipeline_mode = #tpu.pipeline_mode<synchronous>, transform_indices = @transform_4, window_bounds = array<i64: 256, 256>}, {pipeline_mode = #tpu.pipeline_mode<synchronous>, transform_indices = @transform_5, window_bounds = array<i64: 256, 256>}, {pipeline_mode = #tpu.pipeline_mode<synchronous>, transform_indices = @transform_6, window_bounds = array<i64: 1, 256>}, {pipeline_mode = #tpu.pipeline_mode<synchronous>, transform_indices = @transform_7, window_bounds = array<i64: 1, 256>}, {pipeline_mode = #tpu.pipeline_mode<synchronous>, transform_indices = @transform_8, window_bounds = array<i64: 1, 256>}, {pipeline_mode = #tpu.pipeline_mode<synchronous>, transform_indices = @transform_9, window_bounds = array<i64: 256, 256>}, {pipeline_mode = #tpu.pipeline_mode<synchronous>, transform_indices = @transform_10, window_bounds = array<i64: 1, 256>}, {pipeline_mode = #tpu.pipeline_mode<synchronous>, transform_indices = @transform_11, window_bounds = array<i64: 1, 256>}, {pipeline_mode = #tpu.pipeline_mode<synchronous>, transform_indices = @transform_12, window_bounds = array<i64: 1, 256>}, {pipeline_mode = #tpu.pipeline_mode<synchronous>, transform_indices = @transform_13, window_bounds = array<i64: 256, 256>}, {pipeline_mode = #tpu.pipeline_mode<synchronous>, transform_indices = @transform_14, window_bounds = array<i64: 1, 256>}, {pipeline_mode = #tpu.pipeline_mode<synchronous>, transform_indices = @transform_15, window_bounds = array<i64: 256, 256>}, {pipeline_mode = #tpu.pipeline_mode<synchronous>, transform_indices = @transform_16, window_bounds = array<i64: 1, 256>}, {transform_indices = @transform_17, window_bounds = array<i64: 1, 32, 256>}]} {
    %c0 = arith.constant 0 : index
    %c0_0 = arith.constant 0 : index
    %c0_1 = arith.constant 0 : index
    %0 = vector.load %arg1[%c0, %c0_0, %c0_1] : memref<1x32x256xf32, #tpu.memory_space<vmem>>, vector<1x32x256xf32>
    %1 = vector.shape_cast %0 : vector<1x32x256xf32> to vector<32x256xf32>
    %c0_2 = arith.constant 0 : index
    %c0_3 = arith.constant 0 : index
    %2 = vector.load %arg2[%c0_2, %c0_3] : memref<1x256xf32, #tpu.memory_space<vmem>>, vector<1x256xf32>
    %3 = vector.shape_cast %2 : vector<1x256xf32> to vector<256xf32>
    %c0_4 = arith.constant 0 : index
    %c0_5 = arith.constant 0 : index
    %4 = vector.load %arg3[%c0_4, %c0_5] : memref<1x256xf32, #tpu.memory_space<vmem>>, vector<1x256xf32>
    %5 = vector.shape_cast %4 : vector<1x256xf32> to vector<256xf32>
    %cst = arith.constant dense<0.000000e+00> : vector<32xf32>
    %6 = vector.multi_reduction <add>, %1, %cst [1] : vector<32x256xf32> to vector<32xf32>
    %7 = vector.shape_cast %6 : vector<32xf32> to vector<32x1xf32>
    %cst_6 = arith.constant 2.560000e+02 : f32
    %8 = vector.broadcast %cst_6 : f32 to vector<32x1xf32>
    %9 = arith.divf %7, %8 : vector<32x1xf32>
    %10 = vector.broadcast %9 : vector<32x1xf32> to vector<32x256xf32>
    %11 = arith.subf %1, %10 : vector<32x256xf32>
    %12 = arith.mulf %11, %11 : vector<32x256xf32>
    %cst_7 = arith.constant dense<0.000000e+00> : vector<32xf32>
    %13 = vector.multi_reduction <add>, %12, %cst_7 [1] : vector<32x256xf32> to vector<32xf32>
    %14 = vector.shape_cast %13 : vector<32xf32> to vector<32x1xf32>
    %cst_8 = arith.constant 2.560000e+02 : f32
    %15 = vector.broadcast %cst_8 : f32 to vector<32x1xf32>
    %16 = arith.divf %14, %15 : vector<32x1xf32>
    %cst_9 = arith.constant 9.99999974E-6 : f32
    %17 = vector.broadcast %cst_9 : f32 to vector<32x1xf32>
    %18 = arith.addf %16, %17 : vector<32x1xf32>
    %19 = math.rsqrt %18 : vector<32x1xf32>
    %20 = vector.broadcast %19 : vector<32x1xf32> to vector<32x256xf32>
    %21 = arith.mulf %11, %20 : vector<32x256xf32>
    %22 = vector.shape_cast %3 : vector<256xf32> to vector<1x256xf32>
    %23 = vector.broadcast %22 : vector<1x256xf32> to vector<32x256xf32>
    %24 = arith.mulf %21, %23 : vector<32x256xf32>
    %25 = vector.shape_cast %5 : vector<256xf32> to vector<1x256xf32>
    %26 = vector.broadcast %25 : vector<1x256xf32> to vector<32x256xf32>
    %27 = arith.addf %24, %26 : vector<32x256xf32>
    %28 = arith.truncf %27 : vector<32x256xf32> to vector<32x256xbf16>
    %c0_10 = arith.constant 0 : index
    %c0_11 = arith.constant 0 : index
    %29 = vector.load %arg4[%c0_10, %c0_11] : memref<256x256xbf16, #tpu.memory_space<vmem>>, vector<256x256xbf16>
    %cst_12 = arith.constant dense<0.000000e+00> : vector<32x256xf32>
    %30 = tpu.matmul %28, %29, %cst_12 {dimension_numbers = #tpu.dot_dimension_numbers<[1], [0], [0], [1], [0, 0, 1, 1], [], []>} : vector<32x256xbf16>, vector<256x256xbf16>, vector<32x256xf32> -> vector<32x256xf32>
    %c0_13 = arith.constant 0 : index
    %c0_14 = arith.constant 0 : index
    %31 = vector.load %arg7[%c0_13, %c0_14] : memref<1x256xf32, #tpu.memory_space<vmem>>, vector<1x256xf32>
    %32 = vector.shape_cast %31 : vector<1x256xf32> to vector<256xf32>
    %33 = vector.shape_cast %32 : vector<256xf32> to vector<1x256xf32>
    %34 = vector.broadcast %33 : vector<1x256xf32> to vector<32x256xf32>
    %35 = arith.addf %30, %34 : vector<32x256xf32>
    %c0_15 = arith.constant 0 : index
    %c0_16 = arith.constant 0 : index
    %36 = vector.load %arg5[%c0_15, %c0_16] : memref<256x256xbf16, #tpu.memory_space<vmem>>, vector<256x256xbf16>
    %cst_17 = arith.constant dense<0.000000e+00> : vector<32x256xf32>
    %37 = tpu.matmul %28, %36, %cst_17 {dimension_numbers = #tpu.dot_dimension_numbers<[1], [0], [0], [1], [0, 0, 1, 1], [], []>} : vector<32x256xbf16>, vector<256x256xbf16>, vector<32x256xf32> -> vector<32x256xf32>
    %c0_18 = arith.constant 0 : index
    %c0_19 = arith.constant 0 : index
    %38 = vector.load %arg8[%c0_18, %c0_19] : memref<1x256xf32, #tpu.memory_space<vmem>>, vector<1x256xf32>
    %39 = vector.shape_cast %38 : vector<1x256xf32> to vector<256xf32>
    %40 = vector.shape_cast %39 : vector<256xf32> to vector<1x256xf32>
    %41 = vector.broadcast %40 : vector<1x256xf32> to vector<32x256xf32>
    %42 = arith.addf %37, %41 : vector<32x256xf32>
    %c0_20 = arith.constant 0 : index
    %c0_21 = arith.constant 0 : index
    %43 = vector.load %arg6[%c0_20, %c0_21] : memref<256x256xbf16, #tpu.memory_space<vmem>>, vector<256x256xbf16>
    %cst_22 = arith.constant dense<0.000000e+00> : vector<32x256xf32>
    %44 = tpu.matmul %28, %43, %cst_22 {dimension_numbers = #tpu.dot_dimension_numbers<[1], [0], [0], [1], [0, 0, 1, 1], [], []>} : vector<32x256xbf16>, vector<256x256xbf16>, vector<32x256xf32> -> vector<32x256xf32>
    %c0_23 = arith.constant 0 : index
    %c0_24 = arith.constant 0 : index
    %45 = vector.load %arg9[%c0_23, %c0_24] : memref<1x256xf32, #tpu.memory_space<vmem>>, vector<1x256xf32>
    %46 = vector.shape_cast %45 : vector<1x256xf32> to vector<256xf32>
    %47 = vector.shape_cast %46 : vector<256xf32> to vector<1x256xf32>
    %48 = vector.broadcast %47 : vector<1x256xf32> to vector<32x256xf32>
    %49 = arith.addf %44, %48 : vector<32x256xf32>
    %cst_25 = arith.constant 0.0883883461 : f32
    %50 = vector.broadcast %cst_25 : f32 to vector<32x256xf32>
    %51 = arith.mulf %35, %50 : vector<32x256xf32>
    %52 = arith.truncf %51 : vector<32x256xf32> to vector<32x256xbf16>
    %53 = arith.truncf %42 : vector<32x256xf32> to vector<32x256xbf16>
    %54 = arith.truncf %49 : vector<32x256xf32> to vector<32x256xbf16>
    %55 = vector.extract_strided_slice %52 {offsets = [0, 0], sizes = [32, 128], strides = [1, 1]} : vector<32x256xbf16> to vector<32x128xbf16>
    %56 = vector.extract_strided_slice %53 {offsets = [0, 0], sizes = [32, 128], strides = [1, 1]} : vector<32x256xbf16> to vector<32x128xbf16>
    %cst_26 = arith.constant dense<0.000000e+00> : vector<32x32xf32>
    %57 = tpu.matmul %55, %56, %cst_26 {dimension_numbers = #tpu.dot_dimension_numbers<[1], [1], [0], [0], [0, 0, 1, 0], [], []>} : vector<32x128xbf16>, vector<32x128xbf16>, vector<32x32xf32> -> vector<32x32xf32>
    %cst_27 = arith.constant dense<0xFF800000> : vector<32xf32>
    %58 = vector.multi_reduction <maximumf>, %57, %cst_27 [1] : vector<32x32xf32> to vector<32xf32>
    %59 = vector.shape_cast %58 : vector<32xf32> to vector<32x1xf32>
    %60 = vector.broadcast %59 : vector<32x1xf32> to vector<32x32xf32>
    %61 = arith.subf %57, %60 : vector<32x32xf32>
    %62 = math.exp %61 : vector<32x32xf32>
    %cst_28 = arith.constant dense<0.000000e+00> : vector<32xf32>
    %63 = vector.multi_reduction <add>, %62, %cst_28 [1] : vector<32x32xf32> to vector<32xf32>
    %64 = vector.shape_cast %63 : vector<32xf32> to vector<32x1xf32>
    %65 = tpu.reciprocal %64 {approx = true} : vector<32x1xf32> -> vector<32x1xf32>
    %66 = vector.broadcast %65 : vector<32x1xf32> to vector<32x32xf32>
    %67 = arith.mulf %62, %66 : vector<32x32xf32>
    %68 = arith.truncf %67 : vector<32x32xf32> to vector<32x32xbf16>
    %69 = vector.extract_strided_slice %54 {offsets = [0, 0], sizes = [32, 128], strides = [1, 1]} : vector<32x256xbf16> to vector<32x128xbf16>
    %cst_29 = arith.constant dense<0.000000e+00> : vector<32x128xf32>
    %70 = tpu.matmul %68, %69, %cst_29 {dimension_numbers = #tpu.dot_dimension_numbers<[1], [0], [0], [1], [0, 0, 1, 1], [], []>} : vector<32x32xbf16>, vector<32x128xbf16>, vector<32x128xf32> -> vector<32x128xf32>
    %c0_30 = arith.constant 0 : index
    %c0_31 = arith.constant 0 : index
    %71 = vector.load %arg19[%c0_30, %c0_31] : memref<32x256xf32, #tpu.memory_space<vmem>>, vector<32x128xf32>
    tpu.vector_store %arg19[%c0_30, %c0_31], %70 {strides = array<i32>} : memref<32x256xf32, #tpu.memory_space<vmem>>, vector<32x128xf32>,
    %72 = vector.extract_strided_slice %52 {offsets = [0, 128], sizes = [32, 128], strides = [1, 1]} : vector<32x256xbf16> to vector<32x128xbf16>
    %73 = vector.extract_strided_slice %53 {offsets = [0, 128], sizes = [32, 128], strides = [1, 1]} : vector<32x256xbf16> to vector<32x128xbf16>
    %cst_32 = arith.constant dense<0.000000e+00> : vector<32x32xf32>
    %74 = tpu.matmul %72, %73, %cst_32 {dimension_numbers = #tpu.dot_dimension_numbers<[1], [1], [0], [0], [0, 0, 1, 0], [], []>} : vector<32x128xbf16>, vector<32x128xbf16>, vector<32x32xf32> -> vector<32x32xf32>
    %cst_33 = arith.constant dense<0xFF800000> : vector<32xf32>
    %75 = vector.multi_reduction <maximumf>, %74, %cst_33 [1] : vector<32x32xf32> to vector<32xf32>
    %76 = vector.shape_cast %75 : vector<32xf32> to vector<32x1xf32>
    %77 = vector.broadcast %76 : vector<32x1xf32> to vector<32x32xf32>
    %78 = arith.subf %74, %77 : vector<32x32xf32>
    %79 = math.exp %78 : vector<32x32xf32>
    %cst_34 = arith.constant dense<0.000000e+00> : vector<32xf32>
    %80 = vector.multi_reduction <add>, %79, %cst_34 [1] : vector<32x32xf32> to vector<32xf32>
    %81 = vector.shape_cast %80 : vector<32xf32> to vector<32x1xf32>
    %82 = tpu.reciprocal %81 {approx = true} : vector<32x1xf32> -> vector<32x1xf32>
    %83 = vector.broadcast %82 : vector<32x1xf32> to vector<32x32xf32>
    %84 = arith.mulf %79, %83 : vector<32x32xf32>
    %85 = arith.truncf %84 : vector<32x32xf32> to vector<32x32xbf16>
    %86 = vector.extract_strided_slice %54 {offsets = [0, 128], sizes = [32, 128], strides = [1, 1]} : vector<32x256xbf16> to vector<32x128xbf16>
    %cst_35 = arith.constant dense<0.000000e+00> : vector<32x128xf32>
    %87 = tpu.matmul %85, %86, %cst_35 {dimension_numbers = #tpu.dot_dimension_numbers<[1], [0], [0], [1], [0, 0, 1, 1], [], []>} : vector<32x32xbf16>, vector<32x128xbf16>, vector<32x128xf32> -> vector<32x128xf32>
    %c0_36 = arith.constant 0 : index
    %c128 = arith.constant 128 : index
    %88 = vector.load %arg19[%c0_36, %c128] : memref<32x256xf32, #tpu.memory_space<vmem>>, vector<32x128xf32>
    tpu.vector_store %arg19[%c0_36, %c128], %87 {strides = array<i32>} : memref<32x256xf32, #tpu.memory_space<vmem>>, vector<32x128xf32>,
    %c0_37 = arith.constant 0 : index
    %c0_38 = arith.constant 0 : index
    %89 = vector.load %arg19[%c0_37, %c0_38] : memref<32x256xf32, #tpu.memory_space<vmem>>, vector<32x256xf32>
    %90 = arith.truncf %89 : vector<32x256xf32> to vector<32x256xbf16>
    %c0_39 = arith.constant 0 : index
    %c0_40 = arith.constant 0 : index
    %91 = vector.load %arg10[%c0_39, %c0_40] : memref<256x256xbf16, #tpu.memory_space<vmem>>, vector<256x256xbf16>
    %cst_41 = arith.constant dense<0.000000e+00> : vector<32x256xf32>
    %92 = tpu.matmul %90, %91, %cst_41 {dimension_numbers = #tpu.dot_dimension_numbers<[1], [0], [0], [1], [0, 0, 1, 1], [], []>} : vector<32x256xbf16>, vector<256x256xbf16>, vector<32x256xf32> -> vector<32x256xf32>
    %c0_42 = arith.constant 0 : index
    %c0_43 = arith.constant 0 : index
    %93 = vector.load %arg11[%c0_42, %c0_43] : memref<1x256xf32, #tpu.memory_space<vmem>>, vector<1x256xf32>
    %94 = vector.shape_cast %93 : vector<1x256xf32> to vector<256xf32>
    %95 = vector.shape_cast %94 : vector<256xf32> to vector<1x256xf32>
    %96 = vector.broadcast %95 : vector<1x256xf32> to vector<32x256xf32>
    %97 = arith.addf %92, %96 : vector<32x256xf32>
    %98 = arith.addf %1, %97 : vector<32x256xf32>
    %c0_44 = arith.constant 0 : index
    %c0_45 = arith.constant 0 : index
    %99 = vector.load %arg12[%c0_44, %c0_45] : memref<1x256xf32, #tpu.memory_space<vmem>>, vector<1x256xf32>
    %100 = vector.shape_cast %99 : vector<1x256xf32> to vector<256xf32>
    %c0_46 = arith.constant 0 : index
    %c0_47 = arith.constant 0 : index
    %101 = vector.load %arg13[%c0_46, %c0_47] : memref<1x256xf32, #tpu.memory_space<vmem>>, vector<1x256xf32>
    %102 = vector.shape_cast %101 : vector<1x256xf32> to vector<256xf32>
    %cst_48 = arith.constant dense<0.000000e+00> : vector<32xf32>
    %103 = vector.multi_reduction <add>, %98, %cst_48 [1] : vector<32x256xf32> to vector<32xf32>
    %104 = vector.shape_cast %103 : vector<32xf32> to vector<32x1xf32>
    %cst_49 = arith.constant 2.560000e+02 : f32
    %105 = vector.broadcast %cst_49 : f32 to vector<32x1xf32>
    %106 = arith.divf %104, %105 : vector<32x1xf32>
    %107 = vector.broadcast %106 : vector<32x1xf32> to vector<32x256xf32>
    %108 = arith.subf %98, %107 : vector<32x256xf32>
    %109 = arith.mulf %108, %108 : vector<32x256xf32>
    %cst_50 = arith.constant dense<0.000000e+00> : vector<32xf32>
    %110 = vector.multi_reduction <add>, %109, %cst_50 [1] : vector<32x256xf32> to vector<32xf32>
    %111 = vector.shape_cast %110 : vector<32xf32> to vector<32x1xf32>
    %cst_51 = arith.constant 2.560000e+02 : f32
    %112 = vector.broadcast %cst_51 : f32 to vector<32x1xf32>
    %113 = arith.divf %111, %112 : vector<32x1xf32>
    %cst_52 = arith.constant 9.99999974E-6 : f32
    %114 = vector.broadcast %cst_52 : f32 to vector<32x1xf32>
    %115 = arith.addf %113, %114 : vector<32x1xf32>
    %116 = math.rsqrt %115 : vector<32x1xf32>
    %117 = vector.broadcast %116 : vector<32x1xf32> to vector<32x256xf32>
    %118 = arith.mulf %108, %117 : vector<32x256xf32>
    %119 = vector.shape_cast %100 : vector<256xf32> to vector<1x256xf32>
    %120 = vector.broadcast %119 : vector<1x256xf32> to vector<32x256xf32>
    %121 = arith.mulf %118, %120 : vector<32x256xf32>
    %122 = vector.shape_cast %102 : vector<256xf32> to vector<1x256xf32>
    %123 = vector.broadcast %122 : vector<1x256xf32> to vector<32x256xf32>
    %124 = arith.addf %121, %123 : vector<32x256xf32>
    %125 = arith.truncf %124 : vector<32x256xf32> to vector<32x256xbf16>
    %c0_53 = arith.constant 0 : index
    %c0_54 = arith.constant 0 : index
    %126 = vector.load %arg14[%c0_53, %c0_54] : memref<256x256xbf16, #tpu.memory_space<vmem>>, vector<256x256xbf16>
    %cst_55 = arith.constant dense<0.000000e+00> : vector<32x256xf32>
    %127 = tpu.matmul %125, %126, %cst_55 {dimension_numbers = #tpu.dot_dimension_numbers<[1], [0], [0], [1], [0, 0, 1, 1], [], []>} : vector<32x256xbf16>, vector<256x256xbf16>, vector<32x256xf32> -> vector<32x256xf32>
    %c0_56 = arith.constant 0 : index
    %c0_57 = arith.constant 0 : index
    %128 = vector.load %arg15[%c0_56, %c0_57] : memref<1x256xf32, #tpu.memory_space<vmem>>, vector<1x256xf32>
    %129 = vector.shape_cast %128 : vector<1x256xf32> to vector<256xf32>
    %130 = vector.shape_cast %129 : vector<256xf32> to vector<1x256xf32>
    %131 = vector.broadcast %130 : vector<1x256xf32> to vector<32x256xf32>
    %132 = arith.addf %127, %131 : vector<32x256xf32>
    %cst_58 = arith.constant 5.000000e-01 : f32
    %133 = vector.broadcast %cst_58 : f32 to vector<32x256xf32>
    %134 = arith.mulf %133, %132 : vector<32x256xf32>
    %135 = arith.mulf %132, %132 : vector<32x256xf32>
    %136 = arith.mulf %135, %132 : vector<32x256xf32>
    %cst_59 = arith.constant 4.471500e-02 : f32
    %137 = vector.broadcast %cst_59 : f32 to vector<32x256xf32>
    %138 = arith.mulf %137, %136 : vector<32x256xf32>
    %139 = arith.addf %132, %138 : vector<32x256xf32>
    %cst_60 = arith.constant 0.797884583 : f32
    %140 = vector.broadcast %cst_60 : f32 to vector<32x256xf32>
    %141 = arith.mulf %140, %139 : vector<32x256xf32>
    %142 = math.tanh %141 : vector<32x256xf32>
    %cst_61 = arith.constant 1.000000e+00 : f32
    %143 = vector.broadcast %cst_61 : f32 to vector<32x256xf32>
    %144 = arith.addf %143, %142 : vector<32x256xf32>
    %145 = arith.mulf %134, %144 : vector<32x256xf32>
    %146 = arith.truncf %145 : vector<32x256xf32> to vector<32x256xbf16>
    %c0_62 = arith.constant 0 : index
    %c0_63 = arith.constant 0 : index
    %147 = vector.load %arg16[%c0_62, %c0_63] : memref<256x256xbf16, #tpu.memory_space<vmem>>, vector<256x256xbf16>
    %cst_64 = arith.constant dense<0.000000e+00> : vector<32x256xf32>
    %148 = tpu.matmul %146, %147, %cst_64 {dimension_numbers = #tpu.dot_dimension_numbers<[1], [0], [0], [1], [0, 0, 1, 1], [], []>} : vector<32x256xbf16>, vector<256x256xbf16>, vector<32x256xf32> -> vector<32x256xf32>
    %c0_65 = arith.constant 0 : index
    %c0_66 = arith.constant 0 : index
    %149 = vector.load %arg17[%c0_65, %c0_66] : memref<1x256xf32, #tpu.memory_space<vmem>>, vector<1x256xf32>
    %150 = vector.shape_cast %149 : vector<1x256xf32> to vector<256xf32>
    %151 = vector.shape_cast %150 : vector<256xf32> to vector<1x256xf32>
    %152 = vector.broadcast %151 : vector<1x256xf32> to vector<32x256xf32>
    %153 = arith.addf %148, %152 : vector<32x256xf32>
    %154 = arith.addf %98, %153 : vector<32x256xf32>
    %c0_67 = arith.constant 0 : index
    %c0_68 = arith.constant 0 : index
    %c0_69 = arith.constant 0 : index
    %155 = vector.load %arg18[%c0_67, %c0_68, %c0_69] : memref<1x32x256xf32, #tpu.memory_space<vmem>>, vector<1x32x256xf32>
    %156 = vector.shape_cast %155 : vector<1x32x256xf32> to vector<32x256xf32>
    %157 = vector.shape_cast %154 : vector<32x256xf32> to vector<1x32x256xf32>
    tpu.vector_store %arg18[%c0_67, %c0_68, %c0_69], %157 {strides = array<i32>} : memref<1x32x256xf32, #tpu.memory_space<vmem>>, vector<1x32x256xf32>,
    return
  }
  func.func @transform_0(%arg0: i32) -> (i32, i32, i32) {
    %c0_i32 = arith.constant 0 : i32
    %c0_i32_0 = arith.constant 0 : i32
    %c0_i32_1 = arith.constant 0 : i32
    return %arg0, %c0_i32, %c0_i32_0 : i32, i32, i32
  }
  func.func @transform_1(%arg0: i32) -> (i32, i32) {
    %c0_i32 = arith.constant 0 : i32
    %c0_i32_0 = arith.constant 0 : i32
    %c0_i32_1 = arith.constant 0 : i32
    return %c0_i32, %c0_i32_0 : i32, i32
  }
  func.func @transform_2(%arg0: i32) -> (i32, i32) {
    %c0_i32 = arith.constant 0 : i32
    %c0_i32_0 = arith.constant 0 : i32
    %c0_i32_1 = arith.constant 0 : i32
    return %c0_i32, %c0_i32_0 : i32, i32
  }
  func.func @transform_3(%arg0: i32) -> (i32, i32) {
    %c0_i32 = arith.constant 0 : i32
    %c0_i32_0 = arith.constant 0 : i32
    %c0_i32_1 = arith.constant 0 : i32
    return %c0_i32, %c0_i32_0 : i32, i32
  }
  func.func @transform_4(%arg0: i32) -> (i32, i32) {
    %c0_i32 = arith.constant 0 : i32
    %c0_i32_0 = arith.constant 0 : i32
    %c0_i32_1 = arith.constant 0 : i32
    return %c0_i32, %c0_i32_0 : i32, i32
  }
  func.func @transform_5(%arg0: i32) -> (i32, i32) {
    %c0_i32 = arith.constant 0 : i32
    %c0_i32_0 = arith.constant 0 : i32
    %c0_i32_1 = arith.constant 0 : i32
    return %c0_i32, %c0_i32_0 : i32, i32
  }
  func.func @transform_6(%arg0: i32) -> (i32, i32) {
    %c0_i32 = arith.constant 0 : i32
    %c0_i32_0 = arith.constant 0 : i32
    %c0_i32_1 = arith.constant 0 : i32
    return %c0_i32, %c0_i32_0 : i32, i32
  }
  func.func @transform_7(%arg0: i32) -> (i32, i32) {
    %c0_i32 = arith.constant 0 : i32
    %c0_i32_0 = arith.constant 0 : i32
    %c0_i32_1 = arith.constant 0 : i32
    return %c0_i32, %c0_i32_0 : i32, i32
  }
  func.func @transform_8(%arg0: i32) -> (i32, i32) {
    %c0_i32 = arith.constant 0 : i32
    %c0_i32_0 = arith.constant 0 : i32
    %c0_i32_1 = arith.constant 0 : i32
    return %c0_i32, %c0_i32_0 : i32, i32
  }
  func.func @transform_9(%arg0: i32) -> (i32, i32) {
    %c0_i32 = arith.constant 0 : i32
    %c0_i32_0 = arith.constant 0 : i32
    %c0_i32_1 = arith.constant 0 : i32
    return %c0_i32, %c0_i32_0 : i32, i32
  }
  func.func @transform_10(%arg0: i32) -> (i32, i32) {
    %c0_i32 = arith.constant 0 : i32
    %c0_i32_0 = arith.constant 0 : i32
    %c0_i32_1 = arith.constant 0 : i32
    return %c0_i32, %c0_i32_0 : i32, i32
  }
  func.func @transform_11(%arg0: i32) -> (i32, i32) {
    %c0_i32 = arith.constant 0 : i32
    %c0_i32_0 = arith.constant 0 : i32
    %c0_i32_1 = arith.constant 0 : i32
    return %c0_i32, %c0_i32_0 : i32, i32
  }
  func.func @transform_12(%arg0: i32) -> (i32, i32) {
    %c0_i32 = arith.constant 0 : i32
    %c0_i32_0 = arith.constant 0 : i32
    %c0_i32_1 = arith.constant 0 : i32
    return %c0_i32, %c0_i32_0 : i32, i32
  }
  func.func @transform_13(%arg0: i32) -> (i32, i32) {
    %c0_i32 = arith.constant 0 : i32
    %c0_i32_0 = arith.constant 0 : i32
    %c0_i32_1 = arith.constant 0 : i32
    return %c0_i32, %c0_i32_0 : i32, i32
  }
  func.func @transform_14(%arg0: i32) -> (i32, i32) {
    %c0_i32 = arith.constant 0 : i32
    %c0_i32_0 = arith.constant 0 : i32
    %c0_i32_1 = arith.constant 0 : i32
    return %c0_i32, %c0_i32_0 : i32, i32
  }
  func.func @transform_15(%arg0: i32) -> (i32, i32) {
    %c0_i32 = arith.constant 0 : i32
    %c0_i32_0 = arith.constant 0 : i32
    %c0_i32_1 = arith.constant 0 : i32
    return %c0_i32, %c0_i32_0 : i32, i32
  }
  func.func @transform_16(%arg0: i32) -> (i32, i32) {
    %c0_i32 = arith.constant 0 : i32
    %c0_i32_0 = arith.constant 0 : i32
    %c0_i32_1 = arith.constant 0 : i32
    return %c0_i32, %c0_i32_0 : i32, i32
  }
  func.func @transform_17(%arg0: i32) -> (i32, i32, i32) {
    %c0_i32 = arith.constant 0 : i32
    %c0_i32_0 = arith.constant 0 : i32
    %c0_i32_1 = arith.constant 0 : i32
    return %arg0, %c0_i32, %c0_i32_0 : i32, i32, i32
  }
}

module attributes {stable_mosaic.version = 11 : i64} {
  func.func @_layernorm_kernel(%arg0: i32, %arg1: memref<2x256xf32, #tpu.memory_space<vmem>>, %arg2: memref<1x256xf32, #tpu.memory_space<vmem>>, %arg3: memref<1x256xf32, #tpu.memory_space<vmem>>, %arg4: memref<2x256xf32, #tpu.memory_space<vmem>>) attributes {dimension_semantics = [#tpu.dimension_semantics<arbitrary>], iteration_bounds = array<i64: 1>, scalar_prefetch = 0 : i64, scratch_operands = 0 : i64, tpu.core_type = #tpu.core_type<tc>, window_params = [{pipeline_mode = #tpu.pipeline_mode<synchronous>, transform_indices = @transform_0, window_bounds = array<i64: 2, 256>}, {pipeline_mode = #tpu.pipeline_mode<synchronous>, transform_indices = @transform_1, window_bounds = array<i64: 1, 256>}, {pipeline_mode = #tpu.pipeline_mode<synchronous>, transform_indices = @transform_2, window_bounds = array<i64: 1, 256>}, {pipeline_mode = #tpu.pipeline_mode<synchronous>, transform_indices = @transform_3, window_bounds = array<i64: 2, 256>}]} {
    %c0 = arith.constant 0 : index
    %c0_0 = arith.constant 0 : index
    %0 = vector.load %arg1[%c0, %c0_0] : memref<2x256xf32, #tpu.memory_space<vmem>>, vector<2x256xf32>
    %c0_1 = arith.constant 0 : index
    %c0_2 = arith.constant 0 : index
    %1 = vector.load %arg2[%c0_1, %c0_2] : memref<1x256xf32, #tpu.memory_space<vmem>>, vector<1x256xf32>
    %2 = vector.shape_cast %1 : vector<1x256xf32> to vector<256xf32>
    %c0_3 = arith.constant 0 : index
    %c0_4 = arith.constant 0 : index
    %3 = vector.load %arg3[%c0_3, %c0_4] : memref<1x256xf32, #tpu.memory_space<vmem>>, vector<1x256xf32>
    %4 = vector.shape_cast %3 : vector<1x256xf32> to vector<256xf32>
    %cst = arith.constant dense<0.000000e+00> : vector<2xf32>
    %5 = vector.multi_reduction <add>, %0, %cst [1] : vector<2x256xf32> to vector<2xf32>
    %6 = vector.shape_cast %5 : vector<2xf32> to vector<2x1xf32>
    %cst_5 = arith.constant 2.560000e+02 : f32
    %7 = vector.broadcast %cst_5 : f32 to vector<2x1xf32>
    %8 = arith.divf %6, %7 : vector<2x1xf32>
    %9 = vector.broadcast %8 : vector<2x1xf32> to vector<2x256xf32>
    %10 = arith.subf %0, %9 : vector<2x256xf32>
    %11 = arith.mulf %10, %10 : vector<2x256xf32>
    %cst_6 = arith.constant dense<0.000000e+00> : vector<2xf32>
    %12 = vector.multi_reduction <add>, %11, %cst_6 [1] : vector<2x256xf32> to vector<2xf32>
    %13 = vector.shape_cast %12 : vector<2xf32> to vector<2x1xf32>
    %cst_7 = arith.constant 2.560000e+02 : f32
    %14 = vector.broadcast %cst_7 : f32 to vector<2x1xf32>
    %15 = arith.divf %13, %14 : vector<2x1xf32>
    %cst_8 = arith.constant 9.99999974E-6 : f32
    %16 = vector.broadcast %cst_8 : f32 to vector<2x1xf32>
    %17 = arith.addf %15, %16 : vector<2x1xf32>
    %18 = math.rsqrt %17 : vector<2x1xf32>
    %19 = vector.broadcast %18 : vector<2x1xf32> to vector<2x256xf32>
    %20 = arith.mulf %10, %19 : vector<2x256xf32>
    %21 = vector.shape_cast %2 : vector<256xf32> to vector<1x256xf32>
    %22 = vector.broadcast %21 : vector<1x256xf32> to vector<2x256xf32>
    %23 = arith.mulf %20, %22 : vector<2x256xf32>
    %24 = vector.shape_cast %4 : vector<256xf32> to vector<1x256xf32>
    %25 = vector.broadcast %24 : vector<1x256xf32> to vector<2x256xf32>
    %26 = arith.addf %23, %25 : vector<2x256xf32>
    %c0_9 = arith.constant 0 : index
    %c0_10 = arith.constant 0 : index
    %27 = vector.load %arg4[%c0_9, %c0_10] : memref<2x256xf32, #tpu.memory_space<vmem>>, vector<2x256xf32>
    tpu.vector_store %arg4[%c0_9, %c0_10], %26 {strides = array<i32>} : memref<2x256xf32, #tpu.memory_space<vmem>>, vector<2x256xf32>,
    return
  }
  func.func @transform_0(%arg0: i32) -> (i32, i32) {
    %c0_i32 = arith.constant 0 : i32
    %c0_i32_0 = arith.constant 0 : i32
    %c0_i32_1 = arith.constant 0 : i32
    return %c0_i32, %c0_i32_0 : i32, i32
  }
  func.func @transform_1(%arg0: i32) -> (i32, i32) {
    %c0_i32 = arith.constant 0 : i32
    %c0_i32_0 = arith.constant 0 : i32
    %c0_i32_1 = arith.constant 0 : i32
    return %c0_i32, %c0_i32_0 : i32, i32
  }
  func.func @transform_2(%arg0: i32) -> (i32, i32) {
    %c0_i32 = arith.constant 0 : i32
    %c0_i32_0 = arith.constant 0 : i32
    %c0_i32_1 = arith.constant 0 : i32
    return %c0_i32, %c0_i32_0 : i32, i32
  }
  func.func @transform_3(%arg0: i32) -> (i32, i32) {
    %c0_i32 = arith.constant 0 : i32
    %c0_i32_0 = arith.constant 0 : i32
    %c0_i32_1 = arith.constant 0 : i32
    return %c0_i32, %c0_i32_0 : i32, i32
  }
}

</mosaic_0001>

<llo_original>
// kernel: _lambda_.5
$region0: #{_lambda_.5}
  #allocation0 [shape = 'u32[]', space=smem, size = 0x4, offset = 0x4, fixed_abs, tag = 'smem constant byte address 0x4 - core index']
  #allocation1 [shape = 'u32[144,128]{1,0:T(1,128)}', space=vmem, size = 0x12000, scoped, tag = 'internal scratch']
  %s0 = inlined_call_operand.vmem [shape: f32[2,256], index: 0, kind: input, shape index: {}]
  %s1 = inlined_call_operand.vmem [shape: f32[1,256], index: 1, kind: input, shape index: {}]
  %s2 = inlined_call_operand.vmem [shape: f32[1,256], index: 2, kind: input, shape index: {}]
  %s3 = inlined_call_operand.hbm [shape: f32[2,256], index: 3, kind: output, shape index: {}]
  %s4 = sld [smem:[#allocation0]]
  $region22: #{_lambda_.5} parent=0
    _
  %s6 = ssub.s32 1, %s4
  %s7 = scalar_select 0, %s6, %s4
  $region1: #{_lambda_.5} parent=0
    #allocation2 [shape = 'u8[2048]{0}', space=vmem, size = 0x800, scoped, tag = 'output window, operand 0, single buffered']
    #allocation3 [shape = 's32[1]{0}', space=sflag, size = 0x4, scoped, tag = 'scoped memory for _lambda_.5']
    %8 = vsyncpa [#allocation3], 0
    // Predicated region
    $region2: #{_lambda_.5} parent=1 // pred_check
      _
    $region3: #{_lambda_.5} parent=1 // pred_check_branch
      %10 = sbr.rel (0) target = $region5
    $region4: #{_lambda_.5} parent=1 // pred_region
      _
    $region5: #{_lambda_.5} parent=1 // pred_fallthru
      _
    // Predicated region
    $region6: #{_lambda_.5} parent=1 // pred_check
      _
    $region7: #{_lambda_.5} parent=1 // pred_check_branch
      %12 = sbr.rel (0) target = $region9
    $region8: #{_lambda_.5} parent=1 // pred_region
      _
    $region9: #{_lambda_.5} parent=1 // pred_fallthru
      _
    // Predicated region
    $region10: #{_lambda_.5} parent=1 // pred_check
      _
    $region11: #{_lambda_.5} parent=1 // pred_check_branch
      %14 = sbr.rel (0) target = $region13
    $region12: #{_lambda_.5} parent=1 // pred_region
      _
    $region13: #{_lambda_.5} parent=1 // pred_fallthru
      _
    %v15 = vld [vmem:[%s0] sm:$0xf]
    %v16 = vld [vmem:[%s1] sm:$0x3]
    %v17 = vld [vmem:[%s2] sm:$0x3]
    %v20 = vunpack.c.l.s4 1983009808
    %v21 = vunpack.c.0.s8 %v20
    %v22 = vlaneseq
    %v23 = vshrl.u32 %v22, 7
    %v24 = vsub.s32 %v21, %v23
    %v25 = vrot.slane %v15, %v24
    %v26 = vcombine.high %v25, %v25
    %vm29 = vcmask 1041408
    %v30 = vsel %vm29, %v25, 0.0
    %v31 = vsel %vm29, %v26, 0.0
    %v32 = vadd.f32 %v30, %v31
    %33 = vadd.xlane.f32.xlu0 %v32
    %v34 = vpop.xlane.xlu0 %33
    %v35 = vrcp.pop 256.0
    %v36 = vmul.f32 %v34, %v35
    %v39 = vunpack.c.l.s4 269488144
    %v40 = vunpack.c.0.s8 %v39
    %v41 = vlaneseq
    %v42 = vshrl.u32 %v41, 7
    %v43 = vsub.s32 %v40, %v42
    %v44 = vrot.slane %v36, %v43
    %v46 = vsub.f32 %v15, %v44
    %v47 = vmul.f32 %v46, %v46
    %v50 = vunpack.c.l.s4 1983009808
    %v51 = vunpack.c.0.s8 %v50
    %v52 = vlaneseq
    %v53 = vshrl.u32 %v52, 7
    %v54 = vsub.s32 %v51, %v53
    %v55 = vrot.slane %v47, %v54
    %v56 = vcombine.high %v55, %v55
    %v59 = vsel %vm29, %v55, 0.0
    %v60 = vsel %vm29, %v56, 0.0
    %v61 = vadd.f32 %v59, %v60
    %62 = vadd.xlane.f32.xlu0 %v61
    %v63 = vpop.xlane.xlu0 %62
    %v64 = vmul.f32 %v63, %v35
    %v65 = vadd.f32 %v64, 1e-05
    %v66 = vrsqrt.pop %v65
    %v69 = vunpack.c.l.s4 269488144
    %v70 = vunpack.c.0.s8 %v69
    %v71 = vlaneseq
    %v72 = vshrl.u32 %v71, 7
    %v73 = vsub.s32 %v70, %v72
    %v74 = vrot.slane %v66, %v73
    %v76 = vmul.f32 %v46, %v74
    %v78 = vlaneseq
    %v79 = vshrl.u32 %v78, 7
    %v80 = vsub.s32 0, %v79
    %v81 = vrot.slane %v16, %v80
    %v82 = vlaneseq
    %v83 = vshrl.u32 %v82, 7
    %v84 = vsub.s32 1, %v83
    %v85 = vrot.slane %v16, %v84
    %v86 = vcombine.low %v81, %v85
    %v88 = vunpack.c.l.s4 1983009808
    %v89 = vunpack.c.0.s8 %v88
    %v90 = vlaneseq
    %v91 = vshrl.u32 %v90, 7
    %v92 = vsub.s32 %v89, %v91
    %v93 = vrot.slane %v86, %v92
    %v95 = vmul.f32 %v76, %v93
    %v97 = vlaneseq
    %v98 = vshrl.u32 %v97, 7
    %v99 = vsub.s32 0, %v98
    %v100 = vrot.slane %v17, %v99
    %v101 = vlaneseq
    %v102 = vshrl.u32 %v101, 7
    %v103 = vsub.s32 1, %v102
    %v104 = vrot.slane %v17, %v103
    %v105 = vcombine.low %v100, %v104
    %v107 = vunpack.c.l.s4 1983009808
    %v108 = vunpack.c.0.s8 %v107
    %v109 = vlaneseq
    %v110 = vshrl.u32 %v109, 7
    %v111 = vsub.s32 %v108, %v110
    %v112 = vrot.slane %v105, %v111
    %v114 = vadd.f32 %v95, %v112
    %115 = vst [vmem:[#allocation2] sm:$0xf] %v114
    // Predicated region
    $region14: #{_lambda_.5} parent=1 // pred_check
      _
    $region15: #{_lambda_.5} parent=1 // pred_check_branch
      %117 = sbr.rel (0) target = $region17
    $region16: #{_lambda_.5} parent=1 // pred_region
      %s119 = ssub.s32 64, 64
      %120 = vsyncadd [#allocation3], %s119
      %s122 = sshll.u32 [#allocation2], 4
      %s123 = int_to_ptr.vmem [resolvable:$true] %s122
      %125 = dma.vmem_to_hbm [thread:$0]  %s123, 64, %s3, [#allocation3]
    $region17: #{_lambda_.5} parent=1 // pred_fallthru
      _
    // Predicated region
    $region18: #{_lambda_.5} parent=1 // pred_check
      _
    $region19: #{_lambda_.5} parent=1 // pred_check_branch
      %127 = sbr.rel (0) target = $region21
    $region20: #{_lambda_.5} parent=1 // pred_region
      %128 = dma.done [#allocation3], 64
    $region21: #{_lambda_.5} parent=1 // pred_fallthru
      _
    %129 = vsyncpa [#allocation3], 1

// kernel: _lambda_.3
$region0: #{_lambda_.3}
  #allocation0 [shape = 'u32[]', space=smem, size = 0x4, offset = 0x4, fixed_abs, tag = 'smem constant byte address 0x4 - core index']
  #allocation1 [shape = 'u32[144,128]{1,0:T(1,128)}', space=vmem, size = 0x12000, scoped, tag = 'internal scratch']
  #allocation2 [shape = 'f32[32,256]{1,0:T(8,128)}', space=vmem, size = 0x8000, scoped, tag = 'scratch operand']
  %s0 = inlined_call_operand.vmem [shape: f32[2,32,256], index: 0, kind: input, shape index: {}]
  %s1 = inlined_call_operand.vmem [shape: f32[1,256], index: 1, kind: input, shape index: {}]
  %s2 = inlined_call_operand.vmem [shape: f32[1,256], index: 2, kind: input, shape index: {}]
  %s3 = inlined_call_operand.vmem [shape: bf16[256,256], index: 3, kind: input, shape index: {}]
  %s4 = inlined_call_operand.vmem [shape: bf16[256,256], index: 4, kind: input, shape index: {}]
  %s5 = inlined_call_operand.vmem [shape: bf16[256,256], index: 5, kind: input, shape index: {}]
  %s6 = inlined_call_operand.vmem [shape: f32[1,256], index: 6, kind: input, shape index: {}]
  %s7 = inlined_call_operand.vmem [shape: f32[1,256], index: 7, kind: input, shape index: {}]
  %s8 = inlined_call_operand.vmem [shape: f32[1,256], index: 8, kind: input, shape index: {}]
  %s9 = inlined_call_operand.vmem [shape: bf16[256,256], index: 9, kind: input, shape index: {}]
  %s10 = inlined_call_operand.vmem [shape: f32[1,256], index: 10, kind: input, shape index: {}]
  %s11 = inlined_call_operand.vmem [shape: f32[1,256], index: 11, kind: input, shape index: {}]
  %s12 = inlined_call_operand.vmem [shape: f32[1,256], index: 12, kind: input, shape index: {}]
  %s13 = inlined_call_operand.vmem [shape: bf16[256,256], index: 13, kind: input, shape index: {}]
  %s14 = inlined_call_operand.vmem [shape: f32[1,256], index: 14, kind: input, shape index: {}]
  %s15 = inlined_call_operand.vmem [shape: bf16[256,256], index: 15, kind: input, shape index: {}]
  %s16 = inlined_call_operand.vmem [shape: f32[1,256], index: 16, kind: input, shape index: {}]
  %s17 = inlined_call_operand.vmem [shape: f32[2,32,256], index: 17, kind: output, shape index: {}]
  %s18 = sld [smem:[#allocation0]]
  $region101: #{_lambda_.3} parent=0
    _
  %s20 = ssub.s32 1, %s18
  %s21 = scalar_select 0, %s20, %s18
  loop: start=0, step=1, limit=4
  $region2: #{_lambda_.3} parent=0 // loop_pre_header
    _
  $region3: #{_lambda_.3} parent=0 // loop_header
    %s23 = sphi 0, %s27
    %p24 = scmp.ge.s32.totalorder %s23, 4
    %s33 = sphi 0, %s35
    %s36 = sphi 0, %s33
    %s37 = sphi 0, %s36
    %s53 = sphi 0, %s37
    %s57 = sphi 0, %s57
    %s59 = sphi 0, %s57
    %s60 = sphi 0, %s59
    %s74 = sphi 0, %s60
    %s78 = sphi 0, %s78
    %s80 = sphi 0, %s78
    %s81 = sphi 0, %s80
    %s95 = sphi 0, %s81
    %s99 = sphi 0, %s99
    %s101 = sphi 0, %s99
    %s102 = sphi 0, %s101
    %s116 = sphi 0, %s102
    %s120 = sphi 0, %s120
    %s122 = sphi 0, %s120
    %s123 = sphi 0, %s122
    %s137 = sphi 0, %s123
    %s141 = sphi 0, %s141
    %s143 = sphi 0, %s141
    %s144 = sphi 0, %s143
    %s158 = sphi 0, %s144
    %s162 = sphi 0, %s162
    %s164 = sphi 0, %s162
    %s165 = sphi 0, %s164
    %s179 = sphi 0, %s165
    %s183 = sphi 0, %s183
    %s185 = sphi 0, %s183
    %s186 = sphi 0, %s185
    %s200 = sphi 0, %s186
    %s204 = sphi 0, %s204
    %s206 = sphi 0, %s204
    %s207 = sphi 0, %s206
    %s221 = sphi 0, %s207
    %s225 = sphi 0, %s225
    %s227 = sphi 0, %s225
    %s228 = sphi 0, %s227
    %s242 = sphi 0, %s228
    %s246 = sphi 0, %s246
    %s248 = sphi 0, %s246
    %s249 = sphi 0, %s248
    %s263 = sphi 0, %s249
    %s267 = sphi 0, %s267
    %s269 = sphi 0, %s267
    %s270 = sphi 0, %s269
    %s284 = sphi 0, %s270
    %s288 = sphi 0, %s288
    %s290 = sphi 0, %s288
    %s291 = sphi 0, %s290
    %s305 = sphi 0, %s291
    %s309 = sphi 0, %s309
    %s311 = sphi 0, %s309
    %s312 = sphi 0, %s311
    %s326 = sphi 0, %s312
    %s330 = sphi 0, %s330
    %s332 = sphi 0, %s330
    %s333 = sphi 0, %s332
    %s347 = sphi 0, %s333
    %s351 = sphi 0, %s351
    %s353 = sphi 0, %s351
    %s354 = sphi 0, %s353
    %s368 = sphi 0, %s354
    %s372 = sphi 0, %s372
    %s374 = sphi 0, %s372
    %s375 = sphi 0, %s374
    %s389 = sphi 0, %s375
    %s395 = sphi 0, %s397
    %s398 = sphi 0, %s395
    %s399 = sphi 0, %s398
    %s415 = sphi 0, %s399
  $region4: #{_lambda_.3} parent=0 // loop_header_branch
    %26 = sbr.rel (%p24) target = $region8
  $region5: #{_lambda_.3} parent=0 // loop_body
    %s28 = ssub.s32 %s23, 1
    %s29 = ssub.s32 %s23, 2
    %s30 = sadd.s32 %s23, 1
    %s31 = ssub.s32 %s23, %s30
    %p32 = scmp.eq.s32.totalorder %s31, 0
    %s34 = sadd.s32 %s33, 1
    %s35 = scalar_select %p32, %s33, %s34
    %p38 = pneg %p32
    %p39 = scmp.eq.s32.totalorder %s23, 1
    %p40 = por %p38, %p39
    %p41 = scmp.ne.s32.totalorder %s33, %s36
    %p42 = scmp.eq.s32.totalorder %s23, 0
    %p43 = por %p41, %p42
    %p44 = scmp.ne.s32.totalorder %s33, %s36
    %p45 = scmp.eq.s32.totalorder %s28, 1
    %p46 = por %p44, %p45
    %p47 = scmp.ne.s32.totalorder %s36, %s37
    %p48 = scmp.eq.s32.totalorder %s28, 0
    %p49 = por %p47, %p48
    %p50 = scmp.ne.s32.totalorder %s36, %s37
    %p51 = scmp.eq.s32.totalorder %s29, 1
    %p52 = por %p50, %p51
    %p54 = scmp.ne.s32.totalorder %s37, %s53
    %p55 = scmp.eq.s32.totalorder %s29, 0
    %p56 = por %p54, %p55
    %s58 = sadd.s32 %s57, 1
    %p61 = scmp.eq.s32.totalorder %s23, 1
    %p62 = scmp.ne.s32.totalorder %s57, %s59
    %p63 = scmp.eq.s32.totalorder %s23, 0
    %p64 = por %p62, %p63
    %p65 = scmp.ne.s32.totalorder %s57, %s59
    %p66 = scmp.eq.s32.totalorder %s28, 1
    %p67 = por %p65, %p66
    %p68 = scmp.ne.s32.totalorder %s59, %s60
    %p69 = scmp.eq.s32.totalorder %s28, 0
    %p70 = por %p68, %p69
    %p71 = scmp.ne.s32.totalorder %s59, %s60
    %p72 = scmp.eq.s32.totalorder %s29, 1
    %p73 = por %p71, %p72
    %p75 = scmp.ne.s32.totalorder %s60, %s74
    %p76 = scmp.eq.s32.totalorder %s29, 0
    %p77 = por %p75, %p76
    %s79 = sadd.s32 %s78, 1
    %p82 = scmp.eq.s32.totalorder %s23, 1
    %p83 = scmp.ne.s32.totalorder %s78, %s80
    %p84 = scmp.eq.s32.totalorder %s23, 0
    %p85 = por %p83, %p84
    %p86 = scmp.ne.s32.totalorder %s78, %s80
    %p87 = scmp.eq.s32.totalorder %s28, 1
    %p88 = por %p86, %p87
    %p89 = scmp.ne.s32.totalorder %s80, %s81
    %p90 = scmp.eq.s32.totalorder %s28, 0
    %p91 = por %p89, %p90
    %p92 = scmp.ne.s32.totalorder %s80, %s81
    %p93 = scmp.eq.s32.totalorder %s29, 1
    %p94 = por %p92, %p93
    %p96 = scmp.ne.s32.totalorder %s81, %s95
    %p97 = scmp.eq.s32.totalorder %s29, 0
    %p98 = por %p96, %p97
    %s100 = sadd.s32 %s99, 1
    %p103 = scmp.eq.s32.totalorder %s23, 1
    %p104 = scmp.ne.s32.totalorder %s99, %s101
    %p105 = scmp.eq.s32.totalorder %s23, 0
    %p106 = por %p104, %p105
    %p107 = scmp.ne.s32.totalorder %s99, %s101
    %p108 = scmp.eq.s32.totalorder %s28, 1
    %p109 = por %p107, %p108
    %p110 = scmp.ne.s32.totalorder %s101, %s102
    %p111 = scmp.eq.s32.totalorder %s28, 0
    %p112 = por %p110, %p111
    %p113 = scmp.ne.s32.totalorder %s101, %s102
    %p114 = scmp.eq.s32.totalorder %s29, 1
    %p115 = por %p113, %p114
    %p117 = scmp.ne.s32.totalorder %s102, %s116
    %p118 = scmp.eq.s32.totalorder %s29, 0
    %p119 = por %p117, %p118
    %s121 = sadd.s32 %s120, 1
    %p124 = scmp.eq.s32.totalorder %s23, 1
    %p125 = scmp.ne.s32.totalorder %s120, %s122
    %p126 = scmp.eq.s32.totalorder %s23, 0
    %p127 = por %p125, %p126
    %p128 = scmp.ne.s32.totalorder %s120, %s122
    %p129 = scmp.eq.s32.totalorder %s28, 1
    %p130 = por %p128, %p129
    %p131 = scmp.ne.s32.totalorder %s122, %s123
    %p132 = scmp.eq.s32.totalorder %s28, 0
    %p133 = por %p131, %p132
    %p134 = scmp.ne.s32.totalorder %s122, %s123
    %p135 = scmp.eq.s32.totalorder %s29, 1
    %p136 = por %p134, %p135
    %p138 = scmp.ne.s32.totalorder %s123, %s137
    %p139 = scmp.eq.s32.totalorder %s29, 0
    %p140 = por %p138, %p139
    %s142 = sadd.s32 %s141, 1
    %p145 = scmp.eq.s32.totalorder %s23, 1
    %p146 = scmp.ne.s32.totalorder %s141, %s143
    %p147 = scmp.eq.s32.totalorder %s23, 0
    %p148 = por %p146, %p147
    %p149 = scmp.ne.s32.totalorder %s141, %s143
    %p150 = scmp.eq.s32.totalorder %s28, 1
    %p151 = por %p149, %p150
    %p152 = scmp.ne.s32.totalorder %s143, %s144
    %p153 = scmp.eq.s32.totalorder %s28, 0
    %p154 = por %p152, %p153
    %p155 = scmp.ne.s32.totalorder %s143, %s144
    %p156 = scmp.eq.s32.totalorder %s29, 1
    %p157 = por %p155, %p156
    %p159 = scmp.ne.s32.totalorder %s144, %s158
    %p160 = scmp.eq.s32.totalorder %s29, 0
    %p161 = por %p159, %p160
    %s163 = sadd.s32 %s162, 1
    %p166 = scmp.eq.s32.totalorder %s23, 1
    %p167 = scmp.ne.s32.totalorder %s162, %s164
    %p168 = scmp.eq.s32.totalorder %s23, 0
    %p169 = por %p167, %p168
    %p170 = scmp.ne.s32.totalorder %s162, %s164
    %p171 = scmp.eq.s32.totalorder %s28, 1
    %p172 = por %p170, %p171
    %p173 = scmp.ne.s32.totalorder %s164, %s165
    %p174 = scmp.eq.s32.totalorder %s28, 0
    %p175 = por %p173, %p174
    %p176 = scmp.ne.s32.totalorder %s164, %s165
    %p177 = scmp.eq.s32.totalorder %s29, 1
    %p178 = por %p176, %p177
    %p180 = scmp.ne.s32.totalorder %s165, %s179
    %p181 = scmp.eq.s32.totalorder %s29, 0
    %p182 = por %p180, %p181
    %s184 = sadd.s32 %s183, 1
    %p187 = scmp.eq.s32.totalorder %s23, 1
    %p188 = scmp.ne.s32.totalorder %s183, %s185
    %p189 = scmp.eq.s32.totalorder %s23, 0
    %p190 = por %p188, %p189
    %p191 = scmp.ne.s32.totalorder %s183, %s185
    %p192 = scmp.eq.s32.totalorder %s28, 1
    %p193 = por %p191, %p192
    %p194 = scmp.ne.s32.totalorder %s185, %s186
    %p195 = scmp.eq.s32.totalorder %s28, 0
    %p196 = por %p194, %p195
    %p197 = scmp.ne.s32.totalorder %s185, %s186
    %p198 = scmp.eq.s32.totalorder %s29, 1
    %p199 = por %p197, %p198
    %p201 = scmp.ne.s32.totalorder %s186, %s200
    %p202 = scmp.eq.s32.totalorder %s29, 0
    %p203 = por %p201, %p202
    %s205 = sadd.s32 %s204, 1
    %p208 = scmp.eq.s32.totalorder %s23, 1
    %p209 = scmp.ne.s32.totalorder %s204, %s206
    %p210 = scmp.eq.s32.totalorder %s23, 0
    %p211 = por %p209, %p210
    %p212 = scmp.ne.s32.totalorder %s204, %s206
    %p213 = scmp.eq.s32.totalorder %s28, 1
    %p214 = por %p212, %p213
    %p215 = scmp.ne.s32.totalorder %s206, %s207
    %p216 = scmp.eq.s32.totalorder %s28, 0
    %p217 = por %p215, %p216
    %p218 = scmp.ne.s32.totalorder %s206, %s207
    %p219 = scmp.eq.s32.totalorder %s29, 1
    %p220 = por %p218, %p219
    %p222 = scmp.ne.s32.totalorder %s207, %s221
    %p223 = scmp.eq.s32.totalorder %s29, 0
    %p224 = por %p222, %p223
    %s226 = sadd.s32 %s225, 1
    %p229 = scmp.eq.s32.totalorder %s23, 1
    %p230 = scmp.ne.s32.totalorder %s225, %s227
    %p231 = scmp.eq.s32.totalorder %s23, 0
    %p232 = por %p230, %p231
    %p233 = scmp.ne.s32.totalorder %s225, %s227
    %p234 = scmp.eq.s32.totalorder %s28, 1
    %p235 = por %p233, %p234
    %p236 = scmp.ne.s32.totalorder %s227, %s228
    %p237 = scmp.eq.s32.totalorder %s28, 0
    %p238 = por %p236, %p237
    %p239 = scmp.ne.s32.totalorder %s227, %s228
    %p240 = scmp.eq.s32.totalorder %s29, 1
    %p241 = por %p239, %p240
    %p243 = scmp.ne.s32.totalorder %s228, %s242
    %p244 = scmp.eq.s32.totalorder %s29, 0
    %p245 = por %p243, %p244
    %s247 = sadd.s32 %s246, 1
    %p250 = scmp.eq.s32.totalorder %s23, 1
    %p251 = scmp.ne.s32.totalorder %s246, %s248
    %p252 = scmp.eq.s32.totalorder %s23, 0
    %p253 = por %p251, %p252
    %p254 = scmp.ne.s32.totalorder %s246, %s248
    %p255 = scmp.eq.s32.totalorder %s28, 1
    %p256 = por %p254, %p255
    %p257 = scmp.ne.s32.totalorder %s248, %s249
    %p258 = scmp.eq.s32.totalorder %s28, 0
    %p259 = por %p257, %p258
    %p260 = scmp.ne.s32.totalorder %s248, %s249
    %p261 = scmp.eq.s32.totalorder %s29, 1
    %p262 = por %p260, %p261
    %p264 = scmp.ne.s32.totalorder %s249, %s263
    %p265 = scmp.eq.s32.totalorder %s29, 0
    %p266 = por %p264, %p265
    %s268 = sadd.s32 %s267, 1
    %p271 = scmp.eq.s32.totalorder %s23, 1
    %p272 = scmp.ne.s32.totalorder %s267, %s269
    %p273 = scmp.eq.s32.totalorder %s23, 0
    %p274 = por %p272, %p273
    %p275 = scmp.ne.s32.totalorder %s267, %s269
    %p276 = scmp.eq.s32.totalorder %s28, 1
    %p277 = por %p275, %p276
    %p278 = scmp.ne.s32.totalorder %s269, %s270
    %p279 = scmp.eq.s32.totalorder %s28, 0
    %p280 = por %p278, %p279
    %p281 = scmp.ne.s32.totalorder %s269, %s270
    %p282 = scmp.eq.s32.totalorder %s29, 1
    %p283 = por %p281, %p282
    %p285 = scmp.ne.s32.totalorder %s270, %s284
    %p286 = scmp.eq.s32.totalorder %s29, 0
    %p287 = por %p285, %p286
    %s289 = sadd.s32 %s288, 1
    %p292 = scmp.eq.s32.totalorder %s23, 1
    %p293 = scmp.ne.s32.totalorder %s288, %s290
    %p294 = scmp.eq.s32.totalorder %s23, 0
    %p295 = por %p293, %p294
    %p296 = scmp.ne.s32.totalorder %s288, %s290
    %p297 = scmp.eq.s32.totalorder %s28, 1
    %p298 = por %p296, %p297
    %p299 = scmp.ne.s32.totalorder %s290, %s291
    %p300 = scmp.eq.s32.totalorder %s28, 0
    %p301 = por %p299, %p300
    %p302 = scmp.ne.s32.totalorder %s290, %s291
    %p303 = scmp.eq.s32.totalorder %s29, 1
    %p304 = por %p302, %p303
    %p306 = scmp.ne.s32.totalorder %s291, %s305
    %p307 = scmp.eq.s32.totalorder %s29, 0
    %p308 = por %p306, %p307
    %s310 = sadd.s32 %s309, 1
    %p313 = scmp.eq.s32.totalorder %s23, 1
    %p314 = scmp.ne.s32.totalorder %s309, %s311
    %p315 = scmp.eq.s32.totalorder %s23, 0
    %p316 = por %p314, %p315
    %p317 = scmp.ne.s32.totalorder %s309, %s311
    %p318 = scmp.eq.s32.totalorder %s28, 1
    %p319 = por %p317, %p318
    %p320 = scmp.ne.s32.totalorder %s311, %s312
    %p321 = scmp.eq.s32.totalorder %s28, 0
    %p322 = por %p320, %p321
    %p323 = scmp.ne.s32.totalorder %s311, %s312
    %p324 = scmp.eq.s32.totalorder %s29, 1
    %p325 = por %p323, %p324
    %p327 = scmp.ne.s32.totalorder %s312, %s326
    %p328 = scmp.eq.s32.totalorder %s29, 0
    %p329 = por %p327, %p328
    %s331 = sadd.s32 %s330, 1
    %p334 = scmp.eq.s32.totalorder %s23, 1
    %p335 = scmp.ne.s32.totalorder %s330, %s332
    %p336 = scmp.eq.s32.totalorder %s23, 0
    %p337 = por %p335, %p336
    %p338 = scmp.ne.s32.totalorder %s330, %s332
    %p339 = scmp.eq.s32.totalorder %s28, 1
    %p340 = por %p338, %p339
    %p341 = scmp.ne.s32.totalorder %s332, %s333
    %p342 = scmp.eq.s32.totalorder %s28, 0
    %p343 = por %p341, %p342
    %p344 = scmp.ne.s32.totalorder %s332, %s333
    %p345 = scmp.eq.s32.totalorder %s29, 1
    %p346 = por %p344, %p345
    %p348 = scmp.ne.s32.totalorder %s333, %s347
    %p349 = scmp.eq.s32.totalorder %s29, 0
    %p350 = por %p348, %p349
    %s352 = sadd.s32 %s351, 1
    %p355 = scmp.eq.s32.totalorder %s23, 1
    %p356 = scmp.ne.s32.totalorder %s351, %s353
    %p357 = scmp.eq.s32.totalorder %s23, 0
    %p358 = por %p356, %p357
    %p359 = scmp.ne.s32.totalorder %s351, %s353
    %p360 = scmp.eq.s32.totalorder %s28, 1
    %p361 = por %p359, %p360
    %p362 = scmp.ne.s32.totalorder %s353, %s354
    %p363 = scmp.eq.s32.totalorder %s28, 0
    %p364 = por %p362, %p363
    %p365 = scmp.ne.s32.totalorder %s353, %s354
    %p366 = scmp.eq.s32.totalorder %s29, 1
    %p367 = por %p365, %p366
    %p369 = scmp.ne.s32.totalorder %s354, %s368
    %p370 = scmp.eq.s32.totalorder %s29, 0
    %p371 = por %p369, %p370
    %s373 = sadd.s32 %s372, 1
    %p376 = scmp.eq.s32.totalorder %s23, 1
    %p377 = scmp.ne.s32.totalorder %s372, %s374
    %p378 = scmp.eq.s32.totalorder %s23, 0
    %p379 = por %p377, %p378
    %p380 = scmp.ne.s32.totalorder %s372, %s374
    %p381 = scmp.eq.s32.totalorder %s28, 1
    %p382 = por %p380, %p381
    %p383 = scmp.ne.s32.totalorder %s374, %s375
    %p384 = scmp.eq.s32.totalorder %s28, 0
    %p385 = por %p383, %p384
    %p386 = scmp.ne.s32.totalorder %s374, %s375
    %p387 = scmp.eq.s32.totalorder %s29, 1
    %p388 = por %p386, %p387
    %p390 = scmp.ne.s32.totalorder %s375, %s389
    %p391 = scmp.eq.s32.totalorder %s29, 0
    %p392 = por %p390, %p391
    %s393 = ssub.s32 %s23, %s30
    %p394 = scmp.eq.s32.totalorder %s393, 0
    %s396 = sadd.s32 %s395, 1
    %s397 = scalar_select %p394, %s395, %s396
    %p400 = pneg %p394
    %p401 = scmp.eq.s32.totalorder %s23, 1
    %p402 = por %p400, %p401
    %p403 = scmp.ne.s32.totalorder %s395, %s398
    %p404 = scmp.eq.s32.totalorder %s23, 0
    %p405 = por %p403, %p404
    %p406 = scmp.ne.s32.totalorder %s395, %s398
    %p407 = scmp.eq.s32.totalorder %s28, 1
    %p408 = por %p406, %p407
    %p409 = scmp.ne.s32.totalorder %s398, %s399
    %p410 = scmp.eq.s32.totalorder %s28, 0
    %p411 = por %p409, %p410
    %p412 = scmp.ne.s32.totalorder %s398, %s399
    %p413 = scmp.eq.s32.totalorder %s29, 1
    %p414 = por %p412, %p413
    %p416 = scmp.ne.s32.totalorder %s399, %s415
    %p417 = scmp.eq.s32.totalorder %s29, 0
    %p418 = por %p416, %p417
    %p419 = scmp.le.s32.totalorder 1, %s23
    %p420 = scmp.lt.s32.totalorder %s23, 3
    %p421 = pnand %p419, %p420
    %p422 = pneg %p421
    // Predicated region
    $region9: #{_lambda_.3} parent=5 // pred_check
      _
    $region10: #{_lambda_.3} parent=5 // pred_check_branch
      %424 = sbr.rel (%p421) target = $region12
    $region11: #{_lambda_.3} parent=5 // pred_region
      %s425 = ssub.s32 %s23, 1
      // Predicated region
      $region13: #{_lambda_.3} parent=11 // pred_check
        %p426 = pneg %p70
      $region14: #{_lambda_.3} parent=11 // pred_check_branch
        %428 = sbr.rel (%p426) target = $region16
      $region15: #{_lambda_.3} parent=11 // pred_region
        _
      $region16: #{_lambda_.3} parent=11 // pred_fallthru
        _
      // Predicated region
      $region17: #{_lambda_.3} parent=11 // pred_check
        %p429 = pneg %p91
      $region18: #{_lambda_.3} parent=11 // pred_check_branch
        %431 = sbr.rel (%p429) target = $region20
      $region19: #{_lambda_.3} parent=11 // pred_region
        _
      $region20: #{_lambda_.3} parent=11 // pred_fallthru
        _
      // Predicated region
      $region21: #{_lambda_.3} parent=11 // pred_check
        %p432 = pneg %p112
      $region22: #{_lambda_.3} parent=11 // pred_check_branch
        %434 = sbr.rel (%p432) target = $region24
      $region23: #{_lambda_.3} parent=11 // pred_region
        _
      $region24: #{_lambda_.3} parent=11 // pred_fallthru
        _
      // Predicated region
      $region25: #{_lambda_.3} parent=11 // pred_check
        %p435 = pneg %p133
      $region26: #{_lambda_.3} parent=11 // pred_check_branch
        %437 = sbr.rel (%p435) target = $region28
      $region27: #{_lambda_.3} parent=11 // pred_region
        _
      $region28: #{_lambda_.3} parent=11 // pred_fallthru
        _
      // Predicated region
      $region29: #{_lambda_.3} parent=11 // pred_check
        %p438 = pneg %p154
      $region30: #{_lambda_.3} parent=11 // pred_check_branch
        %440 = sbr.rel (%p438) target = $region32
      $region31: #{_lambda_.3} parent=11 // pred_region
        _
      $region32: #{_lambda_.3} parent=11 // pred_fallthru
        _
      // Predicated region
      $region33: #{_lambda_.3} parent=11 // pred_check
        %p441 = pneg %p175
      $region34: #{_lambda_.3} parent=11 // pred_check_branch
        %443 = sbr.rel (%p441) target = $region36
      $region35: #{_lambda_.3} parent=11 // pred_region
        _
      $region36: #{_lambda_.3} parent=11 // pred_fallthru
        _
      // Predicated region
      $region37: #{_lambda_.3} parent=11 // pred_check
        %p444 = pneg %p196
      $region38: #{_lambda_.3} parent=11 // pred_check_branch
        %446 = sbr.rel (%p444) target = $region40
      $region39: #{_lambda_.3} parent=11 // pred_region
        _
      $region40: #{_lambda_.3} parent=11 // pred_fallthru
        _
      // Predicated region
      $region41: #{_lambda_.3} parent=11 // pred_check
        %p447 = pneg %p217
      $region42: #{_lambda_.3} parent=11 // pred_check_branch
        %449 = sbr.rel (%p447) target = $region44
      $region43: #{_lambda_.3} parent=11 // pred_region
        _
      $region44: #{_lambda_.3} parent=11 // pred_fallthru
        _
      // Predicated region
      $region45: #{_lambda_.3} parent=11 // pred_check
        %p450 = pneg %p238
      $region46: #{_lambda_.3} parent=11 // pred_check_branch
        %452 = sbr.rel (%p450) target = $region48
      $region47: #{_lambda_.3} parent=11 // pred_region
        _
      $region48: #{_lambda_.3} parent=11 // pred_fallthru
        _
      // Predicated region
      $region49: #{_lambda_.3} parent=11 // pred_check
        %p453 = pneg %p259
      $region50: #{_lambda_.3} parent=11 // pred_check_branch
        %455 = sbr.rel (%p453) target = $region52
      $region51: #{_lambda_.3} parent=11 // pred_region
        _
      $region52: #{_lambda_.3} parent=11 // pred_fallthru
        _
      // Predicated region
      $region53: #{_lambda_.3} parent=11 // pred_check
        %p456 = pneg %p280
      $region54: #{_lambda_.3} parent=11 // pred_check_branch
        %458 = sbr.rel (%p456) target = $region56
      $region55: #{_lambda_.3} parent=11 // pred_region
        _
      $region56: #{_lambda_.3} parent=11 // pred_fallthru
        _
      // Predicated region
      $region57: #{_lambda_.3} parent=11 // pred_check
        %p459 = pneg %p301
      $region58: #{_lambda_.3} parent=11 // pred_check_branch
        %461 = sbr.rel (%p459) target = $region60
      $region59: #{_lambda_.3} parent=11 // pred_region
        _
      $region60: #{_lambda_.3} parent=11 // pred_fallthru
        _
      // Predicated region
      $region61: #{_lambda_.3} parent=11 // pred_check
        %p462 = pneg %p322
      $region62: #{_lambda_.3} parent=11 // pred_check_branch
        %464 = sbr.rel (%p462) target = $region64
      $region63: #{_lambda_.3} parent=11 // pred_region
        _
      $region64: #{_lambda_.3} parent=11 // pred_fallthru
        _
      // Predicated region
      $region65: #{_lambda_.3} parent=11 // pred_check
        %p465 = pneg %p343
      $region66: #{_lambda_.3} parent=11 // pred_check_branch
        %467 = sbr.rel (%p465) target = $region68
      $region67: #{_lambda_.3} parent=11 // pred_region
        _
      $region68: #{_lambda_.3} parent=11 // pred_fallthru
        _
      // Predicated region
      $region69: #{_lambda_.3} parent=11 // pred_check
        %p468 = pneg %p364
      $region70: #{_lambda_.3} parent=11 // pred_check_branch
        %470 = sbr.rel (%p468) target = $region72
      $region71: #{_lambda_.3} parent=11 // pred_region
        _
      $region72: #{_lambda_.3} parent=11 // pred_fallthru
        _
      // Predicated region
      $region73: #{_lambda_.3} parent=11 // pred_check
        %p471 = pneg %p385
      $region74: #{_lambda_.3} parent=11 // pred_check_branch
        %473 = sbr.rel (%p471) target = $region76
      $region75: #{_lambda_.3} parent=11 // pred_region
        _
      $region76: #{_lambda_.3} parent=11 // pred_fallthru
        _
    $region12: #{_lambda_.3} parent=5 // pred_fallthru
      _
    %p474 = scmp.lt.s32.totalorder %s23, 2
    // Predicated region
    $region77: #{_lambda_.3} parent=5 // pred_check
      %p475 = pneg %p474
    $region78: #{_lambda_.3} parent=5 // pred_check_branch
      %477 = sbr.rel (%p475) target = $region80
    $region79: #{_lambda_.3} parent=5 // pred_region
      // Predicated region
      $region81: #{_lambda_.3} parent=79 // pred_check
        %p478 = pneg %p43
      $region82: #{_lambda_.3} parent=79 // pred_check_branch
        %480 = sbr.rel (%p478) target = $region84
      $region83: #{_lambda_.3} parent=79 // pred_region
        %p481 = scmp.lt.s32.totalorder %s23, 1
        %s482 = scalar_select %p481, %s23, 1
        %s483 = smul.addr %s482, 8
        %s484 = smul.addr %s483, 8
        %s485 = scalar_lea.vmem %s0, %s484
      $region84: #{_lambda_.3} parent=79 // pred_fallthru
        _
    $region80: #{_lambda_.3} parent=5 // pred_fallthru
      _
    %p486 = scmp.le.s32.totalorder 1, %s23
    %p487 = scmp.lt.s32.totalorder %s23, 3
    %p488 = pnand %p486, %p487
    %p489 = pneg %p488
    // Predicated region
    $region85: #{_lambda_.3} parent=5 // pred_check
      _
    $region86: #{_lambda_.3} parent=5 // pred_check_branch
      %491 = sbr.rel (%p488) target = $region88
    $region87: #{_lambda_.3} parent=5 // pred_region
      %s492 = ssub.s32 %s23, 1
      %p493 = scmp.lt.s32.totalorder %s28, 1
      %s494 = scalar_select %p493, %s28, 1
      %s495 = smul.addr %s494, 8
      %s496 = smul.addr %s495, 8
      %s497 = scalar_lea.vmem %s0, %s496
      %p498 = pneg %p49
      %p499 = pneg %p46
      %p500 = pneg %p70
      %p501 = pneg %p67
      %p502 = pneg %p91
      %p503 = pneg %p88
      %p504 = pneg %p112
      %p505 = pneg %p109
      %p506 = pneg %p133
      %p507 = pneg %p130
      %p508 = pneg %p154
      %p509 = pneg %p151
      %p510 = pneg %p175
      %p511 = pneg %p172
      %p512 = pneg %p196
      %p513 = pneg %p193
      %p514 = pneg %p217
      %p515 = pneg %p214
      %p516 = pneg %p238
      %p517 = pneg %p235
      %p518 = pneg %p259
      %p519 = pneg %p256
      %p520 = pneg %p280
      %p521 = pneg %p277
      %p522 = pneg %p301
      %p523 = pneg %p298
      %p524 = pneg %p322
      %p525 = pneg %p319
      %p526 = pneg %p343
      %p527 = pneg %p340
      %p528 = pneg %p364
      %p529 = pneg %p361
      %p530 = pneg %p385
      %p531 = pneg %p382
      %p532 = pneg %p411
      %p533 = pneg %p408
      %p534 = scmp.lt.s32.totalorder %s28, 1
      %s535 = scalar_select %p534, %s28, 1
      %s536 = smul.addr %s535, 8
      %s537 = smul.addr %s536, 8
      %s538 = scalar_lea.vmem %s17, %s537
      %p539 = scmp.lt.s32.totalorder %s28, 1
      %s540 = scalar_select %p539, %s28, 1
      %s541 = smul.addr %s540, 8
      %s542 = smul.addr %s541, 8
      %s543 = scalar_lea.vmem %s0, %s542
      %p544 = scmp.lt.s32.totalorder %s28, 1
      %s545 = scalar_select %p544, %s28, 1
      %s546 = smul.addr %s545, 8
      %s547 = smul.addr %s546, 8
      %s548 = scalar_lea.vmem %s17, %s547
      %v550 = vld [vmem:[%s543] sm:$0xff]
      %v551 = vld [vmem:[%s543 + $0x8] sm:$0xff]
      %v552 = vld [vmem:[%s543 + $0x10] sm:$0xff]
      %v553 = vld [vmem:[%s543 + $0x18] sm:$0xff]
      %v554 = vld [vmem:[%s543 + $0x20] sm:$0xff]
      %v555 = vld [vmem:[%s543 + $0x28] sm:$0xff]
      %v556 = vld [vmem:[%s543 + $0x30] sm:$0xff]
      %v557 = vld [vmem:[%s543 + $0x38] sm:$0xff]
      %v558 = vld [vmem:[%s1] sm:$0x3]
      %v559 = vld [vmem:[%s2] sm:$0x3]
      %v560 = vadd.f32 %v550, %v551
      %561 = vadd.xlane.f32.xlu0 %v560
      %v562 = vpop.xlane.xlu0 %561
      %v563 = vadd.f32 %v552, %v553
      %564 = vadd.xlane.f32.xlu0 %v563
      %v565 = vpop.xlane.xlu0 %564
      %v566 = vadd.f32 %v554, %v555
      %567 = vadd.xlane.f32.xlu0 %v566
      %v568 = vpop.xlane.xlu0 %567
      %v569 = vadd.f32 %v556, %v557
      %570 = vadd.xlane.f32.xlu0 %v569
      %v571 = vpop.xlane.xlu0 %570
      %v572 = vrcp.pop 256.0
      %v573 = vmul.f32 %v562, %v572
      %v574 = vmul.f32 %v565, %v572
      %v575 = vmul.f32 %v568, %v572
      %v576 = vmul.f32 %v571, %v572
      %v577 = vsub.f32 %v550, %v573
      %v578 = vsub.f32 %v551, %v573
      %v579 = vsub.f32 %v552, %v574
      %v580 = vsub.f32 %v553, %v574
      %v581 = vsub.f32 %v554, %v575
      %v582 = vsub.f32 %v555, %v575
      %v583 = vsub.f32 %v556, %v576
      %v584 = vsub.f32 %v557, %v576
      %v585 = vmul.f32 %v577, %v577
      %v586 = vmul.f32 %v578, %v578
      %v587 = vmul.f32 %v579, %v579
      %v588 = vmul.f32 %v580, %v580
      %v589 = vmul.f32 %v581, %v581
      %v590 = vmul.f32 %v582, %v582
      %v591 = vmul.f32 %v583, %v583
      %v592 = vmul.f32 %v584, %v584
      %v593 = vadd.f32 %v585, %v586
      %594 = vadd.xlane.f32.xlu0 %v593
      %v595 = vpop.xlane.xlu0 %594
      %v596 = vadd.f32 %v587, %v588
      %597 = vadd.xlane.f32.xlu0 %v596
      %v598 = vpop.xlane.xlu0 %597
      %v599 = vadd.f32 %v589, %v590
      %600 = vadd.xlane.f32.xlu0 %v599
      %v601 = vpop.xlane.xlu0 %600
      %v602 = vadd.f32 %v591, %v592
      %603 = vadd.xlane.f32.xlu0 %v602
      %v604 = vpop.xlane.xlu0 %603
      %v605 = vmul.f32 %v595, %v572
      %v606 = vmul.f32 %v598, %v572
      %v607 = vmul.f32 %v601, %v572
      %v608 = vmul.f32 %v604, %v572
      %v609 = vadd.f32 %v605, 1e-05
      %v610 = vadd.f32 %v606, 1e-05
      %v611 = vadd.f32 %v607, 1e-05
      %v612 = vadd.f32 %v608, 1e-05
      %v613 = vrsqrt.pop %v609
      %v614 = vrsqrt.pop %v610
      %v615 = vrsqrt.pop %v611
      %v616 = vrsqrt.pop %v612
      %v617 = vmul.f32 %v577, %v613
      %v618 = vmul.f32 %v578, %v613
      %v619 = vmul.f32 %v579, %v614
      %v620 = vmul.f32 %v580, %v614
      %v621 = vmul.f32 %v581, %v615
      %v622 = vmul.f32 %v582, %v615
      %v623 = vmul.f32 %v583, %v616
      %v624 = vmul.f32 %v584, %v616
      %v626 = vlaneseq
      %v627 = vshrl.u32 %v626, 7
      %v628 = vsub.s32 0, %v627
      %v629 = vrot.slane %v558, %v628
      %v630 = vlaneseq
      %v631 = vshrl.u32 %v630, 7
      %v632 = vsub.s32 1, %v631
      %v633 = vrot.slane %v558, %v632
      %v636 = vmul.f32 %v617, %v629
      %v637 = vmul.f32 %v618, %v633
      %v638 = vmul.f32 %v619, %v629
      %v639 = vmul.f32 %v620, %v633
      %v640 = vmul.f32 %v621, %v629
      %v641 = vmul.f32 %v622, %v633
      %v642 = vmul.f32 %v623, %v629
      %v643 = vmul.f32 %v624, %v633
      %v645 = vlaneseq
      %v646 = vshrl.u32 %v645, 7
      %v647 = vsub.s32 0, %v646
      %v648 = vrot.slane %v559, %v647
      %v649 = vlaneseq
      %v650 = vshrl.u32 %v649, 7
      %v651 = vsub.s32 1, %v650
      %v652 = vrot.slane %v559, %v651
      %v655 = vadd.f32 %v636, %v648
      %v656 = vadd.f32 %v637, %v652
      %v657 = vadd.f32 %v638, %v648
      %v658 = vadd.f32 %v639, %v652
      %v659 = vadd.f32 %v640, %v648
      %v660 = vadd.f32 %v641, %v652
      %v661 = vadd.f32 %v642, %v648
      %v662 = vadd.f32 %v643, %v652
      %v663 = vpack.c.bf16 %v657, %v655
      %v664 = vpack.c.bf16 %v658, %v656
      %v665 = vpack.c.bf16 %v661, %v659
      %v666 = vpack.c.bf16 %v662, %v660
      %v667 = vld [vmem:[%s3] sm:$0xff]
      %v668 = vld [vmem:[%s3 + $0x8] sm:$0xff]
      %v669 = vld [vmem:[%s3 + $0x10] sm:$0xff]
      %v670 = vld [vmem:[%s3 + $0x18] sm:$0xff]
      %v671 = vld [vmem:[%s3 + $0x20] sm:$0xff]
      %v672 = vld [vmem:[%s3 + $0x28] sm:$0xff]
      %v673 = vld [vmem:[%s3 + $0x30] sm:$0xff]
      %v674 = vld [vmem:[%s3 + $0x38] sm:$0xff]
      %v675 = vld [vmem:[%s3 + $0x40] sm:$0xff]
      %v676 = vld [vmem:[%s3 + $0x48] sm:$0xff]
      %v677 = vld [vmem:[%s3 + $0x50] sm:$0xff]
      %v678 = vld [vmem:[%s3 + $0x58] sm:$0xff]
      %v679 = vld [vmem:[%s3 + $0x60] sm:$0xff]
      %v680 = vld [vmem:[%s3 + $0x68] sm:$0xff]
      %v681 = vld [vmem:[%s3 + $0x70] sm:$0xff]
      %v682 = vld [vmem:[%s3 + $0x78] sm:$0xff]
      %v683 = vld [vmem:[%s3 + $0x80] sm:$0xff]
      %v684 = vld [vmem:[%s3 + $0x88] sm:$0xff]
      %v685 = vld [vmem:[%s3 + $0x90] sm:$0xff]
      %v686 = vld [vmem:[%s3 + $0x98] sm:$0xff]
      %v687 = vld [vmem:[%s3 + $0xa0] sm:$0xff]
      %v688 = vld [vmem:[%s3 + $0xa8] sm:$0xff]
      %v689 = vld [vmem:[%s3 + $0xb0] sm:$0xff]
      %v690 = vld [vmem:[%s3 + $0xb8] sm:$0xff]
      %v691 = vld [vmem:[%s3 + $0xc0] sm:$0xff]
      %v692 = vld [vmem:[%s3 + $0xc8] sm:$0xff]
      %v693 = vld [vmem:[%s3 + $0xd0] sm:$0xff]
      %v694 = vld [vmem:[%s3 + $0xd8] sm:$0xff]
      %v695 = vld [vmem:[%s3 + $0xe0] sm:$0xff]
      %v696 = vld [vmem:[%s3 + $0xe8] sm:$0xff]
      %v697 = vld [vmem:[%s3 + $0xf0] sm:$0xff]
      %v698 = vld [vmem:[%s3 + $0xf8] sm:$0xff]
      %v699 = vld [vmem:[%s6] sm:$0x3]
      %v701 = vlaneseq
      %v702 = vshrl.u32 %v701, 7
      %v703 = vsub.s32 0, %v702
      %v704 = vrot.slane %v699, %v703
      %v705 = vlaneseq
      %v706 = vshrl.u32 %v705, 7
      %v707 = vsub.s32 1, %v706
      %v708 = vrot.slane %v699, %v707
      %v743 = vunpack.c.l.b16 %v667
      %v744 = vunpack.c.h.b16 %v667
      %v745 = vunpack.c.l.b16 %v668
      %v746 = vunpack.c.h.b16 %v668
      %v747 = vunpack.c.l.b16 %v669
      %v748 = vunpack.c.h.b16 %v669
      %v749 = vunpack.c.l.b16 %v670
      %v750 = vunpack.c.h.b16 %v670
      %v751 = vunpack.c.l.b16 %v671
      %v752 = vunpack.c.h.b16 %v671
      %v753 = vunpack.c.l.b16 %v672
      %v754 = vunpack.c.h.b16 %v672
      %v755 = vunpack.c.l.b16 %v673
      %v756 = vunpack.c.h.b16 %v673
      %v757 = vunpack.c.l.b16 %v674
      %v758 = vunpack.c.h.b16 %v674
      %v759 = vunpack.c.l.b16 %v675
      %v760 = vunpack.c.h.b16 %v675
      %v761 = vunpack.c.l.b16 %v676
      %v762 = vunpack.c.h.b16 %v676
      %v763 = vunpack.c.l.b16 %v677
      %v764 = vunpack.c.h.b16 %v677
      %v765 = vunpack.c.l.b16 %v678
      %v766 = vunpack.c.h.b16 %v678
      %v767 = vunpack.c.l.b16 %v679
      %v768 = vunpack.c.h.b16 %v679
      %v769 = vunpack.c.l.b16 %v680
      %v770 = vunpack.c.h.b16 %v680
      %v771 = vunpack.c.l.b16 %v681
      %v772 = vunpack.c.h.b16 %v681
      %v773 = vunpack.c.l.b16 %v682
      %v774 = vunpack.c.h.b16 %v682
      %v775 = vunpack.c.l.b16 %v683
      %v776 = vunpack.c.h.b16 %v683
      %v777 = vunpack.c.l.b16 %v684
      %v778 = vunpack.c.h.b16 %v684
      %v779 = vunpack.c.l.b16 %v685
      %v780 = vunpack.c.h.b16 %v685
      %v781 = vunpack.c.l.b16 %v686
      %v782 = vunpack.c.h.b16 %v686
      %v783 = vunpack.c.l.b16 %v687
      %v784 = vunpack.c.h.b16 %v687
      %v785 = vunpack.c.l.b16 %v688
      %v786 = vunpack.c.h.b16 %v688
      %v787 = vunpack.c.l.b16 %v689
      %v788 = vunpack.c.h.b16 %v689
      %v789 = vunpack.c.l.b16 %v690
      %v790 = vunpack.c.h.b16 %v690
      %v791 = vunpack.c.l.b16 %v691
      %v792 = vunpack.c.h.b16 %v691
      %v793 = vunpack.c.l.b16 %v692
      %v794 = vunpack.c.h.b16 %v692
      %v795 = vunpack.c.l.b16 %v693
      %v796 = vunpack.c.h.b16 %v693
      %v797 = vunpack.c.l.b16 %v694
      %v798 = vunpack.c.h.b16 %v694
      %v799 = vunpack.c.l.b16 %v695
      %v800 = vunpack.c.h.b16 %v695
      %v801 = vunpack.c.l.b16 %v696
      %v802 = vunpack.c.h.b16 %v696
      %v803 = vunpack.c.l.b16 %v697
      %v804 = vunpack.c.h.b16 %v697
      %v805 = vunpack.c.l.b16 %v698
      %v806 = vunpack.c.h.b16 %v698
      %v807 = vpack.c.b16 %v745, %v743
      %v808 = vpack.c.b16 %v746, %v744
      %v809 = vpack.c.b16 %v749, %v747
      %v810 = vpack.c.b16 %v750, %v748
      %v811 = vpack.c.b16 %v753, %v751
      %v812 = vpack.c.b16 %v754, %v752
      %v813 = vpack.c.b16 %v757, %v755
      %v814 = vpack.c.b16 %v758, %v756
      %v815 = vpack.c.b16 %v761, %v759
      %v816 = vpack.c.b16 %v762, %v760
      %v817 = vpack.c.b16 %v765, %v763
      %v818 = vpack.c.b16 %v766, %v764
      %v819 = vpack.c.b16 %v769, %v767
      %v820 = vpack.c.b16 %v770, %v768
      %v821 = vpack.c.b16 %v773, %v771
      %v822 = vpack.c.b16 %v774, %v772
      %v823 = vpack.c.b16 %v777, %v775
      %v824 = vpack.c.b16 %v778, %v776
      %v825 = vpack.c.b16 %v781, %v779
      %v826 = vpack.c.b16 %v782, %v780
      %v827 = vpack.c.b16 %v785, %v783
      %v828 = vpack.c.b16 %v786, %v784
      %v829 = vpack.c.b16 %v789, %v787
      %v830 = vpack.c.b16 %v790, %v788
      %v831 = vpack.c.b16 %v793, %v791
      %v832 = vpack.c.b16 %v794, %v792
      %v833 = vpack.c.b16 %v797, %v795
      %v834 = vpack.c.b16 %v798, %v796
      %v835 = vpack.c.b16 %v801, %v799
      %v836 = vpack.c.b16 %v802, %v800
      %v837 = vpack.c.b16 %v805, %v803
      %v838 = vpack.c.b16 %v806, %v804
      %871 = vmatprep.subr.bf16.mxu0 %v808
      %872 = vmatpush1.bf16.msra.mxu0 %v807
      %873 = vmatprep.subr.bf16.mxu0 %v810
      %874 = vmatpush1.bf16.msra.mxu0 %v809
      %875 = vmatprep.subr.bf16.mxu0 %v812
      %876 = vmatpush1.bf16.msra.mxu0 %v811
      %877 = vmatprep.subr.bf16.mxu0 %v814
      %878 = vmatpush1.bf16.msra.mxu0 %v813
      %879 = vmatprep.subr.bf16.mxu0 %v816
      %880 = vmatpush1.bf16.msra.mxu0 %v815
      %881 = vmatprep.subr.bf16.mxu0 %v818
      %882 = vmatpush1.bf16.msra.mxu0 %v817
      %883 = vmatprep.subr.bf16.mxu0 %v820
      %884 = vmatpush1.bf16.msra.mxu0 %v819
      %885 = vmatprep.subr.bf16.mxu0 %v822
      %886 = vmatpush1.bf16.msra.mxu0 %v821
      %887 = vmatprep.subr.bf16.mxu0 %v824
      %888 = vmatpush1.bf16.msra.mxu0 %v823
      %889 = vmatprep.subr.bf16.mxu0 %v826
      %890 = vmatpush1.bf16.msra.mxu0 %v825
      %891 = vmatprep.subr.bf16.mxu0 %v828
      %892 = vmatpush1.bf16.msra.mxu0 %v827
      %893 = vmatprep.subr.bf16.mxu0 %v830
      %894 = vmatpush1.bf16.msra.mxu0 %v829
      %895 = vmatprep.subr.bf16.mxu0 %v832
      %896 = vmatpush1.bf16.msra.mxu0 %v831
      %897 = vmatprep.subr.bf16.mxu0 %v834
      %898 = vmatpush1.bf16.msra.mxu0 %v833
      %899 = vmatprep.subr.bf16.mxu0 %v836
      %900 = vmatpush1.bf16.msra.mxu0 %v835
      %901 = vmatprep.subr.bf16.mxu0 %v838
      %902 = vmatpush1.bf16.msra.mxu0 %v837
      %903 = vmatprep.mubr.bf16.mxu0 %v664
      %904 = vmatmul.mubr.bf16.gmra.mrb[0].mxu0 %v663
      %v905 = vpop.f32.mrb[0].mxu0
      %v906 = vadd.f32 %v704, %v905
      %v907 = vpop.f32.mrb[0].mxu0
      %v908 = vadd.f32 %v708, %v907
      %v909 = vpop.f32.mrb[0].mxu0
      %v910 = vadd.f32 %v704, %v909
      %v911 = vpop.f32.mrb[0].mxu0
      %v912 = vadd.f32 %v708, %v911
      %913 = vmatprep.mubr.bf16.mxu0 %v666
      %914 = vmatmul.mubr.bf16.gmra.mrb[0].mxu0 %v665
      %v915 = vpop.f32.mrb[0].mxu0
      %v916 = vadd.f32 %v704, %v915
      %v917 = vpop.f32.mrb[0].mxu0
      %v918 = vadd.f32 %v708, %v917
      %v919 = vpop.f32.mrb[0].mxu0
      %v920 = vadd.f32 %v704, %v919
      %v921 = vpop.f32.mrb[0].mxu0
      %v922 = vadd.f32 %v708, %v921
      %923 = vdwg.mxu0
      %v924 = vld [vmem:[%s4] sm:$0xff]
      %v925 = vld [vmem:[%s4 + $0x8] sm:$0xff]
      %v926 = vld [vmem:[%s4 + $0x10] sm:$0xff]
      %v927 = vld [vmem:[%s4 + $0x18] sm:$0xff]
      %v928 = vld [vmem:[%s4 + $0x20] sm:$0xff]
      %v929 = vld [vmem:[%s4 + $0x28] sm:$0xff]
      %v930 = vld [vmem:[%s4 + $0x30] sm:$0xff]
      %v931 = vld [vmem:[%s4 + $0x38] sm:$0xff]
      %v932 = vld [vmem:[%s4 + $0x40] sm:$0xff]
      %v933 = vld [vmem:[%s4 + $0x48] sm:$0xff]
      %v934 = vld [vmem:[%s4 + $0x50] sm:$0xff]
      %v935 = vld [vmem:[%s4 + $0x58] sm:$0xff]
      %v936 = vld [vmem:[%s4 + $0x60] sm:$0xff]
      %v937 = vld [vmem:[%s4 + $0x68] sm:$0xff]
      %v938 = vld [vmem:[%s4 + $0x70] sm:$0xff]
      %v939 = vld [vmem:[%s4 + $0x78] sm:$0xff]
      %v940 = vld [vmem:[%s4 + $0x80] sm:$0xff]
      %v941 = vld [vmem:[%s4 + $0x88] sm:$0xff]
      %v942 = vld [vmem:[%s4 + $0x90] sm:$0xff]
      %v943 = vld [vmem:[%s4 + $0x98] sm:$0xff]
      %v944 = vld [vmem:[%s4 + $0xa0] sm:$0xff]
      %v945 = vld [vmem:[%s4 + $0xa8] sm:$0xff]
      %v946 = vld [vmem:[%s4 + $0xb0] sm:$0xff]
      %v947 = vld [vmem:[%s4 + $0xb8] sm:$0xff]
      %v948 = vld [vmem:[%s4 + $0xc0] sm:$0xff]
      %v949 = vld [vmem:[%s4 + $0xc8] sm:$0xff]
      %v950 = vld [vmem:[%s4 + $0xd0] sm:$0xff]
      %v951 = vld [vmem:[%s4 + $0xd8] sm:$0xff]
      %v952 = vld [vmem:[%s4 + $0xe0] sm:$0xff]
      %v953 = vld [vmem:[%s4 + $0xe8] sm:$0xff]
      %v954 = vld [vmem:[%s4 + $0xf0] sm:$0xff]
      %v955 = vld [vmem:[%s4 + $0xf8] sm:$0xff]
      %v956 = vld [vmem:[%s7] sm:$0x3]
      %v958 = vlaneseq
      %v959 = vshrl.u32 %v958, 7
      %v960 = vsub.s32 0, %v959
      %v961 = vrot.slane %v956, %v960
      %v962 = vlaneseq
      %v963 = vshrl.u32 %v962, 7
      %v964 = vsub.s32 1, %v963
      %v965 = vrot.slane %v956, %v964
      %v1000 = vunpack.c.l.b16 %v924
      %v1001 = vunpack.c.h.b16 %v924
      %v1002 = vunpack.c.l.b16 %v925
      %v1003 = vunpack.c.h.b16 %v925
      %v1004 = vunpack.c.l.b16 %v926
      %v1005 = vunpack.c.h.b16 %v926
      %v1006 = vunpack.c.l.b16 %v927
      %v1007 = vunpack.c.h.b16 %v927
      %v1008 = vunpack.c.l.b16 %v928
      %v1009 = vunpack.c.h.b16 %v928
      %v1010 = vunpack.c.l.b16 %v929
      %v1011 = vunpack.c.h.b16 %v929
      %v1012 = vunpack.c.l.b16 %v930
      %v1013 = vunpack.c.h.b16 %v930
      %v1014 = vunpack.c.l.b16 %v931
      %v1015 = vunpack.c.h.b16 %v931
      %v1016 = vunpack.c.l.b16 %v932
      %v1017 = vunpack.c.h.b16 %v932
      %v1018 = vunpack.c.l.b16 %v933
      %v1019 = vunpack.c.h.b16 %v933
      %v1020 = vunpack.c.l.b16 %v934
      %v1021 = vunpack.c.h.b16 %v934
      %v1022 = vunpack.c.l.b16 %v935
      %v1023 = vunpack.c.h.b16 %v935
      %v1024 = vunpack.c.l.b16 %v936
      %v1025 = vunpack.c.h.b16 %v936
      %v1026 = vunpack.c.l.b16 %v937
      %v1027 = vunpack.c.h.b16 %v937
      %v1028 = vunpack.c.l.b16 %v938
      %v1029 = vunpack.c.h.b16 %v938
      %v1030 = vunpack.c.l.b16 %v939
      %v1031 = vunpack.c.h.b16 %v939
      %v1032 = vunpack.c.l.b16 %v940
      %v1033 = vunpack.c.h.b16 %v940
      %v1034 = vunpack.c.l.b16 %v941
      %v1035 = vunpack.c.h.b16 %v941
      %v1036 = vunpack.c.l.b16 %v942
      %v1037 = vunpack.c.h.b16 %v942
      %v1038 = vunpack.c.l.b16 %v943
      %v1039 = vunpack.c.h.b16 %v943
      %v1040 = vunpack.c.l.b16 %v944
      %v1041 = vunpack.c.h.b16 %v944
      %v1042 = vunpack.c.l.b16 %v945
      %v1043 = vunpack.c.h.b16 %v945
      %v1044 = vunpack.c.l.b16 %v946
      %v1045 = vunpack.c.h.b16 %v946
      %v1046 = vunpack.c.l.b16 %v947
      %v1047 = vunpack.c.h.b16 %v947
      %v1048 = vunpack.c.l.b16 %v948
      %v1049 = vunpack.c.h.b16 %v948
      %v1050 = vunpack.c.l.b16 %v949
      %v1051 = vunpack.c.h.b16 %v949
      %v1052 = vunpack.c.l.b16 %v950
      %v1053 = vunpack.c.h.b16 %v950
      %v1054 = vunpack.c.l.b16 %v951
      %v1055 = vunpack.c.h.b16 %v951
      %v1056 = vunpack.c.l.b16 %v952
      %v1057 = vunpack.c.h.b16 %v952
      %v1058 = vunpack.c.l.b16 %v953
      %v1059 = vunpack.c.h.b16 %v953
      %v1060 = vunpack.c.l.b16 %v954
      %v1061 = vunpack.c.h.b16 %v954
      %v1062 = vunpack.c.l.b16 %v955
      %v1063 = vunpack.c.h.b16 %v955
      %v1064 = vpack.c.b16 %v1002, %v1000
      %v1065 = vpack.c.b16 %v1003, %v1001
      %v1066 = vpack.c.b16 %v1006, %v1004
      %v1067 = vpack.c.b16 %v1007, %v1005
      %v1068 = vpack.c.b16 %v1010, %v1008
      %v1069 = vpack.c.b16 %v1011, %v1009
      %v1070 = vpack.c.b16 %v1014, %v1012
      %v1071 = vpack.c.b16 %v1015, %v1013
      %v1072 = vpack.c.b16 %v1018, %v1016
      %v1073 = vpack.c.b16 %v1019, %v1017
      %v1074 = vpack.c.b16 %v1022, %v1020
      %v1075 = vpack.c.b16 %v1023, %v1021
      %v1076 = vpack.c.b16 %v1026, %v1024
      %v1077 = vpack.c.b16 %v1027, %v1025
      %v1078 = vpack.c.b16 %v1030, %v1028
      %v1079 = vpack.c.b16 %v1031, %v1029
      %v1080 = vpack.c.b16 %v1034, %v1032
      %v1081 = vpack.c.b16 %v1035, %v1033
      %v1082 = vpack.c.b16 %v1038, %v1036
      %v1083 = vpack.c.b16 %v1039, %v1037
      %v1084 = vpack.c.b16 %v1042, %v1040
      %v1085 = vpack.c.b16 %v1043, %v1041
      %v1086 = vpack.c.b16 %v1046, %v1044
      %v1087 = vpack.c.b16 %v1047, %v1045
      %v1088 = vpack.c.b16 %v1050, %v1048
      %v1089 = vpack.c.b16 %v1051, %v1049
      %v1090 = vpack.c.b16 %v1054, %v1052
      %v1091 = vpack.c.b16 %v1055, %v1053
      %v1092 = vpack.c.b16 %v1058, %v1056
      %v1093 = vpack.c.b16 %v1059, %v1057
      %v1094 = vpack.c.b16 %v1062, %v1060
      %v1095 = vpack.c.b16 %v1063, %v1061
      %1128 = vmatprep.subr.bf16.mxu0 %v1065
      %1129 = vmatpush1.bf16.msra.mxu0 %v1064
      %1130 = vmatprep.subr.bf16.mxu0 %v1067
      %1131 = vmatpush1.bf16.msra.mxu0 %v1066
      %1132 = vmatprep.subr.bf16.mxu0 %v1069
      %1133 = vmatpush1.bf16.msra.mxu0 %v1068
      %1134 = vmatprep.subr.bf16.mxu0 %v1071
      %1135 = vmatpush1.bf16.msra.mxu0 %v1070
      %1136 = vmatprep.subr.bf16.mxu0 %v1073
      %1137 = vmatpush1.bf16.msra.mxu0 %v1072
      %1138 = vmatprep.subr.bf16.mxu0 %v1075
      %1139 = vmatpush1.bf16.msra.mxu0 %v1074
      %1140 = vmatprep.subr.bf16.mxu0 %v1077
      %1141 = vmatpush1.bf16.msra.mxu0 %v1076
      %1142 = vmatprep.subr.bf16.mxu0 %v1079
      %1143 = vmatpush1.bf16.msra.mxu0 %v1078
      %1144 = vmatprep.subr.bf16.mxu0 %v1081
      %1145 = vmatpush1.bf16.msra.mxu0 %v1080
      %1146 = vmatprep.subr.bf16.mxu0 %v1083
      %1147 = vmatpush1.bf16.msra.mxu0 %v1082
      %1148 = vmatprep.subr.bf16.mxu0 %v1085
      %1149 = vmatpush1.bf16.msra.mxu0 %v1084
      %1150 = vmatprep.subr.bf16.mxu0 %v1087
      %1151 = vmatpush1.bf16.msra.mxu0 %v1086
      %1152 = vmatprep.subr.bf16.mxu0 %v1089
      %1153 = vmatpush1.bf16.msra.mxu0 %v1088
      %1154 = vmatprep.subr.bf16.mxu0 %v1091
      %1155 = vmatpush1.bf16.msra.mxu0 %v1090
      %1156 = vmatprep.subr.bf16.mxu0 %v1093
      %1157 = vmatpush1.bf16.msra.mxu0 %v1092
      %1158 = vmatprep.subr.bf16.mxu0 %v1095
      %1159 = vmatpush1.bf16.msra.mxu0 %v1094
      %1160 = vmatprep.mubr.bf16.mxu0 %v664
      %1161 = vmatmul.mubr.bf16.gmra.mrb[0].mxu0 %v663
      %v1162 = vpop.f32.mrb[0].mxu0
      %v1163 = vadd.f32 %v961, %v1162
      %v1164 = vpop.f32.mrb[0].mxu0
      %v1165 = vadd.f32 %v965, %v1164
      %v1166 = vpop.f32.mrb[0].mxu0
      %v1167 = vadd.f32 %v961, %v1166
      %v1168 = vpop.f32.mrb[0].mxu0
      %v1169 = vadd.f32 %v965, %v1168
      %1170 = vmatprep.mubr.bf16.mxu0 %v666
      %1171 = vmatmul.mubr.bf16.gmra.mrb[0].mxu0 %v665
      %v1172 = vpop.f32.mrb[0].mxu0
      %v1173 = vadd.f32 %v961, %v1172
      %v1174 = vpop.f32.mrb[0].mxu0
      %v1175 = vadd.f32 %v965, %v1174
      %v1176 = vpop.f32.mrb[0].mxu0
      %v1177 = vadd.f32 %v961, %v1176
      %v1178 = vpop.f32.mrb[0].mxu0
      %v1179 = vadd.f32 %v965, %v1178
      %1180 = vdwg.mxu0
      %v1181 = vld [vmem:[%s5] sm:$0xff]
      %v1182 = vld [vmem:[%s5 + $0x8] sm:$0xff]
      %v1183 = vld [vmem:[%s5 + $0x10] sm:$0xff]
      %v1184 = vld [vmem:[%s5 + $0x18] sm:$0xff]
      %v1185 = vld [vmem:[%s5 + $0x20] sm:$0xff]
      %v1186 = vld [vmem:[%s5 + $0x28] sm:$0xff]
      %v1187 = vld [vmem:[%s5 + $0x30] sm:$0xff]
      %v1188 = vld [vmem:[%s5 + $0x38] sm:$0xff]
      %v1189 = vld [vmem:[%s5 + $0x40] sm:$0xff]
      %v1190 = vld [vmem:[%s5 + $0x48] sm:$0xff]
      %v1191 = vld [vmem:[%s5 + $0x50] sm:$0xff]
      %v1192 = vld [vmem:[%s5 + $0x58] sm:$0xff]
      %v1193 = vld [vmem:[%s5 + $0x60] sm:$0xff]
      %v1194 = vld [vmem:[%s5 + $0x68] sm:$0xff]
      %v1195 = vld [vmem:[%s5 + $0x70] sm:$0xff]
      %v1196 = vld [vmem:[%s5 + $0x78] sm:$0xff]
      %v1197 = vld [vmem:[%s5 + $0x80] sm:$0xff]
      %v1198 = vld [vmem:[%s5 + $0x88] sm:$0xff]
      %v1199 = vld [vmem:[%s5 + $0x90] sm:$0xff]
      %v1200 = vld [vmem:[%s5 + $0x98] sm:$0xff]
      %v1201 = vld [vmem:[%s5 + $0xa0] sm:$0xff]
      %v1202 = vld [vmem:[%s5 + $0xa8] sm:$0xff]
      %v1203 = vld [vmem:[%s5 + $0xb0] sm:$0xff]
      %v1204 = vld [vmem:[%s5 + $0xb8] sm:$0xff]
      %v1205 = vld [vmem:[%s5 + $0xc0] sm:$0xff]
      %v1206 = vld [vmem:[%s5 + $0xc8] sm:$0xff]
      %v1207 = vld [vmem:[%s5 + $0xd0] sm:$0xff]
      %v1208 = vld [vmem:[%s5 + $0xd8] sm:$0xff]
      %v1209 = vld [vmem:[%s5 + $0xe0] sm:$0xff]
      %v1210 = vld [vmem:[%s5 + $0xe8] sm:$0xff]
      %v1211 = vld [vmem:[%s5 + $0xf0] sm:$0xff]
      %v1212 = vld [vmem:[%s5 + $0xf8] sm:$0xff]
      %v1213 = vld [vmem:[%s8] sm:$0x3]
      %v1215 = vlaneseq
      %v1216 = vshrl.u32 %v1215, 7
      %v1217 = vsub.s32 0, %v1216
      %v1218 = vrot.slane %v1213, %v1217
      %v1219 = vlaneseq
      %v1220 = vshrl.u32 %v1219, 7
      %v1221 = vsub.s32 1, %v1220
      %v1222 = vrot.slane %v1213, %v1221
      %v1257 = vunpack.c.l.b16 %v1181
      %v1258 = vunpack.c.h.b16 %v1181
      %v1259 = vunpack.c.l.b16 %v1182
      %v1260 = vunpack.c.h.b16 %v1182
      %v1261 = vunpack.c.l.b16 %v1183
      %v1262 = vunpack.c.h.b16 %v1183
      %v1263 = vunpack.c.l.b16 %v1184
      %v1264 = vunpack.c.h.b16 %v1184
      %v1265 = vunpack.c.l.b16 %v1185
      %v1266 = vunpack.c.h.b16 %v1185
      %v1267 = vunpack.c.l.b16 %v1186
      %v1268 = vunpack.c.h.b16 %v1186
      %v1269 = vunpack.c.l.b16 %v1187
      %v1270 = vunpack.c.h.b16 %v1187
      %v1271 = vunpack.c.l.b16 %v1188
      %v1272 = vunpack.c.h.b16 %v1188
      %v1273 = vunpack.c.l.b16 %v1189
      %v1274 = vunpack.c.h.b16 %v1189
      %v1275 = vunpack.c.l.b16 %v1190
      %v1276 = vunpack.c.h.b16 %v1190
      %v1277 = vunpack.c.l.b16 %v1191
      %v1278 = vunpack.c.h.b16 %v1191
      %v1279 = vunpack.c.l.b16 %v1192
      %v1280 = vunpack.c.h.b16 %v1192
      %v1281 = vunpack.c.l.b16 %v1193
      %v1282 = vunpack.c.h.b16 %v1193
      %v1283 = vunpack.c.l.b16 %v1194
      %v1284 = vunpack.c.h.b16 %v1194
      %v1285 = vunpack.c.l.b16 %v1195
      %v1286 = vunpack.c.h.b16 %v1195
      %v1287 = vunpack.c.l.b16 %v1196
      %v1288 = vunpack.c.h.b16 %v1196
      %v1289 = vunpack.c.l.b16 %v1197
      %v1290 = vunpack.c.h.b16 %v1197
      %v1291 = vunpack.c.l.b16 %v1198
      %v1292 = vunpack.c.h.b16 %v1198
      %v1293 = vunpack.c.l.b16 %v1199
      %v1294 = vunpack.c.h.b16 %v1199
      %v1295 = vunpack.c.l.b16 %v1200
      %v1296 = vunpack.c.h.b16 %v1200
      %v1297 = vunpack.c.l.b16 %v1201
      %v1298 = vunpack.c.h.b16 %v1201
      %v1299 = vunpack.c.l.b16 %v1202
      %v1300 = vunpack.c.h.b16 %v1202
      %v1301 = vunpack.c.l.b16 %v1203
      %v1302 = vunpack.c.h.b16 %v1203
      %v1303 = vunpack.c.l.b16 %v1204
      %v1304 = vunpack.c.h.b16 %v1204
      %v1305 = vunpack.c.l.b16 %v1205
      %v1306 = vunpack.c.h.b16 %v1205
      %v1307 = vunpack.c.l.b16 %v1206
      %v1308 = vunpack.c.h.b16 %v1206
      %v1309 = vunpack.c.l.b16 %v1207
      %v1310 = vunpack.c.h.b16 %v1207
      %v1311 = vunpack.c.l.b16 %v1208
      %v1312 = vunpack.c.h.b16 %v1208
      %v1313 = vunpack.c.l.b16 %v1209
      %v1314 = vunpack.c.h.b16 %v1209
      %v1315 = vunpack.c.l.b16 %v1210
      %v1316 = vunpack.c.h.b16 %v1210
      %v1317 = vunpack.c.l.b16 %v1211
      %v1318 = vunpack.c.h.b16 %v1211
      %v1319 = vunpack.c.l.b16 %v1212
      %v1320 = vunpack.c.h.b16 %v1212
      %v1321 = vpack.c.b16 %v1259, %v1257
      %v1322 = vpack.c.b16 %v1260, %v1258
      %v1323 = vpack.c.b16 %v1263, %v1261
      %v1324 = vpack.c.b16 %v1264, %v1262
      %v1325 = vpack.c.b16 %v1267, %v1265
      %v1326 = vpack.c.b16 %v1268, %v1266
      %v1327 = vpack.c.b16 %v1271, %v1269
      %v1328 = vpack.c.b16 %v1272, %v1270
      %v1329 = vpack.c.b16 %v1275, %v1273
      %v1330 = vpack.c.b16 %v1276, %v1274
      %v1331 = vpack.c.b16 %v1279, %v1277
      %v1332 = vpack.c.b16 %v1280, %v1278
      %v1333 = vpack.c.b16 %v1283, %v1281
      %v1334 = vpack.c.b16 %v1284, %v1282
      %v1335 = vpack.c.b16 %v1287, %v1285
      %v1336 = vpack.c.b16 %v1288, %v1286
      %v1337 = vpack.c.b16 %v1291, %v1289
      %v1338 = vpack.c.b16 %v1292, %v1290
      %v1339 = vpack.c.b16 %v1295, %v1293
      %v1340 = vpack.c.b16 %v1296, %v1294
      %v1341 = vpack.c.b16 %v1299, %v1297
      %v1342 = vpack.c.b16 %v1300, %v1298
      %v1343 = vpack.c.b16 %v1303, %v1301
      %v1344 = vpack.c.b16 %v1304, %v1302
      %v1345 = vpack.c.b16 %v1307, %v1305
      %v1346 = vpack.c.b16 %v1308, %v1306
      %v1347 = vpack.c.b16 %v1311, %v1309
      %v1348 = vpack.c.b16 %v1312, %v1310
      %v1349 = vpack.c.b16 %v1315, %v1313
      %v1350 = vpack.c.b16 %v1316, %v1314
      %v1351 = vpack.c.b16 %v1319, %v1317
      %v1352 = vpack.c.b16 %v1320, %v1318
      %1385 = vmatprep.subr.bf16.mxu0 %v1322
      %1386 = vmatpush1.bf16.msra.mxu0 %v1321
      %1387 = vmatprep.subr.bf16.mxu0 %v1324
      %1388 = vmatpush1.bf16.msra.mxu0 %v1323
      %1389 = vmatprep.subr.bf16.mxu0 %v1326
      %1390 = vmatpush1.bf16.msra.mxu0 %v1325
      %1391 = vmatprep.subr.bf16.mxu0 %v1328
      %1392 = vmatpush1.bf16.msra.mxu0 %v1327
      %1393 = vmatprep.subr.bf16.mxu0 %v1330
      %1394 = vmatpush1.bf16.msra.mxu0 %v1329
      %1395 = vmatprep.subr.bf16.mxu0 %v1332
      %1396 = vmatpush1.bf16.msra.mxu0 %v1331
      %1397 = vmatprep.subr.bf16.mxu0 %v1334
      %1398 = vmatpush1.bf16.msra.mxu0 %v1333
      %1399 = vmatprep.subr.bf16.mxu0 %v1336
      %1400 = vmatpush1.bf16.msra.mxu0 %v1335
      %1401 = vmatprep.subr.bf16.mxu0 %v1338
      %1402 = vmatpush1.bf16.msra.mxu0 %v1337
      %1403 = vmatprep.subr.bf16.mxu0 %v1340
      %1404 = vmatpush1.bf16.msra.mxu0 %v1339
      %1405 = vmatprep.subr.bf16.mxu0 %v1342
      %1406 = vmatpush1.bf16.msra.mxu0 %v1341
      %1407 = vmatprep.subr.bf16.mxu0 %v1344
      %1408 = vmatpush1.bf16.msra.mxu0 %v1343
      %1409 = vmatprep.subr.bf16.mxu0 %v1346
      %1410 = vmatpush1.bf16.msra.mxu0 %v1345
      %1411 = vmatprep.subr.bf16.mxu0 %v1348
      %1412 = vmatpush1.bf16.msra.mxu0 %v1347
      %1413 = vmatprep.subr.bf16.mxu0 %v1350
      %1414 = vmatpush1.bf16.msra.mxu0 %v1349
      %1415 = vmatprep.subr.bf16.mxu0 %v1352
      %1416 = vmatpush1.bf16.msra.mxu0 %v1351
      %1417 = vmatprep.mubr.bf16.mxu0 %v664
      %1418 = vmatmul.mubr.bf16.gmra.mrb[0].mxu0 %v663
      %v1419 = vpop.f32.mrb[0].mxu0
      %v1420 = vadd.f32 %v1218, %v1419
      %v1421 = vpop.f32.mrb[0].mxu0
      %v1422 = vadd.f32 %v1222, %v1421
      %v1423 = vpop.f32.mrb[0].mxu0
      %v1424 = vadd.f32 %v1218, %v1423
      %v1425 = vpop.f32.mrb[0].mxu0
      %v1426 = vadd.f32 %v1222, %v1425
      %1427 = vmatprep.mubr.bf16.mxu0 %v666
      %1428 = vmatmul.mubr.bf16.gmra.mrb[0].mxu0 %v665
      %v1429 = vpop.f32.mrb[0].mxu0
      %v1430 = vadd.f32 %v1218, %v1429
      %v1431 = vpop.f32.mrb[0].mxu0
      %v1432 = vadd.f32 %v1222, %v1431
      %v1433 = vpop.f32.mrb[0].mxu0
      %v1434 = vadd.f32 %v1218, %v1433
      %v1435 = vpop.f32.mrb[0].mxu0
      %v1436 = vadd.f32 %v1222, %v1435
      %1437 = vdwg.mxu0
      %v1438 = vmul.f32 %v906, 0.088388346
      %v1439 = vmul.f32 %v908, 0.088388346
      %v1440 = vmul.f32 %v910, 0.088388346
      %v1441 = vmul.f32 %v912, 0.088388346
      %v1442 = vmul.f32 %v916, 0.088388346
      %v1443 = vmul.f32 %v918, 0.088388346
      %v1444 = vmul.f32 %v920, 0.088388346
      %v1445 = vmul.f32 %v922, 0.088388346
      %v1446 = vpack.c.bf16 %v1440, %v1438
      %v1447 = vpack.c.bf16 %v1441, %v1439
      %v1448 = vpack.c.bf16 %v1444, %v1442
      %v1449 = vpack.c.bf16 %v1445, %v1443
      %v1450 = vpack.c.bf16 %v1167, %v1163
      %v1451 = vpack.c.bf16 %v1169, %v1165
      %v1452 = vpack.c.bf16 %v1177, %v1173
      %v1453 = vpack.c.bf16 %v1179, %v1175
      %v1454 = vpack.c.bf16 %v1424, %v1420
      %v1455 = vpack.c.bf16 %v1426, %v1422
      %v1456 = vpack.c.bf16 %v1434, %v1430
      %v1457 = vpack.c.bf16 %v1436, %v1432
      %1458 = vmatprep.subr.bf16.mxu0 0
      %1459 = vmatpush1.bf16.xpose.msra.mxu0 %v1450
      %1460 = vmatprep.subr.bf16.mxu0 0
      %1461 = vmatpush1.bf16.xpose.msra.mxu0 %v1452
      %1462 = vmatprep.subr.bf16.mxu0 0
      %1463 = vmatpush1.bf16.xpose.msra.mxu0 0
      %1464 = vmatprep.subr.bf16.mxu0 0
      %1465 = vmatpush1.bf16.xpose.msra.mxu0 0
      %1466 = vmatprep.subr.bf16.mxu0 0
      %1467 = vmatpush1.bf16.xpose.msra.mxu0 0
      %1468 = vmatprep.subr.bf16.mxu0 0
      %1469 = vmatpush1.bf16.xpose.msra.mxu0 0
      %1470 = vmatprep.subr.bf16.mxu0 0
      %1471 = vmatpush1.bf16.xpose.msra.mxu0 0
      %1472 = vmatprep.subr.bf16.mxu0 0
      %1473 = vmatpush1.bf16.xpose.msra.mxu0 0
      %1474 = vmatprep.subr.bf16.mxu0 0
      %1475 = vmatpush1.bf16.xpose.msra.mxu0 0
      %1476 = vmatprep.subr.bf16.mxu0 0
      %1477 = vmatpush1.bf16.xpose.msra.mxu0 0
      %1478 = vmatprep.subr.bf16.mxu0 0
      %1479 = vmatpush1.bf16.xpose.msra.mxu0 0
      %1480 = vmatprep.subr.bf16.mxu0 0
      %1481 = vmatpush1.bf16.xpose.msra.mxu0 0
      %1482 = vmatprep.subr.bf16.mxu0 0
      %1483 = vmatpush1.bf16.xpose.msra.mxu0 0
      %1484 = vmatprep.subr.bf16.mxu0 0
      %1485 = vmatpush1.bf16.xpose.msra.mxu0 0
      %1486 = vmatprep.subr.bf16.mxu0 0
      %1487 = vmatpush1.bf16.xpose.msra.mxu0 0
      %1488 = vmatprep.subr.bf16.mxu0 0
      %1489 = vmatpush1.bf16.xpose.msra.mxu0 0
      %1490 = vmatprep.mubr.bf16.mxu0 0
      %1491 = vmatmul.mubr.bf16.gmra.mrb[0].mxu0 %v1446
      %v1492 = vpop.f32.mrb[0].mxu0
      %v1493 = vadd.f32 0.0, %v1492
      %v1494 = vpop.f32.mrb[0].mxu0
      %v1495 = vpop.f32.mrb[0].mxu0
      %v1496 = vadd.f32 0.0, %v1495
      %v1497 = vpop.f32.mrb[0].mxu0
      %1498 = vmatprep.mubr.bf16.mxu0 0
      %1499 = vmatmul.mubr.bf16.gmra.mrb[0].mxu0 %v1448
      %v1500 = vpop.f32.mrb[0].mxu0
      %v1501 = vadd.f32 0.0, %v1500
      %v1502 = vpop.f32.mrb[0].mxu0
      %v1503 = vpop.f32.mrb[0].mxu0
      %v1504 = vadd.f32 0.0, %v1503
      %v1505 = vpop.f32.mrb[0].mxu0
      %1506 = vdwg.mxu0
      %vm1507 = vcmask 261120
      %v1508 = vsel %vm1507, %v1493, -inf
      %1509 = vmax.xlane.f32.xlu0 %v1508
      %v1510 = vpop.xlane.xlu0 %1509
      %v1511 = vsel %vm1507, %v1496, -inf
      %1512 = vmax.xlane.f32.xlu0 %v1511
      %v1513 = vpop.xlane.xlu0 %1512
      %v1514 = vsel %vm1507, %v1501, -inf
      %1515 = vmax.xlane.f32.xlu0 %v1514
      %v1516 = vpop.xlane.xlu0 %1515
      %v1517 = vsel %vm1507, %v1504, -inf
      %1518 = vmax.xlane.f32.xlu0 %v1517
      %v1519 = vpop.xlane.xlu0 %1518
      %v1520 = vsub.f32 %v1493, %v1510
      %v1521 = vsub.f32 %v1496, %v1513
      %v1522 = vsub.f32 %v1501, %v1516
      %v1523 = vsub.f32 %v1504, %v1519
      %v1524 = vmul.f32 %v1520, 1.442695
      %v1525 = vpow.pop %v1524
      %v1526 = vmul.f32 %v1521, 1.442695
      %v1527 = vpow.pop %v1526
      %v1528 = vmul.f32 %v1522, 1.442695
      %v1529 = vpow.pop %v1528
      %v1530 = vmul.f32 %v1523, 1.442695
      %v1531 = vpow.pop %v1530
      %v1532 = vsel %vm1507, %v1525, 0.0
      %1533 = vadd.xlane.f32.xlu0 %v1532
      %v1534 = vpop.xlane.xlu0 %1533
      %v1535 = vsel %vm1507, %v1527, 0.0
      %1536 = vadd.xlane.f32.xlu0 %v1535
      %v1537 = vpop.xlane.xlu0 %1536
      %v1538 = vsel %vm1507, %v1529, 0.0
      %1539 = vadd.xlane.f32.xlu0 %v1538
      %v1540 = vpop.xlane.xlu0 %1539
      %v1541 = vsel %vm1507, %v1531, 0.0
      %1542 = vadd.xlane.f32.xlu0 %v1541
      %v1543 = vpop.xlane.xlu0 %1542
      %v1544 = vrcp.pop %v1534
      %v1545 = vrcp.pop %v1537
      %v1546 = vrcp.pop %v1540
      %v1547 = vrcp.pop %v1543
      %v1548 = vmul.f32 %v1525, %v1544
      %v1549 = vmul.f32 %v1527, %v1545
      %v1550 = vmul.f32 %v1529, %v1546
      %v1551 = vmul.f32 %v1531, %v1547
      %v1552 = vpack.c.bf16 %v1549, %v1548
      %v1553 = vpack.c.bf16 %v1551, %v1550
      %v1555 = vsel %vm1507, %v1552, 0
      %v1558 = vsel %vm1507, %v1553, 0
      %1560 = vmatprep.subr.bf16.mxu0 0
      %1561 = vmatpush1.bf16.msra.mxu0 %v1454
      %1562 = vmatprep.subr.bf16.mxu0 0
      %1563 = vmatpush1.bf16.msra.mxu0 %v1456
      %1564 = vmatprep.subr.bf16.mxu0 0
      %1565 = vmatpush1.bf16.msra.mxu0 0
      %1566 = vmatprep.subr.bf16.mxu0 0
      %1567 = vmatpush1.bf16.msra.mxu0 0
      %1568 = vmatprep.subr.bf16.mxu0 0
      %1569 = vmatpush1.bf16.msra.mxu0 0
      %1570 = vmatprep.subr.bf16.mxu0 0
      %1571 = vmatpush1.bf16.msra.mxu0 0
      %1572 = vmatprep.subr.bf16.mxu0 0
      %1573 = vmatpush1.bf16.msra.mxu0 0
      %1574 = vmatprep.subr.bf16.mxu0 0
      %1575 = vmatpush1.bf16.msra.mxu0 0
      %1576 = vmatprep.subr.bf16.mxu0 0
      %1577 = vmatpush1.bf16.msra.mxu0 0
      %1578 = vmatprep.subr.bf16.mxu0 0
      %1579 = vmatpush1.bf16.msra.mxu0 0
      %1580 = vmatprep.subr.bf16.mxu0 0
      %1581 = vmatpush1.bf16.msra.mxu0 0
      %1582 = vmatprep.subr.bf16.mxu0 0
      %1583 = vmatpush1.bf16.msra.mxu0 0
      %1584 = vmatprep.subr.bf16.mxu0 0
      %1585 = vmatpush1.bf16.msra.mxu0 0
      %1586 = vmatprep.subr.bf16.mxu0 0
      %1587 = vmatpush1.bf16.msra.mxu0 0
      %1588 = vmatprep.subr.bf16.mxu0 0
      %1589 = vmatpush1.bf16.msra.mxu0 0
      %1590 = vmatprep.subr.bf16.mxu0 0
      %1591 = vmatpush1.bf16.msra.mxu0 0
      %1592 = vmatprep.mubr.bf16.mxu0 0
      %1593 = vmatmul.mubr.bf16.gmra.mrb[0].mxu0 %v1555
      %v1594 = vpop.f32.mrb[0].mxu0
      %v1595 = vadd.f32 0.0, %v1594
      %v1596 = vpop.f32.mrb[0].mxu0
      %v1597 = vpop.f32.mrb[0].mxu0
      %v1598 = vadd.f32 0.0, %v1597
      %v1599 = vpop.f32.mrb[0].mxu0
      %1600 = vmatprep.mubr.bf16.mxu0 0
      %1601 = vmatmul.mubr.bf16.gmra.mrb[0].mxu0 %v1558
      %v1602 = vpop.f32.mrb[0].mxu0
      %v1603 = vadd.f32 0.0, %v1602
      %v1604 = vpop.f32.mrb[0].mxu0
      %v1605 = vpop.f32.mrb[0].mxu0
      %v1606 = vadd.f32 0.0, %v1605
      %v1607 = vpop.f32.mrb[0].mxu0
      %1608 = vdwg.mxu0
      %1609 = vst [vmem:[#allocation2] sm:$0xff] %v1595
      %1610 = vst [vmem:[#allocation2 + $0x10] sm:$0xff] %v1598
      %1611 = vst [vmem:[#allocation2 + $0x20] sm:$0xff] %v1603
      %1612 = vst [vmem:[#allocation2 + $0x30] sm:$0xff] %v1606
      %1613 = vmatprep.subr.bf16.mxu0 0
      %1614 = vmatpush1.bf16.xpose.msra.mxu0 %v1451
      %1615 = vmatprep.subr.bf16.mxu0 0
      %1616 = vmatpush1.bf16.xpose.msra.mxu0 %v1453
      %1617 = vmatprep.subr.bf16.mxu0 0
      %1618 = vmatpush1.bf16.xpose.msra.mxu0 0
      %1619 = vmatprep.subr.bf16.mxu0 0
      %1620 = vmatpush1.bf16.xpose.msra.mxu0 0
      %1621 = vmatprep.subr.bf16.mxu0 0
      %1622 = vmatpush1.bf16.xpose.msra.mxu0 0
      %1623 = vmatprep.subr.bf16.mxu0 0
      %1624 = vmatpush1.bf16.xpose.msra.mxu0 0
      %1625 = vmatprep.subr.bf16.mxu0 0
      %1626 = vmatpush1.bf16.xpose.msra.mxu0 0
      %1627 = vmatprep.subr.bf16.mxu0 0
      %1628 = vmatpush1.bf16.xpose.msra.mxu0 0
      %1629 = vmatprep.subr.bf16.mxu0 0
      %1630 = vmatpush1.bf16.xpose.msra.mxu0 0
      %1631 = vmatprep.subr.bf16.mxu0 0
      %1632 = vmatpush1.bf16.xpose.msra.mxu0 0
      %1633 = vmatprep.subr.bf16.mxu0 0
      %1634 = vmatpush1.bf16.xpose.msra.mxu0 0
      %1635 = vmatprep.subr.bf16.mxu0 0
      %1636 = vmatpush1.bf16.xpose.msra.mxu0 0
      %1637 = vmatprep.subr.bf16.mxu0 0
      %1638 = vmatpush1.bf16.xpose.msra.mxu0 0
      %1639 = vmatprep.subr.bf16.mxu0 0
      %1640 = vmatpush1.bf16.xpose.msra.mxu0 0
      %1641 = vmatprep.subr.bf16.mxu0 0
      %1642 = vmatpush1.bf16.xpose.msra.mxu0 0
      %1643 = vmatprep.subr.bf16.mxu0 0
      %1644 = vmatpush1.bf16.xpose.msra.mxu0 0
      %1645 = vmatprep.mubr.bf16.mxu0 0
      %1646 = vmatmul.mubr.bf16.gmra.mrb[0].mxu0 %v1447
      %v1647 = vpop.f32.mrb[0].mxu0
      %v1648 = vadd.f32 0.0, %v1647
      %v1649 = vpop.f32.mrb[0].mxu0
      %v1650 = vpop.f32.mrb[0].mxu0
      %v1651 = vadd.f32 0.0, %v1650
      %v1652 = vpop.f32.mrb[0].mxu0
      %1653 = vmatprep.mubr.bf16.mxu0 0
      %1654 = vmatmul.mubr.bf16.gmra.mrb[0].mxu0 %v1449
      %v1655 = vpop.f32.mrb[0].mxu0
      %v1656 = vadd.f32 0.0, %v1655
      %v1657 = vpop.f32.mrb[0].mxu0
      %v1658 = vpop.f32.mrb[0].mxu0
      %v1659 = vadd.f32 0.0, %v1658
      %v1660 = vpop.f32.mrb[0].mxu0
      %1661 = vdwg.mxu0
      %v1662 = vsel %vm1507, %v1648, -inf
      %1663 = vmax.xlane.f32.xlu0 %v1662
      %v1664 = vpop.xlane.xlu0 %1663
      %v1665 = vsel %vm1507, %v1651, -inf
      %1666 = vmax.xlane.f32.xlu0 %v1665
      %v1667 = vpop.xlane.xlu0 %1666
      %v1668 = vsel %vm1507, %v1656, -inf
      %1669 = vmax.xlane.f32.xlu0 %v1668
      %v1670 = vpop.xlane.xlu0 %1669
      %v1671 = vsel %vm1507, %v1659, -inf
      %1672 = vmax.xlane.f32.xlu0 %v1671
      %v1673 = vpop.xlane.xlu0 %1672
      %v1674 = vsub.f32 %v1648, %v1664
      %v1675 = vsub.f32 %v1651, %v1667
      %v1676 = vsub.f32 %v1656, %v1670
      %v1677 = vsub.f32 %v1659, %v1673
      %v1678 = vmul.f32 %v1674, 1.442695
      %v1679 = vpow.pop %v1678
      %v1680 = vmul.f32 %v1675, 1.442695
      %v1681 = vpow.pop %v1680
      %v1682 = vmul.f32 %v1676, 1.442695
      %v1683 = vpow.pop %v1682
      %v1684 = vmul.f32 %v1677, 1.442695
      %v1685 = vpow.pop %v1684
      %v1686 = vsel %vm1507, %v1679, 0.0
      %1687 = vadd.xlane.f32.xlu0 %v1686
      %v1688 = vpop.xlane.xlu0 %1687
      %v1689 = vsel %vm1507, %v1681, 0.0
      %1690 = vadd.xlane.f32.xlu0 %v1689
      %v1691 = vpop.xlane.xlu0 %1690
      %v1692 = vsel %vm1507, %v1683, 0.0
      %1693 = vadd.xlane.f32.xlu0 %v1692
      %v1694 = vpop.xlane.xlu0 %1693
      %v1695 = vsel %vm1507, %v1685, 0.0
      %1696 = vadd.xlane.f32.xlu0 %v1695
      %v1697 = vpop.xlane.xlu0 %1696
      %v1698 = vrcp.pop %v1688
      %v1699 = vrcp.pop %v1691
      %v1700 = vrcp.pop %v1694
      %v1701 = vrcp.pop %v1697
      %v1702 = vmul.f32 %v1679, %v1698
      %v1703 = vmul.f32 %v1681, %v1699
      %v1704 = vmul.f32 %v1683, %v1700
      %v1705 = vmul.f32 %v1685, %v1701
      %v1706 = vpack.c.bf16 %v1703, %v1702
      %v1707 = vpack.c.bf16 %v1705, %v1704
      %v1709 = vsel %vm1507, %v1706, 0
      %v1712 = vsel %vm1507, %v1707, 0
      %1714 = vmatprep.subr.bf16.mxu0 0
      %1715 = vmatpush1.bf16.msra.mxu0 %v1455
      %1716 = vmatprep.subr.bf16.mxu0 0
      %1717 = vmatpush1.bf16.msra.mxu0 %v1457
      %1718 = vmatprep.subr.bf16.mxu0 0
      %1719 = vmatpush1.bf16.msra.mxu0 0
      %1720 = vmatprep.subr.bf16.mxu0 0
      %1721 = vmatpush1.bf16.msra.mxu0 0
      %1722 = vmatprep.subr.bf16.mxu0 0
      %1723 = vmatpush1.bf16.msra.mxu0 0
      %1724 = vmatprep.subr.bf16.mxu0 0
      %1725 = vmatpush1.bf16.msra.mxu0 0
      %1726 = vmatprep.subr.bf16.mxu0 0
      %1727 = vmatpush1.bf16.msra.mxu0 0
      %1728 = vmatprep.subr.bf16.mxu0 0
      %1729 = vmatpush1.bf16.msra.mxu0 0
      %1730 = vmatprep.subr.bf16.mxu0 0
      %1731 = vmatpush1.bf16.msra.mxu0 0
      %1732 = vmatprep.subr.bf16.mxu0 0
      %1733 = vmatpush1.bf16.msra.mxu0 0
      %1734 = vmatprep.subr.bf16.mxu0 0
      %1735 = vmatpush1.bf16.msra.mxu0 0
      %1736 = vmatprep.subr.bf16.mxu0 0
      %1737 = vmatpush1.bf16.msra.mxu0 0
      %1738 = vmatprep.subr.bf16.mxu0 0
      %1739 = vmatpush1.bf16.msra.mxu0 0
      %1740 = vmatprep.subr.bf16.mxu0 0
      %1741 = vmatpush1.bf16.msra.mxu0 0
      %1742 = vmatprep.subr.bf16.mxu0 0
      %1743 = vmatpush1.bf16.msra.mxu0 0
      %1744 = vmatprep.subr.bf16.mxu0 0
      %1745 = vmatpush1.bf16.msra.mxu0 0
      %1746 = vmatprep.mubr.bf16.mxu0 0
      %1747 = vmatmul.mubr.bf16.gmra.mrb[0].mxu0 %v1709
      %v1748 = vpop.f32.mrb[0].mxu0
      %v1749 = vadd.f32 0.0, %v1748
      %v1750 = vpop.f32.mrb[0].mxu0
      %v1751 = vpop.f32.mrb[0].mxu0
      %v1752 = vadd.f32 0.0, %v1751
      %v1753 = vpop.f32.mrb[0].mxu0
      %1754 = vmatprep.mubr.bf16.mxu0 0
      %1755 = vmatmul.mubr.bf16.gmra.mrb[0].mxu0 %v1712
      %v1756 = vpop.f32.mrb[0].mxu0
      %v1757 = vadd.f32 0.0, %v1756
      %v1758 = vpop.f32.mrb[0].mxu0
      %v1759 = vpop.f32.mrb[0].mxu0
      %v1760 = vadd.f32 0.0, %v1759
      %v1761 = vpop.f32.mrb[0].mxu0
      %1762 = vdwg.mxu0
      %1763 = vst [vmem:[#allocation2 + $0x8] sm:$0xff] %v1749
      %1764 = vst [vmem:[#allocation2 + $0x18] sm:$0xff] %v1752
      %1765 = vst [vmem:[#allocation2 + $0x28] sm:$0xff] %v1757
      %1766 = vst [vmem:[#allocation2 + $0x38] sm:$0xff] %v1760
      %v1767 = vld [vmem:[#allocation2] sm:$0xff]
      %v1768 = vld [vmem:[#allocation2 + $0x8] sm:$0xff]
      %v1769 = vld [vmem:[#allocation2 + $0x10] sm:$0xff]
      %v1770 = vld [vmem:[#allocation2 + $0x18] sm:$0xff]
      %v1771 = vld [vmem:[#allocation2 + $0x20] sm:$0xff]
      %v1772 = vld [vmem:[#allocation2 + $0x28] sm:$0xff]
      %v1773 = vld [vmem:[#allocation2 + $0x30] sm:$0xff]
      %v1774 = vld [vmem:[#allocation2 + $0x38] sm:$0xff]
      %v1775 = vpack.c.bf16 %v1769, %v1767
      %v1776 = vpack.c.bf16 %v1770, %v1768
      %v1777 = vpack.c.bf16 %v1773, %v1771
      %v1778 = vpack.c.bf16 %v1774, %v1772
      %v1779 = vld [vmem:[%s9] sm:$0xff]
      %v1780 = vld [vmem:[%s9 + $0x8] sm:$0xff]
      %v1781 = vld [vmem:[%s9 + $0x10] sm:$0xff]
      %v1782 = vld [vmem:[%s9 + $0x18] sm:$0xff]
      %v1783 = vld [vmem:[%s9 + $0x20] sm:$0xff]
      %v1784 = vld [vmem:[%s9 + $0x28] sm:$0xff]
      %v1785 = vld [vmem:[%s9 + $0x30] sm:$0xff]
      %v1786 = vld [vmem:[%s9 + $0x38] sm:$0xff]
      %v1787 = vld [vmem:[%s9 + $0x40] sm:$0xff]
      %v1788 = vld [vmem:[%s9 + $0x48] sm:$0xff]
      %v1789 = vld [vmem:[%s9 + $0x50] sm:$0xff]
      %v1790 = vld [vmem:[%s9 + $0x58] sm:$0xff]
      %v1791 = vld [vmem:[%s9 + $0x60] sm:$0xff]
      %v1792 = vld [vmem:[%s9 + $0x68] sm:$0xff]
      %v1793 = vld [vmem:[%s9 + $0x70] sm:$0xff]
      %v1794 = vld [vmem:[%s9 + $0x78] sm:$0xff]
      %v1795 = vld [vmem:[%s9 + $0x80] sm:$0xff]
      %v1796 = vld [vmem:[%s9 + $0x88] sm:$0xff]
      %v1797 = vld [vmem:[%s9 + $0x90] sm:$0xff]
      %v1798 = vld [vmem:[%s9 + $0x98] sm:$0xff]
      %v1799 = vld [vmem:[%s9 + $0xa0] sm:$0xff]
      %v1800 = vld [vmem:[%s9 + $0xa8] sm:$0xff]
      %v1801 = vld [vmem:[%s9 + $0xb0] sm:$0xff]
      %v1802 = vld [vmem:[%s9 + $0xb8] sm:$0xff]
      %v1803 = vld [vmem:[%s9 + $0xc0] sm:$0xff]
      %v1804 = vld [vmem:[%s9 + $0xc8] sm:$0xff]
      %v1805 = vld [vmem:[%s9 + $0xd0] sm:$0xff]
      %v1806 = vld [vmem:[%s9 + $0xd8] sm:$0xff]
      %v1807 = vld [vmem:[%s9 + $0xe0] sm:$0xff]
      %v1808 = vld [vmem:[%s9 + $0xe8] sm:$0xff]
      %v1809 = vld [vmem:[%s9 + $0xf0] sm:$0xff]
      %v1810 = vld [vmem:[%s9 + $0xf8] sm:$0xff]
      %v1811 = vld [vmem:[%s10] sm:$0x3]
      %v1813 = vlaneseq
      %v1814 = vshrl.u32 %v1813, 7
      %v1815 = vsub.s32 0, %v1814
      %v1816 = vrot.slane %v1811, %v1815
      %v1817 = vlaneseq
      %v1818 = vshrl.u32 %v1817, 7
      %v1819 = vsub.s32 1, %v1818
      %v1820 = vrot.slane %v1811, %v1819
      %v1855 = vunpack.c.l.b16 %v1779
      %v1856 = vunpack.c.h.b16 %v1779
      %v1857 = vunpack.c.l.b16 %v1780
      %v1858 = vunpack.c.h.b16 %v1780
      %v1859 = vunpack.c.l.b16 %v1781
      %v1860 = vunpack.c.h.b16 %v1781
      %v1861 = vunpack.c.l.b16 %v1782
      %v1862 = vunpack.c.h.b16 %v1782
      %v1863 = vunpack.c.l.b16 %v1783
      %v1864 = vunpack.c.h.b16 %v1783
      %v1865 = vunpack.c.l.b16 %v1784
      %v1866 = vunpack.c.h.b16 %v1784
      %v1867 = vunpack.c.l.b16 %v1785
      %v1868 = vunpack.c.h.b16 %v1785
      %v1869 = vunpack.c.l.b16 %v1786
      %v1870 = vunpack.c.h.b16 %v1786
      %v1871 = vunpack.c.l.b16 %v1787
      %v1872 = vunpack.c.h.b16 %v1787
      %v1873 = vunpack.c.l.b16 %v1788
      %v1874 = vunpack.c.h.b16 %v1788
      %v1875 = vunpack.c.l.b16 %v1789
      %v1876 = vunpack.c.h.b16 %v1789
      %v1877 = vunpack.c.l.b16 %v1790
      %v1878 = vunpack.c.h.b16 %v1790
      %v1879 = vunpack.c.l.b16 %v1791
      %v1880 = vunpack.c.h.b16 %v1791
      %v1881 = vunpack.c.l.b16 %v1792
      %v1882 = vunpack.c.h.b16 %v1792
      %v1883 = vunpack.c.l.b16 %v1793
      %v1884 = vunpack.c.h.b16 %v1793
      %v1885 = vunpack.c.l.b16 %v1794
      %v1886 = vunpack.c.h.b16 %v1794
      %v1887 = vunpack.c.l.b16 %v1795
      %v1888 = vunpack.c.h.b16 %v1795
      %v1889 = vunpack.c.l.b16 %v1796
      %v1890 = vunpack.c.h.b16 %v1796
      %v1891 = vunpack.c.l.b16 %v1797
      %v1892 = vunpack.c.h.b16 %v1797
      %v1893 = vunpack.c.l.b16 %v1798
      %v1894 = vunpack.c.h.b16 %v1798
      %v1895 = vunpack.c.l.b16 %v1799
      %v1896 = vunpack.c.h.b16 %v1799
      %v1897 = vunpack.c.l.b16 %v1800
      %v1898 = vunpack.c.h.b16 %v1800
      %v1899 = vunpack.c.l.b16 %v1801
      %v1900 = vunpack.c.h.b16 %v1801
      %v1901 = vunpack.c.l.b16 %v1802
      %v1902 = vunpack.c.h.b16 %v1802
      %v1903 = vunpack.c.l.b16 %v1803
      %v1904 = vunpack.c.h.b16 %v1803
      %v1905 = vunpack.c.l.b16 %v1804
      %v1906 = vunpack.c.h.b16 %v1804
      %v1907 = vunpack.c.l.b16 %v1805
      %v1908 = vunpack.c.h.b16 %v1805
      %v1909 = vunpack.c.l.b16 %v1806
      %v1910 = vunpack.c.h.b16 %v1806
      %v1911 = vunpack.c.l.b16 %v1807
      %v1912 = vunpack.c.h.b16 %v1807
      %v1913 = vunpack.c.l.b16 %v1808
      %v1914 = vunpack.c.h.b16 %v1808
      %v1915 = vunpack.c.l.b16 %v1809
      %v1916 = vunpack.c.h.b16 %v1809
      %v1917 = vunpack.c.l.b16 %v1810
      %v1918 = vunpack.c.h.b16 %v1810
      %v1919 = vpack.c.b16 %v1857, %v1855
      %v1920 = vpack.c.b16 %v1858, %v1856
      %v1921 = vpack.c.b16 %v1861, %v1859
      %v1922 = vpack.c.b16 %v1862, %v1860
      %v1923 = vpack.c.b16 %v1865, %v1863
      %v1924 = vpack.c.b16 %v1866, %v1864
      %v1925 = vpack.c.b16 %v1869, %v1867
      %v1926 = vpack.c.b16 %v1870, %v1868
      %v1927 = vpack.c.b16 %v1873, %v1871
      %v1928 = vpack.c.b16 %v1874, %v1872
      %v1929 = vpack.c.b16 %v1877, %v1875
      %v1930 = vpack.c.b16 %v1878, %v1876
      %v1931 = vpack.c.b16 %v1881, %v1879
      %v1932 = vpack.c.b16 %v1882, %v1880
      %v1933 = vpack.c.b16 %v1885, %v1883
      %v1934 = vpack.c.b16 %v1886, %v1884
      %v1935 = vpack.c.b16 %v1889, %v1887
      %v1936 = vpack.c.b16 %v1890, %v1888
      %v1937 = vpack.c.b16 %v1893, %v1891
      %v1938 = vpack.c.b16 %v1894, %v1892
      %v1939 = vpack.c.b16 %v1897, %v1895
      %v1940 = vpack.c.b16 %v1898, %v1896
      %v1941 = vpack.c.b16 %v1901, %v1899
      %v1942 = vpack.c.b16 %v1902, %v1900
      %v1943 = vpack.c.b16 %v1905, %v1903
      %v1944 = vpack.c.b16 %v1906, %v1904
      %v1945 = vpack.c.b16 %v1909, %v1907
      %v1946 = vpack.c.b16 %v1910, %v1908
      %v1947 = vpack.c.b16 %v1913, %v1911
      %v1948 = vpack.c.b16 %v1914, %v1912
      %v1949 = vpack.c.b16 %v1917, %v1915
      %v1950 = vpack.c.b16 %v1918, %v1916
      %1983 = vmatprep.subr.bf16.mxu0 %v1920
      %1984 = vmatpush1.bf16.msra.mxu0 %v1919
      %1985 = vmatprep.subr.bf16.mxu0 %v1922
      %1986 = vmatpush1.bf16.msra.mxu0 %v1921
      %1987 = vmatprep.subr.bf16.mxu0 %v1924
      %1988 = vmatpush1.bf16.msra.mxu0 %v1923
      %1989 = vmatprep.subr.bf16.mxu0 %v1926
      %1990 = vmatpush1.bf16.msra.mxu0 %v1925
      %1991 = vmatprep.subr.bf16.mxu0 %v1928
      %1992 = vmatpush1.bf16.msra.mxu0 %v1927
      %1993 = vmatprep.subr.bf16.mxu0 %v1930
      %1994 = vmatpush1.bf16.msra.mxu0 %v1929
      %1995 = vmatprep.subr.bf16.mxu0 %v1932
      %1996 = vmatpush1.bf16.msra.mxu0 %v1931
      %1997 = vmatprep.subr.bf16.mxu0 %v1934
      %1998 = vmatpush1.bf16.msra.mxu0 %v1933
      %1999 = vmatprep.subr.bf16.mxu0 %v1936
      %2000 = vmatpush1.bf16.msra.mxu0 %v1935
      %2001 = vmatprep.subr.bf16.mxu0 %v1938
      %2002 = vmatpush1.bf16.msra.mxu0 %v1937
      %2003 = vmatprep.subr.bf16.mxu0 %v1940
      %2004 = vmatpush1.bf16.msra.mxu0 %v1939
      %2005 = vmatprep.subr.bf16.mxu0 %v1942
      %2006 = vmatpush1.bf16.msra.mxu0 %v1941
      %2007 = vmatprep.subr.bf16.mxu0 %v1944
      %2008 = vmatpush1.bf16.msra.mxu0 %v1943
      %2009 = vmatprep.subr.bf16.mxu0 %v1946
      %2010 = vmatpush1.bf16.msra.mxu0 %v1945
      %2011 = vmatprep.subr.bf16.mxu0 %v1948
      %2012 = vmatpush1.bf16.msra.mxu0 %v1947
      %2013 = vmatprep.subr.bf16.mxu0 %v1950
      %2014 = vmatpush1.bf16.msra.mxu0 %v1949
      %2015 = vmatprep.mubr.bf16.mxu0 %v1776
      %2016 = vmatmul.mubr.bf16.gmra.mrb[0].mxu0 %v1775
      %v2017 = vpop.f32.mrb[0].mxu0
      %v2018 = vadd.f32 %v1816, %v2017
      %v2019 = vpop.f32.mrb[0].mxu0
      %v2020 = vadd.f32 %v1820, %v2019
      %v2021 = vpop.f32.mrb[0].mxu0
      %v2022 = vadd.f32 %v1816, %v2021
      %v2023 = vpop.f32.mrb[0].mxu0
      %v2024 = vadd.f32 %v1820, %v2023
      %2025 = vmatprep.mubr.bf16.mxu0 %v1778
      %2026 = vmatmul.mubr.bf16.gmra.mrb[0].mxu0 %v1777
      %v2027 = vpop.f32.mrb[0].mxu0
      %v2028 = vadd.f32 %v1816, %v2027
      %v2029 = vpop.f32.mrb[0].mxu0
      %v2030 = vadd.f32 %v1820, %v2029
      %v2031 = vpop.f32.mrb[0].mxu0
      %v2032 = vadd.f32 %v1816, %v2031
      %v2033 = vpop.f32.mrb[0].mxu0
      %v2034 = vadd.f32 %v1820, %v2033
      %2035 = vdwg.mxu0
      %v2036 = vadd.f32 %v550, %v2018
      %v2037 = vadd.f32 %v551, %v2020
      %v2038 = vadd.f32 %v552, %v2022
      %v2039 = vadd.f32 %v553, %v2024
      %v2040 = vadd.f32 %v554, %v2028
      %v2041 = vadd.f32 %v555, %v2030
      %v2042 = vadd.f32 %v556, %v2032
      %v2043 = vadd.f32 %v557, %v2034
      %v2044 = vld [vmem:[%s11] sm:$0x3]
      %v2045 = vld [vmem:[%s12] sm:$0x3]
      %v2046 = vadd.f32 %v2036, %v2037
      %2047 = vadd.xlane.f32.xlu0 %v2046
      %v2048 = vpop.xlane.xlu0 %2047
      %v2049 = vadd.f32 %v2038, %v2039
      %2050 = vadd.xlane.f32.xlu0 %v2049
      %v2051 = vpop.xlane.xlu0 %2050
      %v2052 = vadd.f32 %v2040, %v2041
      %2053 = vadd.xlane.f32.xlu0 %v2052
      %v2054 = vpop.xlane.xlu0 %2053
      %v2055 = vadd.f32 %v2042, %v2043
      %2056 = vadd.xlane.f32.xlu0 %v2055
      %v2057 = vpop.xlane.xlu0 %2056
      %v2058 = vmul.f32 %v2048, %v572
      %v2059 = vmul.f32 %v2051, %v572
      %v2060 = vmul.f32 %v2054, %v572
      %v2061 = vmul.f32 %v2057, %v572
      %v2062 = vsub.f32 %v2036, %v2058
      %v2063 = vsub.f32 %v2037, %v2058
      %v2064 = vsub.f32 %v2038, %v2059
      %v2065 = vsub.f32 %v2039, %v2059
      %v2066 = vsub.f32 %v2040, %v2060
      %v2067 = vsub.f32 %v2041, %v2060
      %v2068 = vsub.f32 %v2042, %v2061
      %v2069 = vsub.f32 %v2043, %v2061
      %v2070 = vmul.f32 %v2062, %v2062
      %v2071 = vmul.f32 %v2063, %v2063
      %v2072 = vmul.f32 %v2064, %v2064
      %v2073 = vmul.f32 %v2065, %v2065
      %v2074 = vmul.f32 %v2066, %v2066
      %v2075 = vmul.f32 %v2067, %v2067
      %v2076 = vmul.f32 %v2068, %v2068
      %v2077 = vmul.f32 %v2069, %v2069
      %v2078 = vadd.f32 %v2070, %v2071
      %2079 = vadd.xlane.f32.xlu0 %v2078
      %v2080 = vpop.xlane.xlu0 %2079
      %v2081 = vadd.f32 %v2072, %v2073
      %2082 = vadd.xlane.f32.xlu0 %v2081
      %v2083 = vpop.xlane.xlu0 %2082
      %v2084 = vadd.f32 %v2074, %v2075
      %2085 = vadd.xlane.f32.xlu0 %v2084
      %v2086 = vpop.xlane.xlu0 %2085
      %v2087 = vadd.f32 %v2076, %v2077
      %2088 = vadd.xlane.f32.xlu0 %v2087
      %v2089 = vpop.xlane.xlu0 %2088
      %v2090 = vmul.f32 %v2080, %v572
      %v2091 = vmul.f32 %v2083, %v572
      %v2092 = vmul.f32 %v2086, %v572
      %v2093 = vmul.f32 %v2089, %v572
      %v2094 = vadd.f32 %v2090, 1e-05
      %v2095 = vadd.f32 %v2091, 1e-05
      %v2096 = vadd.f32 %v2092, 1e-05
      %v2097 = vadd.f32 %v2093, 1e-05
      %v2098 = vrsqrt.pop %v2094
      %v2099 = vrsqrt.pop %v2095
      %v2100 = vrsqrt.pop %v2096
      %v2101 = vrsqrt.pop %v2097
      %v2102 = vmul.f32 %v2062, %v2098
      %v2103 = vmul.f32 %v2063, %v2098
      %v2104 = vmul.f32 %v2064, %v2099
      %v2105 = vmul.f32 %v2065, %v2099
      %v2106 = vmul.f32 %v2066, %v2100
      %v2107 = vmul.f32 %v2067, %v2100
      %v2108 = vmul.f32 %v2068, %v2101
      %v2109 = vmul.f32 %v2069, %v2101
      %v2111 = vlaneseq
      %v2112 = vshrl.u32 %v2111, 7
      %v2113 = vsub.s32 0, %v2112
      %v2114 = vrot.slane %v2044, %v2113
      %v2115 = vlaneseq
      %v2116 = vshrl.u32 %v2115, 7
      %v2117 = vsub.s32 1, %v2116
      %v2118 = vrot.slane %v2044, %v2117
      %v2121 = vmul.f32 %v2102, %v2114
      %v2122 = vmul.f32 %v2103, %v2118
      %v2123 = vmul.f32 %v2104, %v2114
      %v2124 = vmul.f32 %v2105, %v2118
      %v2125 = vmul.f32 %v2106, %v2114
      %v2126 = vmul.f32 %v2107, %v2118
      %v2127 = vmul.f32 %v2108, %v2114
      %v2128 = vmul.f32 %v2109, %v2118
      %v2130 = vlaneseq
      %v2131 = vshrl.u32 %v2130, 7
      %v2132 = vsub.s32 0, %v2131
      %v2133 = vrot.slane %v2045, %v2132
      %v2134 = vlaneseq
      %v2135 = vshrl.u32 %v2134, 7
      %v2136 = vsub.s32 1, %v2135
      %v2137 = vrot.slane %v2045, %v2136
      %v2140 = vadd.f32 %v2121, %v2133
      %v2141 = vadd.f32 %v2122, %v2137
      %v2142 = vadd.f32 %v2123, %v2133
      %v2143 = vadd.f32 %v2124, %v2137
      %v2144 = vadd.f32 %v2125, %v2133
      %v2145 = vadd.f32 %v2126, %v2137
      %v2146 = vadd.f32 %v2127, %v2133
      %v2147 = vadd.f32 %v2128, %v2137
      %v2148 = vpack.c.bf16 %v2142, %v2140
      %v2149 = vpack.c.bf16 %v2143, %v2141
      %v2150 = vpack.c.bf16 %v2146, %v2144
      %v2151 = vpack.c.bf16 %v2147, %v2145
      %v2152 = vld [vmem:[%s13] sm:$0xff]
      %v2153 = vld [vmem:[%s13 + $0x8] sm:$0xff]
      %v2154 = vld [vmem:[%s13 + $0x10] sm:$0xff]
      %v2155 = vld [vmem:[%s13 + $0x18] sm:$0xff]
      %v2156 = vld [vmem:[%s13 + $0x20] sm:$0xff]
      %v2157 = vld [vmem:[%s13 + $0x28] sm:$0xff]
      %v2158 = vld [vmem:[%s13 + $0x30] sm:$0xff]
      %v2159 = vld [vmem:[%s13 + $0x38] sm:$0xff]
      %v2160 = vld [vmem:[%s13 + $0x40] sm:$0xff]
      %v2161 = vld [vmem:[%s13 + $0x48] sm:$0xff]
      %v2162 = vld [vmem:[%s13 + $0x50] sm:$0xff]
      %v2163 = vld [vmem:[%s13 + $0x58] sm:$0xff]
      %v2164 = vld [vmem:[%s13 + $0x60] sm:$0xff]
      %v2165 = vld [vmem:[%s13 + $0x68] sm:$0xff]
      %v2166 = vld [vmem:[%s13 + $0x70] sm:$0xff]
      %v2167 = vld [vmem:[%s13 + $0x78] sm:$0xff]
      %v2168 = vld [vmem:[%s13 + $0x80] sm:$0xff]
      %v2169 = vld [vmem:[%s13 + $0x88] sm:$0xff]
      %v2170 = vld [vmem:[%s13 + $0x90] sm:$0xff]
      %v2171 = vld [vmem:[%s13 + $0x98] sm:$0xff]
      %v2172 = vld [vmem:[%s13 + $0xa0] sm:$0xff]
      %v2173 = vld [vmem:[%s13 + $0xa8] sm:$0xff]
      %v2174 = vld [vmem:[%s13 + $0xb0] sm:$0xff]
      %v2175 = vld [vmem:[%s13 + $0xb8] sm:$0xff]
      %v2176 = vld [vmem:[%s13 + $0xc0] sm:$0xff]
      %v2177 = vld [vmem:[%s13 + $0xc8] sm:$0xff]
      %v2178 = vld [vmem:[%s13 + $0xd0] sm:$0xff]
      %v2179 = vld [vmem:[%s13 + $0xd8] sm:$0xff]
      %v2180 = vld [vmem:[%s13 + $0xe0] sm:$0xff]
      %v2181 = vld [vmem:[%s13 + $0xe8] sm:$0xff]
      %v2182 = vld [vmem:[%s13 + $0xf0] sm:$0xff]
      %v2183 = vld [vmem:[%s13 + $0xf8] sm:$0xff]
      %v2184 = vld [vmem:[%s14] sm:$0x3]
      %v2186 = vlaneseq
      %v2187 = vshrl.u32 %v2186, 7
      %v2188 = vsub.s32 0, %v2187
      %v2189 = vrot.slane %v2184, %v2188
      %v2190 = vlaneseq
      %v2191 = vshrl.u32 %v2190, 7
      %v2192 = vsub.s32 1, %v2191
      %v2193 = vrot.slane %v2184, %v2192
      %v2228 = vunpack.c.l.b16 %v2152
      %v2229 = vunpack.c.h.b16 %v2152
      %v2230 = vunpack.c.l.b16 %v2153
      %v2231 = vunpack.c.h.b16 %v2153
      %v2232 = vunpack.c.l.b16 %v2154
      %v2233 = vunpack.c.h.b16 %v2154
      %v2234 = vunpack.c.l.b16 %v2155
      %v2235 = vunpack.c.h.b16 %v2155
      %v2236 = vunpack.c.l.b16 %v2156
      %v2237 = vunpack.c.h.b16 %v2156
      %v2238 = vunpack.c.l.b16 %v2157
      %v2239 = vunpack.c.h.b16 %v2157
      %v2240 = vunpack.c.l.b16 %v2158
      %v2241 = vunpack.c.h.b16 %v2158
      %v2242 = vunpack.c.l.b16 %v2159
      %v2243 = vunpack.c.h.b16 %v2159
      %v2244 = vunpack.c.l.b16 %v2160
      %v2245 = vunpack.c.h.b16 %v2160
      %v2246 = vunpack.c.l.b16 %v2161
      %v2247 = vunpack.c.h.b16 %v2161
      %v2248 = vunpack.c.l.b16 %v2162
      %v2249 = vunpack.c.h.b16 %v2162
      %v2250 = vunpack.c.l.b16 %v2163
      %v2251 = vunpack.c.h.b16 %v2163
      %v2252 = vunpack.c.l.b16 %v2164
      %v2253 = vunpack.c.h.b16 %v2164
      %v2254 = vunpack.c.l.b16 %v2165
      %v2255 = vunpack.c.h.b16 %v2165
      %v2256 = vunpack.c.l.b16 %v2166
      %v2257 = vunpack.c.h.b16 %v2166
      %v2258 = vunpack.c.l.b16 %v2167
      %v2259 = vunpack.c.h.b16 %v2167
      %v2260 = vunpack.c.l.b16 %v2168
      %v2261 = vunpack.c.h.b16 %v2168
      %v2262 = vunpack.c.l.b16 %v2169
      %v2263 = vunpack.c.h.b16 %v2169
      %v2264 = vunpack.c.l.b16 %v2170
      %v2265 = vunpack.c.h.b16 %v2170
      %v2266 = vunpack.c.l.b16 %v2171
      %v2267 = vunpack.c.h.b16 %v2171
      %v2268 = vunpack.c.l.b16 %v2172
      %v2269 = vunpack.c.h.b16 %v2172
      %v2270 = vunpack.c.l.b16 %v2173
      %v2271 = vunpack.c.h.b16 %v2173
      %v2272 = vunpack.c.l.b16 %v2174
      %v2273 = vunpack.c.h.b16 %v2174
      %v2274 = vunpack.c.l.b16 %v2175
      %v2275 = vunpack.c.h.b16 %v2175
      %v2276 = vunpack.c.l.b16 %v2176
      %v2277 = vunpack.c.h.b16 %v2176
      %v2278 = vunpack.c.l.b16 %v2177
      %v2279 = vunpack.c.h.b16 %v2177
      %v2280 = vunpack.c.l.b16 %v2178
      %v2281 = vunpack.c.h.b16 %v2178
      %v2282 = vunpack.c.l.b16 %v2179
      %v2283 = vunpack.c.h.b16 %v2179
      %v2284 = vunpack.c.l.b16 %v2180
      %v2285 = vunpack.c.h.b16 %v2180
      %v2286 = vunpack.c.l.b16 %v2181
      %v2287 = vunpack.c.h.b16 %v2181
      %v2288 = vunpack.c.l.b16 %v2182
      %v2289 = vunpack.c.h.b16 %v2182
      %v2290 = vunpack.c.l.b16 %v2183
      %v2291 = vunpack.c.h.b16 %v2183
      %v2292 = vpack.c.b16 %v2230, %v2228
      %v2293 = vpack.c.b16 %v2231, %v2229
      %v2294 = vpack.c.b16 %v2234, %v2232
      %v2295 = vpack.c.b16 %v2235, %v2233
      %v2296 = vpack.c.b16 %v2238, %v2236
      %v2297 = vpack.c.b16 %v2239, %v2237
      %v2298 = vpack.c.b16 %v2242, %v2240
      %v2299 = vpack.c.b16 %v2243, %v2241
      %v2300 = vpack.c.b16 %v2246, %v2244
      %v2301 = vpack.c.b16 %v2247, %v2245
      %v2302 = vpack.c.b16 %v2250, %v2248
      %v2303 = vpack.c.b16 %v2251, %v2249
      %v2304 = vpack.c.b16 %v2254, %v2252
      %v2305 = vpack.c.b16 %v2255, %v2253
      %v2306 = vpack.c.b16 %v2258, %v2256
      %v2307 = vpack.c.b16 %v2259, %v2257
      %v2308 = vpack.c.b16 %v2262, %v2260
      %v2309 = vpack.c.b16 %v2263, %v2261
      %v2310 = vpack.c.b16 %v2266, %v2264
      %v2311 = vpack.c.b16 %v2267, %v2265
      %v2312 = vpack.c.b16 %v2270, %v2268
      %v2313 = vpack.c.b16 %v2271, %v2269
      %v2314 = vpack.c.b16 %v2274, %v2272
      %v2315 = vpack.c.b16 %v2275, %v2273
      %v2316 = vpack.c.b16 %v2278, %v2276
      %v2317 = vpack.c.b16 %v2279, %v2277
      %v2318 = vpack.c.b16 %v2282, %v2280
      %v2319 = vpack.c.b16 %v2283, %v2281
      %v2320 = vpack.c.b16 %v2286, %v2284
      %v2321 = vpack.c.b16 %v2287, %v2285
      %v2322 = vpack.c.b16 %v2290, %v2288
      %v2323 = vpack.c.b16 %v2291, %v2289
      %2356 = vmatprep.subr.bf16.mxu0 %v2293
      %2357 = vmatpush1.bf16.msra.mxu0 %v2292
      %2358 = vmatprep.subr.bf16.mxu0 %v2295
      %2359 = vmatpush1.bf16.msra.mxu0 %v2294
      %2360 = vmatprep.subr.bf16.mxu0 %v2297
      %2361 = vmatpush1.bf16.msra.mxu0 %v2296
      %2362 = vmatprep.subr.bf16.mxu0 %v2299
      %2363 = vmatpush1.bf16.msra.mxu0 %v2298
      %2364 = vmatprep.subr.bf16.mxu0 %v2301
      %2365 = vmatpush1.bf16.msra.mxu0 %v2300
      %2366 = vmatprep.subr.bf16.mxu0 %v2303
      %2367 = vmatpush1.bf16.msra.mxu0 %v2302
      %2368 = vmatprep.subr.bf16.mxu0 %v2305
      %2369 = vmatpush1.bf16.msra.mxu0 %v2304
      %2370 = vmatprep.subr.bf16.mxu0 %v2307
      %2371 = vmatpush1.bf16.msra.mxu0 %v2306
      %2372 = vmatprep.subr.bf16.mxu0 %v2309
      %2373 = vmatpush1.bf16.msra.mxu0 %v2308
      %2374 = vmatprep.subr.bf16.mxu0 %v2311
      %2375 = vmatpush1.bf16.msra.mxu0 %v2310
      %2376 = vmatprep.subr.bf16.mxu0 %v2313
      %2377 = vmatpush1.bf16.msra.mxu0 %v2312
      %2378 = vmatprep.subr.bf16.mxu0 %v2315
      %2379 = vmatpush1.bf16.msra.mxu0 %v2314
      %2380 = vmatprep.subr.bf16.mxu0 %v2317
      %2381 = vmatpush1.bf16.msra.mxu0 %v2316
      %2382 = vmatprep.subr.bf16.mxu0 %v2319
      %2383 = vmatpush1.bf16.msra.mxu0 %v2318
      %2384 = vmatprep.subr.bf16.mxu0 %v2321
      %2385 = vmatpush1.bf16.msra.mxu0 %v2320
      %2386 = vmatprep.subr.bf16.mxu0 %v2323
      %2387 = vmatpush1.bf16.msra.mxu0 %v2322
      %2388 = vmatprep.mubr.bf16.mxu0 %v2149
      %2389 = vmatmul.mubr.bf16.gmra.mrb[0].mxu0 %v2148
      %v2390 = vpop.f32.mrb[0].mxu0
      %v2391 = vadd.f32 %v2189, %v2390
      %v2392 = vpop.f32.mrb[0].mxu0
      %v2393 = vadd.f32 %v2193, %v2392
      %v2394 = vpop.f32.mrb[0].mxu0
      %v2395 = vadd.f32 %v2189, %v2394
      %v2396 = vpop.f32.mrb[0].mxu0
      %v2397 = vadd.f32 %v2193, %v2396
      %2398 = vmatprep.mubr.bf16.mxu0 %v2151
      %2399 = vmatmul.mubr.bf16.gmra.mrb[0].mxu0 %v2150
      %v2400 = vpop.f32.mrb[0].mxu0
      %v2401 = vadd.f32 %v2189, %v2400
      %v2402 = vpop.f32.mrb[0].mxu0
      %v2403 = vadd.f32 %v2193, %v2402
      %v2404 = vpop.f32.mrb[0].mxu0
      %v2405 = vadd.f32 %v2189, %v2404
      %v2406 = vpop.f32.mrb[0].mxu0
      %v2407 = vadd.f32 %v2193, %v2406
      %2408 = vdwg.mxu0
      %v2409 = vmul.f32 %v2391, 0.5
      %v2410 = vmul.f32 %v2393, 0.5
      %v2411 = vmul.f32 %v2395, 0.5
      %v2412 = vmul.f32 %v2397, 0.5
      %v2413 = vmul.f32 %v2401, 0.5
      %v2414 = vmul.f32 %v2403, 0.5
      %v2415 = vmul.f32 %v2405, 0.5
      %v2416 = vmul.f32 %v2407, 0.5
      %v2417 = vmul.f32 %v2391, %v2391
      %v2418 = vmul.f32 %v2393, %v2393
      %v2419 = vmul.f32 %v2395, %v2395
      %v2420 = vmul.f32 %v2397, %v2397
      %v2421 = vmul.f32 %v2401, %v2401
      %v2422 = vmul.f32 %v2403, %v2403
      %v2423 = vmul.f32 %v2405, %v2405
      %v2424 = vmul.f32 %v2407, %v2407
      %v2425 = vmul.f32 %v2417, %v2391
      %v2426 = vmul.f32 %v2418, %v2393
      %v2427 = vmul.f32 %v2419, %v2395
      %v2428 = vmul.f32 %v2420, %v2397
      %v2429 = vmul.f32 %v2421, %v2401
      %v2430 = vmul.f32 %v2422, %v2403
      %v2431 = vmul.f32 %v2423, %v2405
      %v2432 = vmul.f32 %v2424, %v2407
      %v2433 = vmul.f32 %v2425, 0.044715
      %v2434 = vmul.f32 %v2426, 0.044715
      %v2435 = vmul.f32 %v2427, 0.044715
      %v2436 = vmul.f32 %v2428, 0.044715
      %v2437 = vmul.f32 %v2429, 0.044715
      %v2438 = vmul.f32 %v2430, 0.044715
      %v2439 = vmul.f32 %v2431, 0.044715
      %v2440 = vmul.f32 %v2432, 0.044715
      %v2441 = vadd.f32 %v2391, %v2433
      %v2442 = vadd.f32 %v2393, %v2434
      %v2443 = vadd.f32 %v2395, %v2435
      %v2444 = vadd.f32 %v2397, %v2436
      %v2445 = vadd.f32 %v2401, %v2437
      %v2446 = vadd.f32 %v2403, %v2438
      %v2447 = vadd.f32 %v2405, %v2439
      %v2448 = vadd.f32 %v2407, %v2440
      %v2449 = vmul.f32 %v2441, 0.7978846
      %v2450 = vmul.f32 %v2442, 0.7978846
      %v2451 = vmul.f32 %v2443, 0.7978846
      %v2452 = vmul.f32 %v2444, 0.7978846
      %v2453 = vmul.f32 %v2445, 0.7978846
      %v2454 = vmul.f32 %v2446, 0.7978846
      %v2455 = vmul.f32 %v2447, 0.7978846
      %v2456 = vmul.f32 %v2448, 0.7978846
      %v2457 = vtanh.pop %v2449
      %v2458 = vtanh.pop %v2450
      %v2459 = vtanh.pop %v2451
      %v2460 = vtanh.pop %v2452
      %v2461 = vtanh.pop %v2453
      %v2462 = vtanh.pop %v2454
      %v2463 = vtanh.pop %v2455
      %v2464 = vtanh.pop %v2456
      %v2465 = vadd.f32 %v2457, 1.0
      %v2466 = vadd.f32 %v2458, 1.0
      %v2467 = vadd.f32 %v2459, 1.0
      %v2468 = vadd.f32 %v2460, 1.0
      %v2469 = vadd.f32 %v2461, 1.0
      %v2470 = vadd.f32 %v2462, 1.0
      %v2471 = vadd.f32 %v2463, 1.0
      %v2472 = vadd.f32 %v2464, 1.0
      %v2473 = vmul.f32 %v2409, %v2465
      %v2474 = vmul.f32 %v2410, %v2466
      %v2475 = vmul.f32 %v2411, %v2467
      %v2476 = vmul.f32 %v2412, %v2468
      %v2477 = vmul.f32 %v2413, %v2469
      %v2478 = vmul.f32 %v2414, %v2470
      %v2479 = vmul.f32 %v2415, %v2471
      %v2480 = vmul.f32 %v2416, %v2472
      %v2481 = vpack.c.bf16 %v2475, %v2473
      %v2482 = vpack.c.bf16 %v2476, %v2474
      %v2483 = vpack.c.bf16 %v2479, %v2477
      %v2484 = vpack.c.bf16 %v2480, %v2478
      %v2485 = vld [vmem:[%s15] sm:$0xff]
      %v2486 = vld [vmem:[%s15 + $0x8] sm:$0xff]
      %v2487 = vld [vmem:[%s15 + $0x10] sm:$0xff]
      %v2488 = vld [vmem:[%s15 + $0x18] sm:$0xff]
      %v2489 = vld [vmem:[%s15 + $0x20] sm:$0xff]
      %v2490 = vld [vmem:[%s15 + $0x28] sm:$0xff]
      %v2491 = vld [vmem:[%s15 + $0x30] sm:$0xff]
      %v2492 = vld [vmem:[%s15 + $0x38] sm:$0xff]
      %v2493 = vld [vmem:[%s15 + $0x40] sm:$0xff]
      %v2494 = vld [vmem:[%s15 + $0x48] sm:$0xff]
      %v2495 = vld [vmem:[%s15 + $0x50] sm:$0xff]
      %v2496 = vld [vmem:[%s15 + $0x58] sm:$0xff]
      %v2497 = vld [vmem:[%s15 + $0x60] sm:$0xff]
      %v2498 = vld [vmem:[%s15 + $0x68] sm:$0xff]
      %v2499 = vld [vmem:[%s15 + $0x70] sm:$0xff]
      %v2500 = vld [vmem:[%s15 + $0x78] sm:$0xff]
      %v2501 = vld [vmem:[%s15 + $0x80] sm:$0xff]
      %v2502 = vld [vmem:[%s15 + $0x88] sm:$0xff]
      %v2503 = vld [vmem:[%s15 + $0x90] sm:$0xff]
      %v2504 = vld [vmem:[%s15 + $0x98] sm:$0xff]
      %v2505 = vld [vmem:[%s15 + $0xa0] sm:$0xff]
      %v2506 = vld [vmem:[%s15 + $0xa8] sm:$0xff]
      %v2507 = vld [vmem:[%s15 + $0xb0] sm:$0xff]
      %v2508 = vld [vmem:[%s15 + $0xb8] sm:$0xff]
      %v2509 = vld [vmem:[%s15 + $0xc0] sm:$0xff]
      %v2510 = vld [vmem:[%s15 + $0xc8] sm:$0xff]
      %v2511 = vld [vmem:[%s15 + $0xd0] sm:$0xff]
      %v2512 = vld [vmem:[%s15 + $0xd8] sm:$0xff]
      %v2513 = vld [vmem:[%s15 + $0xe0] sm:$0xff]
      %v2514 = vld [vmem:[%s15 + $0xe8] sm:$0xff]
      %v2515 = vld [vmem:[%s15 + $0xf0] sm:$0xff]
      %v2516 = vld [vmem:[%s15 + $0xf8] sm:$0xff]
      %v2517 = vld [vmem:[%s16] sm:$0x3]
      %v2519 = vlaneseq
      %v2520 = vshrl.u32 %v2519, 7
      %v2521 = vsub.s32 0, %v2520
      %v2522 = vrot.slane %v2517, %v2521
      %v2523 = vlaneseq
      %v2524 = vshrl.u32 %v2523, 7
      %v2525 = vsub.s32 1, %v2524
      %v2526 = vrot.slane %v2517, %v2525
      %v2561 = vunpack.c.l.b16 %v2485
      %v2562 = vunpack.c.h.b16 %v2485
      %v2563 = vunpack.c.l.b16 %v2486
      %v2564 = vunpack.c.h.b16 %v2486
      %v2565 = vunpack.c.l.b16 %v2487
      %v2566 = vunpack.c.h.b16 %v2487
      %v2567 = vunpack.c.l.b16 %v2488
      %v2568 = vunpack.c.h.b16 %v2488
      %v2569 = vunpack.c.l.b16 %v2489
      %v2570 = vunpack.c.h.b16 %v2489
      %v2571 = vunpack.c.l.b16 %v2490
      %v2572 = vunpack.c.h.b16 %v2490
      %v2573 = vunpack.c.l.b16 %v2491
      %v2574 = vunpack.c.h.b16 %v2491
      %v2575 = vunpack.c.l.b16 %v2492
      %v2576 = vunpack.c.h.b16 %v2492
      %v2577 = vunpack.c.l.b16 %v2493
      %v2578 = vunpack.c.h.b16 %v2493
      %v2579 = vunpack.c.l.b16 %v2494
      %v2580 = vunpack.c.h.b16 %v2494
      %v2581 = vunpack.c.l.b16 %v2495
      %v2582 = vunpack.c.h.b16 %v2495
      %v2583 = vunpack.c.l.b16 %v2496
      %v2584 = vunpack.c.h.b16 %v2496
      %v2585 = vunpack.c.l.b16 %v2497
      %v2586 = vunpack.c.h.b16 %v2497
      %v2587 = vunpack.c.l.b16 %v2498
      %v2588 = vunpack.c.h.b16 %v2498
      %v2589 = vunpack.c.l.b16 %v2499
      %v2590 = vunpack.c.h.b16 %v2499
      %v2591 = vunpack.c.l.b16 %v2500
      %v2592 = vunpack.c.h.b16 %v2500
      %v2593 = vunpack.c.l.b16 %v2501
      %v2594 = vunpack.c.h.b16 %v2501
      %v2595 = vunpack.c.l.b16 %v2502
      %v2596 = vunpack.c.h.b16 %v2502
      %v2597 = vunpack.c.l.b16 %v2503
      %v2598 = vunpack.c.h.b16 %v2503
      %v2599 = vunpack.c.l.b16 %v2504
      %v2600 = vunpack.c.h.b16 %v2504
      %v2601 = vunpack.c.l.b16 %v2505
      %v2602 = vunpack.c.h.b16 %v2505
      %v2603 = vunpack.c.l.b16 %v2506
      %v2604 = vunpack.c.h.b16 %v2506
      %v2605 = vunpack.c.l.b16 %v2507
      %v2606 = vunpack.c.h.b16 %v2507
      %v2607 = vunpack.c.l.b16 %v2508
      %v2608 = vunpack.c.h.b16 %v2508
      %v2609 = vunpack.c.l.b16 %v2509
      %v2610 = vunpack.c.h.b16 %v2509
      %v2611 = vunpack.c.l.b16 %v2510
      %v2612 = vunpack.c.h.b16 %v2510
      %v2613 = vunpack.c.l.b16 %v2511
      %v2614 = vunpack.c.h.b16 %v2511
      %v2615 = vunpack.c.l.b16 %v2512
      %v2616 = vunpack.c.h.b16 %v2512
      %v2617 = vunpack.c.l.b16 %v2513
      %v2618 = vunpack.c.h.b16 %v2513
      %v2619 = vunpack.c.l.b16 %v2514
      %v2620 = vunpack.c.h.b16 %v2514
      %v2621 = vunpack.c.l.b16 %v2515
      %v2622 = vunpack.c.h.b16 %v2515
      %v2623 = vunpack.c.l.b16 %v2516
      %v2624 = vunpack.c.h.b16 %v2516
      %v2625 = vpack.c.b16 %v2563, %v2561
      %v2626 = vpack.c.b16 %v2564, %v2562
      %v2627 = vpack.c.b16 %v2567, %v2565
      %v2628 = vpack.c.b16 %v2568, %v2566
      %v2629 = vpack.c.b16 %v2571, %v2569
      %v2630 = vpack.c.b16 %v2572, %v2570
      %v2631 = vpack.c.b16 %v2575, %v2573
      %v2632 = vpack.c.b16 %v2576, %v2574
      %v2633 = vpack.c.b16 %v2579, %v2577
      %v2634 = vpack.c.b16 %v2580, %v2578
      %v2635 = vpack.c.b16 %v2583, %v2581
      %v2636 = vpack.c.b16 %v2584, %v2582
      %v2637 = vpack.c.b16 %v2587, %v2585
      %v2638 = vpack.c.b16 %v2588, %v2586
      %v2639 = vpack.c.b16 %v2591, %v2589
      %v2640 = vpack.c.b16 %v2592, %v2590
      %v2641 = vpack.c.b16 %v2595, %v2593
      %v2642 = vpack.c.b16 %v2596, %v2594
      %v2643 = vpack.c.b16 %v2599, %v2597
      %v2644 = vpack.c.b16 %v2600, %v2598
      %v2645 = vpack.c.b16 %v2603, %v2601
      %v2646 = vpack.c.b16 %v2604, %v2602
      %v2647 = vpack.c.b16 %v2607, %v2605
      %v2648 = vpack.c.b16 %v2608, %v2606
      %v2649 = vpack.c.b16 %v2611, %v2609
      %v2650 = vpack.c.b16 %v2612, %v2610
      %v2651 = vpack.c.b16 %v2615, %v2613
      %v2652 = vpack.c.b16 %v2616, %v2614
      %v2653 = vpack.c.b16 %v2619, %v2617
      %v2654 = vpack.c.b16 %v2620, %v2618
      %v2655 = vpack.c.b16 %v2623, %v2621
      %v2656 = vpack.c.b16 %v2624, %v2622
      %2689 = vmatprep.subr.bf16.mxu0 %v2626
      %2690 = vmatpush1.bf16.msra.mxu0 %v2625
      %2691 = vmatprep.subr.bf16.mxu0 %v2628
      %2692 = vmatpush1.bf16.msra.mxu0 %v2627
      %2693 = vmatprep.subr.bf16.mxu0 %v2630
      %2694 = vmatpush1.bf16.msra.mxu0 %v2629
      %2695 = vmatprep.subr.bf16.mxu0 %v2632
      %2696 = vmatpush1.bf16.msra.mxu0 %v2631
      %2697 = vmatprep.subr.bf16.mxu0 %v2634
      %2698 = vmatpush1.bf16.msra.mxu0 %v2633
      %2699 = vmatprep.subr.bf16.mxu0 %v2636
      %2700 = vmatpush1.bf16.msra.mxu0 %v2635
      %2701 = vmatprep.subr.bf16.mxu0 %v2638
      %2702 = vmatpush1.bf16.msra.mxu0 %v2637
      %2703 = vmatprep.subr.bf16.mxu0 %v2640
      %2704 = vmatpush1.bf16.msra.mxu0 %v2639
      %2705 = vmatprep.subr.bf16.mxu0 %v2642
      %2706 = vmatpush1.bf16.msra.mxu0 %v2641
      %2707 = vmatprep.subr.bf16.mxu0 %v2644
      %2708 = vmatpush1.bf16.msra.mxu0 %v2643
      %2709 = vmatprep.subr.bf16.mxu0 %v2646
      %2710 = vmatpush1.bf16.msra.mxu0 %v2645
      %2711 = vmatprep.subr.bf16.mxu0 %v2648
      %2712 = vmatpush1.bf16.msra.mxu0 %v2647
      %2713 = vmatprep.subr.bf16.mxu0 %v2650
      %2714 = vmatpush1.bf16.msra.mxu0 %v2649
      %2715 = vmatprep.subr.bf16.mxu0 %v2652
      %2716 = vmatpush1.bf16.msra.mxu0 %v2651
      %2717 = vmatprep.subr.bf16.mxu0 %v2654
      %2718 = vmatpush1.bf16.msra.mxu0 %v2653
      %2719 = vmatprep.subr.bf16.mxu0 %v2656
      %2720 = vmatpush1.bf16.msra.mxu0 %v2655
      %2721 = vmatprep.mubr.bf16.mxu0 %v2482
      %2722 = vmatmul.mubr.bf16.gmra.mrb[0].mxu0 %v2481
      %v2723 = vpop.f32.mrb[0].mxu0
      %v2724 = vadd.f32 %v2522, %v2723
      %v2725 = vpop.f32.mrb[0].mxu0
      %v2726 = vadd.f32 %v2526, %v2725
      %v2727 = vpop.f32.mrb[0].mxu0
      %v2728 = vadd.f32 %v2522, %v2727
      %v2729 = vpop.f32.mrb[0].mxu0
      %v2730 = vadd.f32 %v2526, %v2729
      %2731 = vmatprep.mubr.bf16.mxu0 %v2484
      %2732 = vmatmul.mubr.bf16.gmra.mrb[0].mxu0 %v2483
      %v2733 = vpop.f32.mrb[0].mxu0
      %v2734 = vadd.f32 %v2522, %v2733
      %v2735 = vpop.f32.mrb[0].mxu0
      %v2736 = vadd.f32 %v2526, %v2735
      %v2737 = vpop.f32.mrb[0].mxu0
      %v2738 = vadd.f32 %v2522, %v2737
      %v2739 = vpop.f32.mrb[0].mxu0
      %v2740 = vadd.f32 %v2526, %v2739
      %2741 = vdwg.mxu0
      %v2742 = vadd.f32 %v2036, %v2724
      %v2743 = vadd.f32 %v2037, %v2726
      %v2744 = vadd.f32 %v2038, %v2728
      %v2745 = vadd.f32 %v2039, %v2730
      %v2746 = vadd.f32 %v2040, %v2734
      %v2747 = vadd.f32 %v2041, %v2736
      %v2748 = vadd.f32 %v2042, %v2738
      %v2749 = vadd.f32 %v2043, %v2740
      %2750 = vst [vmem:[%s548] sm:$0xff] %v2742
      %2751 = vst [vmem:[%s548 + $0x8] sm:$0xff] %v2743
      %2752 = vst [vmem:[%s548 + $0x10] sm:$0xff] %v2744
      %2753 = vst [vmem:[%s548 + $0x18] sm:$0xff] %v2745
      %2754 = vst [vmem:[%s548 + $0x20] sm:$0xff] %v2746
      %2755 = vst [vmem:[%s548 + $0x28] sm:$0xff] %v2747
      %2756 = vst [vmem:[%s548 + $0x30] sm:$0xff] %v2748
      %2757 = vst [vmem:[%s548 + $0x38] sm:$0xff] %v2749
      %p2758 = scmp.lt.s32.totalorder %s28, 1
      %s2759 = scalar_select %p2758, %s28, 1
      %s2760 = smul.addr %s2759, 8
      %s2761 = smul.addr %s2760, 8
      %s2762 = scalar_lea.vmem %s17, %s2761
      // Predicated region
      $region89: #{_lambda_.3} parent=87 // pred_check
        %p2763 = pneg %p408
      $region90: #{_lambda_.3} parent=87 // pred_check_branch
        %2765 = sbr.rel (%p2763) target = $region92
      $region91: #{_lambda_.3} parent=87 // pred_region
        _
      $region92: #{_lambda_.3} parent=87 // pred_fallthru
        _
    $region88: #{_lambda_.3} parent=5 // pred_fallthru
      _
    %p2766 = scmp.le.s32.totalorder 2, %s23
    // Predicated region
    $region93: #{_lambda_.3} parent=5 // pred_check
      %p2767 = pneg %p2766
    $region94: #{_lambda_.3} parent=5 // pred_check_branch
      %2769 = sbr.rel (%p2767) target = $region96
    $region95: #{_lambda_.3} parent=5 // pred_region
      %s2770 = ssub.s32 %s23, 2
      // Predicated region
      $region97: #{_lambda_.3} parent=95 // pred_check
        %p2771 = pneg %p414
      $region98: #{_lambda_.3} parent=95 // pred_check_branch
        %2773 = sbr.rel (%p2771) target = $region100
      $region99: #{_lambda_.3} parent=95 // pred_region
        %p2774 = scmp.lt.s32.totalorder %s29, 1
        %s2775 = scalar_select %p2774, %s29, 1
        %s2776 = smul.addr %s2775, 8
        %s2777 = smul.addr %s2776, 8
        %s2778 = scalar_lea.vmem %s17, %s2777
      $region100: #{_lambda_.3} parent=95 // pred_fallthru
        _
    $region96: #{_lambda_.3} parent=5 // pred_fallthru
      _
  $region6: #{_lambda_.3} parent=0 // loop_footer
    %s27 = sadd.s32 1, %s23
  $region7: #{_lambda_.3} parent=0 // loop_footer_branch
    %22 = sbr.rel target = $region3
  $region8: #{_lambda_.3} parent=0 // loop_exit
    _

// kernel: _lambda_.5
$region0: #{_lambda_.5}
  #allocation0 [shape = 'u32[]', space=smem, size = 0x4, offset = 0x4, fixed_abs, tag = 'smem constant byte address 0x4 - core index']
  #allocation1 [shape = 'u32[144,128]{1,0:T(1,128)}', space=vmem, size = 0x12000, scoped, tag = 'internal scratch']
  %s0 = inlined_call_operand.vmem [shape: f32[2,256], index: 0, kind: input, shape index: {}]
  %s1 = inlined_call_operand.vmem [shape: f32[1,256], index: 1, kind: input, shape index: {}]
  %s2 = inlined_call_operand.vmem [shape: f32[1,256], index: 2, kind: input, shape index: {}]
  %s3 = inlined_call_operand.hbm [shape: f32[2,256], index: 3, kind: output, shape index: {}]
  %s4 = sld [smem:[#allocation0]]
  $region22: #{_lambda_.5} parent=0
    _
  %s6 = ssub.s32 1, %s4
  %s7 = scalar_select 0, %s6, %s4
  $region1: #{_lambda_.5} parent=0
    #allocation2 [shape = 'u8[2048]{0}', space=vmem, size = 0x800, scoped, tag = 'output window, operand 0, single buffered']
    #allocation3 [shape = 's32[1]{0}', space=sflag, size = 0x4, scoped, tag = 'scoped memory for _lambda_.5']
    %8 = vsyncpa [#allocation3], 0
    // Predicated region
    $region2: #{_lambda_.5} parent=1 // pred_check
      _
    $region3: #{_lambda_.5} parent=1 // pred_check_branch
      %10 = sbr.rel (0) target = $region5
    $region4: #{_lambda_.5} parent=1 // pred_region
      _
    $region5: #{_lambda_.5} parent=1 // pred_fallthru
      _
    // Predicated region
    $region6: #{_lambda_.5} parent=1 // pred_check
      _
    $region7: #{_lambda_.5} parent=1 // pred_check_branch
      %12 = sbr.rel (0) target = $region9
    $region8: #{_lambda_.5} parent=1 // pred_region
      _
    $region9: #{_lambda_.5} parent=1 // pred_fallthru
      _
    // Predicated region
    $region10: #{_lambda_.5} parent=1 // pred_check
      _
    $region11: #{_lambda_.5} parent=1 // pred_check_branch
      %14 = sbr.rel (0) target = $region13
    $region12: #{_lambda_.5} parent=1 // pred_region
      _
    $region13: #{_lambda_.5} parent=1 // pred_fallthru
      _
    %v15 = vld [vmem:[%s0] sm:$0xf]
    %v16 = vld [vmem:[%s1] sm:$0x3]
    %v17 = vld [vmem:[%s2] sm:$0x3]
    %v20 = vunpack.c.l.s4 1983009808
    %v21 = vunpack.c.0.s8 %v20
    %v22 = vlaneseq
    %v23 = vshrl.u32 %v22, 7
    %v24 = vsub.s32 %v21, %v23
    %v25 = vrot.slane %v15, %v24
    %v26 = vcombine.high %v25, %v25
    %vm29 = vcmask 1041408
    %v30 = vsel %vm29, %v25, 0.0
    %v31 = vsel %vm29, %v26, 0.0
    %v32 = vadd.f32 %v30, %v31
    %33 = vadd.xlane.f32.xlu0 %v32
    %v34 = vpop.xlane.xlu0 %33
    %v35 = vrcp.pop 256.0
    %v36 = vmul.f32 %v34, %v35
    %v39 = vunpack.c.l.s4 269488144
    %v40 = vunpack.c.0.s8 %v39
    %v41 = vlaneseq
    %v42 = vshrl.u32 %v41, 7
    %v43 = vsub.s32 %v40, %v42
    %v44 = vrot.slane %v36, %v43
    %v46 = vsub.f32 %v15, %v44
    %v47 = vmul.f32 %v46, %v46
    %v50 = vunpack.c.l.s4 1983009808
    %v51 = vunpack.c.0.s8 %v50
    %v52 = vlaneseq
    %v53 = vshrl.u32 %v52, 7
    %v54 = vsub.s32 %v51, %v53
    %v55 = vrot.slane %v47, %v54
    %v56 = vcombine.high %v55, %v55
    %v59 = vsel %vm29, %v55, 0.0
    %v60 = vsel %vm29, %v56, 0.0
    %v61 = vadd.f32 %v59, %v60
    %62 = vadd.xlane.f32.xlu0 %v61
    %v63 = vpop.xlane.xlu0 %62
    %v64 = vmul.f32 %v63, %v35
    %v65 = vadd.f32 %v64, 1e-05
    %v66 = vrsqrt.pop %v65
    %v69 = vunpack.c.l.s4 269488144
    %v70 = vunpack.c.0.s8 %v69
    %v71 = vlaneseq
    %v72 = vshrl.u32 %v71, 7
    %v73 = vsub.s32 %v70, %v72
    %v74 = vrot.slane %v66, %v73
    %v76 = vmul.f32 %v46, %v74
    %v78 = vlaneseq
    %v79 = vshrl.u32 %v78, 7
    %v80 = vsub.s32 0, %v79
    %v81 = vrot.slane %v16, %v80
    %v82 = vlaneseq
    %v83 = vshrl.u32 %v82, 7
    %v84 = vsub.s32 1, %v83
    %v85 = vrot.slane %v16, %v84
    %v86 = vcombine.low %v81, %v85
    %v88 = vunpack.c.l.s4 1983009808
    %v89 = vunpack.c.0.s8 %v88
    %v90 = vlaneseq
    %v91 = vshrl.u32 %v90, 7
    %v92 = vsub.s32 %v89, %v91
    %v93 = vrot.slane %v86, %v92
    %v95 = vmul.f32 %v76, %v93
    %v97 = vlaneseq
    %v98 = vshrl.u32 %v97, 7
    %v99 = vsub.s32 0, %v98
    %v100 = vrot.slane %v17, %v99
    %v101 = vlaneseq
    %v102 = vshrl.u32 %v101, 7
    %v103 = vsub.s32 1, %v102
    %v104 = vrot.slane %v17, %v103
    %v105 = vcombine.low %v100, %v104
    %v107 = vunpack.c.l.s4 1983009808
    %v108 = vunpack.c.0.s8 %v107
    %v109 = vlaneseq
    %v110 = vshrl.u32 %v109, 7
    %v111 = vsub.s32 %v108, %v110
    %v112 = vrot.slane %v105, %v111
    %v114 = vadd.f32 %v95, %v112
    %115 = vst [vmem:[#allocation2] sm:$0xf] %v114
    // Predicated region
    $region14: #{_lambda_.5} parent=1 // pred_check
      _
    $region15: #{_lambda_.5} parent=1 // pred_check_branch
      %117 = sbr.rel (0) target = $region17
    $region16: #{_lambda_.5} parent=1 // pred_region
      %s119 = ssub.s32 64, 64
      %120 = vsyncadd [#allocation3], %s119
      %s122 = sshll.u32 [#allocation2], 4
      %s123 = int_to_ptr.vmem [resolvable:$true] %s122
      %125 = dma.vmem_to_hbm [thread:$0]  %s123, 64, %s3, [#allocation3]
    $region17: #{_lambda_.5} parent=1 // pred_fallthru
      _
    // Predicated region
    $region18: #{_lambda_.5} parent=1 // pred_check
      _
    $region19: #{_lambda_.5} parent=1 // pred_check_branch
      %127 = sbr.rel (0) target = $region21
    $region20: #{_lambda_.5} parent=1 // pred_region
      %128 = dma.done [#allocation3], 64
    $region21: #{_lambda_.5} parent=1 // pred_fallthru
      _
    %129 = vsyncpa [#allocation3], 1

// kernel: _lambda_.3
$region0: #{_lambda_.3}
  #allocation0 [shape = 'u32[]', space=smem, size = 0x4, offset = 0x4, fixed_abs, tag = 'smem constant byte address 0x4 - core index']
  #allocation1 [shape = 'u32[144,128]{1,0:T(1,128)}', space=vmem, size = 0x12000, scoped, tag = 'internal scratch']
  #allocation2 [shape = 'f32[32,256]{1,0:T(8,128)}', space=vmem, size = 0x8000, scoped, tag = 'scratch operand']
  %s0 = inlined_call_operand.vmem [shape: f32[2,32,256], index: 0, kind: input, shape index: {}]
  %s1 = inlined_call_operand.vmem [shape: f32[1,256], index: 1, kind: input, shape index: {}]
  %s2 = inlined_call_operand.vmem [shape: f32[1,256], index: 2, kind: input, shape index: {}]
  %s3 = inlined_call_operand.vmem [shape: bf16[256,256], index: 3, kind: input, shape index: {}]
  %s4 = inlined_call_operand.vmem [shape: bf16[256,256], index: 4, kind: input, shape index: {}]
  %s5 = inlined_call_operand.vmem [shape: bf16[256,256], index: 5, kind: input, shape index: {}]
  %s6 = inlined_call_operand.vmem [shape: f32[1,256], index: 6, kind: input, shape index: {}]
  %s7 = inlined_call_operand.vmem [shape: f32[1,256], index: 7, kind: input, shape index: {}]
  %s8 = inlined_call_operand.vmem [shape: f32[1,256], index: 8, kind: input, shape index: {}]
  %s9 = inlined_call_operand.vmem [shape: bf16[256,256], index: 9, kind: input, shape index: {}]
  %s10 = inlined_call_operand.vmem [shape: f32[1,256], index: 10, kind: input, shape index: {}]
  %s11 = inlined_call_operand.vmem [shape: f32[1,256], index: 11, kind: input, shape index: {}]
  %s12 = inlined_call_operand.vmem [shape: f32[1,256], index: 12, kind: input, shape index: {}]
  %s13 = inlined_call_operand.vmem [shape: bf16[256,256], index: 13, kind: input, shape index: {}]
  %s14 = inlined_call_operand.vmem [shape: f32[1,256], index: 14, kind: input, shape index: {}]
  %s15 = inlined_call_operand.vmem [shape: bf16[256,256], index: 15, kind: input, shape index: {}]
  %s16 = inlined_call_operand.vmem [shape: f32[1,256], index: 16, kind: input, shape index: {}]
  %s17 = inlined_call_operand.vmem [shape: f32[2,32,256], index: 17, kind: output, shape index: {}]
  %s18 = sld [smem:[#allocation0]]
  $region101: #{_lambda_.3} parent=0
    _
  %s20 = ssub.s32 1, %s18
  %s21 = scalar_select 0, %s20, %s18
  loop: start=0, step=1, limit=4
  $region2: #{_lambda_.3} parent=0 // loop_pre_header
    _
  $region3: #{_lambda_.3} parent=0 // loop_header
    %s23 = sphi 0, %s27
    %p24 = scmp.ge.s32.totalorder %s23, 4
    %s33 = sphi 0, %s35
    %s36 = sphi 0, %s33
    %s37 = sphi 0, %s36
    %s53 = sphi 0, %s37
    %s57 = sphi 0, %s57
    %s59 = sphi 0, %s57
    %s60 = sphi 0, %s59
    %s74 = sphi 0, %s60
    %s78 = sphi 0, %s78
    %s80 = sphi 0, %s78
    %s81 = sphi 0, %s80
    %s95 = sphi 0, %s81
    %s99 = sphi 0, %s99
    %s101 = sphi 0, %s99
    %s102 = sphi 0, %s101
    %s116 = sphi 0, %s102
    %s120 = sphi 0, %s120
    %s122 = sphi 0, %s120
    %s123 = sphi 0, %s122
    %s137 = sphi 0, %s123
    %s141 = sphi 0, %s141
    %s143 = sphi 0, %s141
    %s144 = sphi 0, %s143
    %s158 = sphi 0, %s144
    %s162 = sphi 0, %s162
    %s164 = sphi 0, %s162
    %s165 = sphi 0, %s164
    %s179 = sphi 0, %s165
    %s183 = sphi 0, %s183
    %s185 = sphi 0, %s183
    %s186 = sphi 0, %s185
    %s200 = sphi 0, %s186
    %s204 = sphi 0, %s204
    %s206 = sphi 0, %s204
    %s207 = sphi 0, %s206
    %s221 = sphi 0, %s207
    %s225 = sphi 0, %s225
    %s227 = sphi 0, %s225
    %s228 = sphi 0, %s227
    %s242 = sphi 0, %s228
    %s246 = sphi 0, %s246
    %s248 = sphi 0, %s246
    %s249 = sphi 0, %s248
    %s263 = sphi 0, %s249
    %s267 = sphi 0, %s267
    %s269 = sphi 0, %s267
    %s270 = sphi 0, %s269
    %s284 = sphi 0, %s270
    %s288 = sphi 0, %s288
    %s290 = sphi 0, %s288
    %s291 = sphi 0, %s290
    %s305 = sphi 0, %s291
    %s309 = sphi 0, %s309
    %s311 = sphi 0, %s309
    %s312 = sphi 0, %s311
    %s326 = sphi 0, %s312
    %s330 = sphi 0, %s330
    %s332 = sphi 0, %s330
    %s333 = sphi 0, %s332
    %s347 = sphi 0, %s333
    %s351 = sphi 0, %s351
    %s353 = sphi 0, %s351
    %s354 = sphi 0, %s353
    %s368 = sphi 0, %s354
    %s372 = sphi 0, %s372
    %s374 = sphi 0, %s372
    %s375 = sphi 0, %s374
    %s389 = sphi 0, %s375
    %s395 = sphi 0, %s397
    %s398 = sphi 0, %s395
    %s399 = sphi 0, %s398
    %s415 = sphi 0, %s399
  $region4: #{_lambda_.3} parent=0 // loop_header_branch
    %26 = sbr.rel (%p24) target = $region8
  $region5: #{_lambda_.3} parent=0 // loop_body
    %s28 = ssub.s32 %s23, 1
    %s29 = ssub.s32 %s23, 2
    %s30 = sadd.s32 %s23, 1
    %s31 = ssub.s32 %s23, %s30
    %p32 = scmp.eq.s32.totalorder %s31, 0
    %s34 = sadd.s32 %s33, 1
    %s35 = scalar_select %p32, %s33, %s34
    %p38 = pneg %p32
    %p39 = scmp.eq.s32.totalorder %s23, 1
    %p40 = por %p38, %p39
    %p41 = scmp.ne.s32.totalorder %s33, %s36
    %p42 = scmp.eq.s32.totalorder %s23, 0
    %p43 = por %p41, %p42
    %p44 = scmp.ne.s32.totalorder %s33, %s36
    %p45 = scmp.eq.s32.totalorder %s28, 1
    %p46 = por %p44, %p45
    %p47 = scmp.ne.s32.totalorder %s36, %s37
    %p48 = scmp.eq.s32.totalorder %s28, 0
    %p49 = por %p47, %p48
    %p50 = scmp.ne.s32.totalorder %s36, %s37
    %p51 = scmp.eq.s32.totalorder %s29, 1
    %p52 = por %p50, %p51
    %p54 = scmp.ne.s32.totalorder %s37, %s53
    %p55 = scmp.eq.s32.totalorder %s29, 0
    %p56 = por %p54, %p55
    %s58 = sadd.s32 %s57, 1
    %p61 = scmp.eq.s32.totalorder %s23, 1
    %p62 = scmp.ne.s32.totalorder %s57, %s59
    %p63 = scmp.eq.s32.totalorder %s23, 0
    %p64 = por %p62, %p63
    %p65 = scmp.ne.s32.totalorder %s57, %s59
    %p66 = scmp.eq.s32.totalorder %s28, 1
    %p67 = por %p65, %p66
    %p68 = scmp.ne.s32.totalorder %s59, %s60
    %p69 = scmp.eq.s32.totalorder %s28, 0
    %p70 = por %p68, %p69
    %p71 = scmp.ne.s32.totalorder %s59, %s60
    %p72 = scmp.eq.s32.totalorder %s29, 1
    %p73 = por %p71, %p72
    %p75 = scmp.ne.s32.totalorder %s60, %s74
    %p76 = scmp.eq.s32.totalorder %s29, 0
    %p77 = por %p75, %p76
    %s79 = sadd.s32 %s78, 1
    %p82 = scmp.eq.s32.totalorder %s23, 1
    %p83 = scmp.ne.s32.totalorder %s78, %s80
    %p84 = scmp.eq.s32.totalorder %s23, 0
    %p85 = por %p83, %p84
    %p86 = scmp.ne.s32.totalorder %s78, %s80
    %p87 = scmp.eq.s32.totalorder %s28, 1
    %p88 = por %p86, %p87
    %p89 = scmp.ne.s32.totalorder %s80, %s81
    %p90 = scmp.eq.s32.totalorder %s28, 0
    %p91 = por %p89, %p90
    %p92 = scmp.ne.s32.totalorder %s80, %s81
    %p93 = scmp.eq.s32.totalorder %s29, 1
    %p94 = por %p92, %p93
    %p96 = scmp.ne.s32.totalorder %s81, %s95
    %p97 = scmp.eq.s32.totalorder %s29, 0
    %p98 = por %p96, %p97
    %s100 = sadd.s32 %s99, 1
    %p103 = scmp.eq.s32.totalorder %s23, 1
    %p104 = scmp.ne.s32.totalorder %s99, %s101
    %p105 = scmp.eq.s32.totalorder %s23, 0
    %p106 = por %p104, %p105
    %p107 = scmp.ne.s32.totalorder %s99, %s101
    %p108 = scmp.eq.s32.totalorder %s28, 1
    %p109 = por %p107, %p108
    %p110 = scmp.ne.s32.totalorder %s101, %s102
    %p111 = scmp.eq.s32.totalorder %s28, 0
    %p112 = por %p110, %p111
    %p113 = scmp.ne.s32.totalorder %s101, %s102
    %p114 = scmp.eq.s32.totalorder %s29, 1
    %p115 = por %p113, %p114
    %p117 = scmp.ne.s32.totalorder %s102, %s116
    %p118 = scmp.eq.s32.totalorder %s29, 0
    %p119 = por %p117, %p118
    %s121 = sadd.s32 %s120, 1
    %p124 = scmp.eq.s32.totalorder %s23, 1
    %p125 = scmp.ne.s32.totalorder %s120, %s122
    %p126 = scmp.eq.s32.totalorder %s23, 0
    %p127 = por %p125, %p126
    %p128 = scmp.ne.s32.totalorder %s120, %s122
    %p129 = scmp.eq.s32.totalorder %s28, 1
    %p130 = por %p128, %p129
    %p131 = scmp.ne.s32.totalorder %s122, %s123
    %p132 = scmp.eq.s32.totalorder %s28, 0
    %p133 = por %p131, %p132
    %p134 = scmp.ne.s32.totalorder %s122, %s123
    %p135 = scmp.eq.s32.totalorder %s29, 1
    %p136 = por %p134, %p135
    %p138 = scmp.ne.s32.totalorder %s123, %s137
    %p139 = scmp.eq.s32.totalorder %s29, 0
    %p140 = por %p138, %p139
    %s142 = sadd.s32 %s141, 1
    %p145 = scmp.eq.s32.totalorder %s23, 1
    %p146 = scmp.ne.s32.totalorder %s141, %s143
    %p147 = scmp.eq.s32.totalorder %s23, 0
    %p148 = por %p146, %p147
    %p149 = scmp.ne.s32.totalorder %s141, %s143
    %p150 = scmp.eq.s32.totalorder %s28, 1
    %p151 = por %p149, %p150
    %p152 = scmp.ne.s32.totalorder %s143, %s144
    %p153 = scmp.eq.s32.totalorder %s28, 0
    %p154 = por %p152, %p153
    %p155 = scmp.ne.s32.totalorder %s143, %s144
    %p156 = scmp.eq.s32.totalorder %s29, 1
    %p157 = por %p155, %p156
    %p159 = scmp.ne.s32.totalorder %s144, %s158
    %p160 = scmp.eq.s32.totalorder %s29, 0
    %p161 = por %p159, %p160
    %s163 = sadd.s32 %s162, 1
    %p166 = scmp.eq.s32.totalorder %s23, 1
    %p167 = scmp.ne.s32.totalorder %s162, %s164
    %p168 = scmp.eq.s32.totalorder %s23, 0
    %p169 = por %p167, %p168
    %p170 = scmp.ne.s32.totalorder %s162, %s164
    %p171 = scmp.eq.s32.totalorder %s28, 1
    %p172 = por %p170, %p171
    %p173 = scmp.ne.s32.totalorder %s164, %s165
    %p174 = scmp.eq.s32.totalorder %s28, 0
    %p175 = por %p173, %p174
    %p176 = scmp.ne.s32.totalorder %s164, %s165
    %p177 = scmp.eq.s32.totalorder %s29, 1
    %p178 = por %p176, %p177
    %p180 = scmp.ne.s32.totalorder %s165, %s179
    %p181 = scmp.eq.s32.totalorder %s29, 0
    %p182 = por %p180, %p181
    %s184 = sadd.s32 %s183, 1
    %p187 = scmp.eq.s32.totalorder %s23, 1
    %p188 = scmp.ne.s32.totalorder %s183, %s185
    %p189 = scmp.eq.s32.totalorder %s23, 0
    %p190 = por %p188, %p189
    %p191 = scmp.ne.s32.totalorder %s183, %s185
    %p192 = scmp.eq.s32.totalorder %s28, 1
    %p193 = por %p191, %p192
    %p194 = scmp.ne.s32.totalorder %s185, %s186
    %p195 = scmp.eq.s32.totalorder %s28, 0
    %p196 = por %p194, %p195
    %p197 = scmp.ne.s32.totalorder %s185, %s186
    %p198 = scmp.eq.s32.totalorder %s29, 1
    %p199 = por %p197, %p198
    %p201 = scmp.ne.s32.totalorder %s186, %s200
    %p202 = scmp.eq.s32.totalorder %s29, 0
    %p203 = por %p201, %p202
    %s205 = sadd.s32 %s204, 1
    %p208 = scmp.eq.s32.totalorder %s23, 1
    %p209 = scmp.ne.s32.totalorder %s204, %s206
    %p210 = scmp.eq.s32.totalorder %s23, 0
    %p211 = por %p209, %p210
    %p212 = scmp.ne.s32.totalorder %s204, %s206
    %p213 = scmp.eq.s32.totalorder %s28, 1
    %p214 = por %p212, %p213
    %p215 = scmp.ne.s32.totalorder %s206, %s207
    %p216 = scmp.eq.s32.totalorder %s28, 0
    %p217 = por %p215, %p216
    %p218 = scmp.ne.s32.totalorder %s206, %s207
    %p219 = scmp.eq.s32.totalorder %s29, 1
    %p220 = por %p218, %p219
    %p222 = scmp.ne.s32.totalorder %s207, %s221
    %p223 = scmp.eq.s32.totalorder %s29, 0
    %p224 = por %p222, %p223
    %s226 = sadd.s32 %s225, 1
    %p229 = scmp.eq.s32.totalorder %s23, 1
    %p230 = scmp.ne.s32.totalorder %s225, %s227
    %p231 = scmp.eq.s32.totalorder %s23, 0
    %p232 = por %p230, %p231
    %p233 = scmp.ne.s32.totalorder %s225, %s227
    %p234 = scmp.eq.s32.totalorder %s28, 1
    %p235 = por %p233, %p234
    %p236 = scmp.ne.s32.totalorder %s227, %s228
    %p237 = scmp.eq.s32.totalorder %s28, 0
    %p238 = por %p236, %p237
    %p239 = scmp.ne.s32.totalorder %s227, %s228
    %p240 = scmp.eq.s32.totalorder %s29, 1
    %p241 = por %p239, %p240
    %p243 = scmp.ne.s32.totalorder %s228, %s242
    %p244 = scmp.eq.s32.totalorder %s29, 0
    %p245 = por %p243, %p244
    %s247 = sadd.s32 %s246, 1
    %p250 = scmp.eq.s32.totalorder %s23, 1
    %p251 = scmp.ne.s32.totalorder %s246, %s248
    %p252 = scmp.eq.s32.totalorder %s23, 0
    %p253 = por %p251, %p252
    %p254 = scmp.ne.s32.totalorder %s246, %s248
    %p255 = scmp.eq.s32.totalorder %s28, 1
    %p256 = por %p254, %p255
    %p257 = scmp.ne.s32.totalorder %s248, %s249
    %p258 = scmp.eq.s32.totalorder %s28, 0
    %p259 = por %p257, %p258
    %p260 = scmp.ne.s32.totalorder %s248, %s249
    %p261 = scmp.eq.s32.totalorder %s29, 1
    %p262 = por %p260, %p261
    %p264 = scmp.ne.s32.totalorder %s249, %s263
    %p265 = scmp.eq.s32.totalorder %s29, 0
    %p266 = por %p264, %p265
    %s268 = sadd.s32 %s267, 1
    %p271 = scmp.eq.s32.totalorder %s23, 1
    %p272 = scmp.ne.s32.totalorder %s267, %s269
    %p273 = scmp.eq.s32.totalorder %s23, 0
    %p274 = por %p272, %p273
    %p275 = scmp.ne.s32.totalorder %s267, %s269
    %p276 = scmp.eq.s32.totalorder %s28, 1
    %p277 = por %p275, %p276
    %p278 = scmp.ne.s32.totalorder %s269, %s270
    %p279 = scmp.eq.s32.totalorder %s28, 0
    %p280 = por %p278, %p279
    %p281 = scmp.ne.s32.totalorder %s269, %s270
    %p282 = scmp.eq.s32.totalorder %s29, 1
    %p283 = por %p281, %p282
    %p285 = scmp.ne.s32.totalorder %s270, %s284
    %p286 = scmp.eq.s32.totalorder %s29, 0
    %p287 = por %p285, %p286
    %s289 = sadd.s32 %s288, 1
    %p292 = scmp.eq.s32.totalorder %s23, 1
    %p293 = scmp.ne.s32.totalorder %s288, %s290
    %p294 = scmp.eq.s32.totalorder %s23, 0
    %p295 = por %p293, %p294
    %p296 = scmp.ne.s32.totalorder %s288, %s290
    %p297 = scmp.eq.s32.totalorder %s28, 1
    %p298 = por %p296, %p297
    %p299 = scmp.ne.s32.totalorder %s290, %s291
    %p300 = scmp.eq.s32.totalorder %s28, 0
    %p301 = por %p299, %p300
    %p302 = scmp.ne.s32.totalorder %s290, %s291
    %p303 = scmp.eq.s32.totalorder %s29, 1
    %p304 = por %p302, %p303
    %p306 = scmp.ne.s32.totalorder %s291, %s305
    %p307 = scmp.eq.s32.totalorder %s29, 0
    %p308 = por %p306, %p307
    %s310 = sadd.s32 %s309, 1
    %p313 = scmp.eq.s32.totalorder %s23, 1
    %p314 = scmp.ne.s32.totalorder %s309, %s311
    %p315 = scmp.eq.s32.totalorder %s23, 0
    %p316 = por %p314, %p315
    %p317 = scmp.ne.s32.totalorder %s309, %s311
    %p318 = scmp.eq.s32.totalorder %s28, 1
    %p319 = por %p317, %p318
    %p320 = scmp.ne.s32.totalorder %s311, %s312
    %p321 = scmp.eq.s32.totalorder %s28, 0
    %p322 = por %p320, %p321
    %p323 = scmp.ne.s32.totalorder %s311, %s312
    %p324 = scmp.eq.s32.totalorder %s29, 1
    %p325 = por %p323, %p324
    %p327 = scmp.ne.s32.totalorder %s312, %s326
    %p328 = scmp.eq.s32.totalorder %s29, 0
    %p329 = por %p327, %p328
    %s331 = sadd.s32 %s330, 1
    %p334 = scmp.eq.s32.totalorder %s23, 1
    %p335 = scmp.ne.s32.totalorder %s330, %s332
    %p336 = scmp.eq.s32.totalorder %s23, 0
    %p337 = por %p335, %p336
    %p338 = scmp.ne.s32.totalorder %s330, %s332
    %p339 = scmp.eq.s32.totalorder %s28, 1
    %p340 = por %p338, %p339
    %p341 = scmp.ne.s32.totalorder %s332, %s333
    %p342 = scmp.eq.s32.totalorder %s28, 0
    %p343 = por %p341, %p342
    %p344 = scmp.ne.s32.totalorder %s332, %s333
    %p345 = scmp.eq.s32.totalorder %s29, 1
    %p346 = por %p344, %p345
    %p348 = scmp.ne.s32.totalorder %s333, %s347
    %p349 = scmp.eq.s32.totalorder %s29, 0
    %p350 = por %p348, %p349
    %s352 = sadd.s32 %s351, 1
    %p355 = scmp.eq.s32.totalorder %s23, 1
    %p356 = scmp.ne.s32.totalorder %s351, %s353
    %p357 = scmp.eq.s32.totalorder %s23, 0
    %p358 = por %p356, %p357
    %p359 = scmp.ne.s32.totalorder %s351, %s353
    %p360 = scmp.eq.s32.totalorder %s28, 1
    %p361 = por %p359, %p360
    %p362 = scmp.ne.s32.totalorder %s353, %s354
    %p363 = scmp.eq.s32.totalorder %s28, 0
    %p364 = por %p362, %p363
    %p365 = scmp.ne.s32.totalorder %s353, %s354
    %p366 = scmp.eq.s32.totalorder %s29, 1
    %p367 = por %p365, %p366
    %p369 = scmp.ne.s32.totalorder %s354, %s368
    %p370 = scmp.eq.s32.totalorder %s29, 0
    %p371 = por %p369, %p370
    %s373 = sadd.s32 %s372, 1
    %p376 = scmp.eq.s32.totalorder %s23, 1
    %p377 = scmp.ne.s32.totalorder %s372, %s374
    %p378 = scmp.eq.s32.totalorder %s23, 0
    %p379 = por %p377, %p378
    %p380 = scmp.ne.s32.totalorder %s372, %s374
    %p381 = scmp.eq.s32.totalorder %s28, 1
    %p382 = por %p380, %p381
    %p383 = scmp.ne.s32.totalorder %s374, %s375
    %p384 = scmp.eq.s32.totalorder %s28, 0
    %p385 = por %p383, %p384
    %p386 = scmp.ne.s32.totalorder %s374, %s375
    %p387 = scmp.eq.s32.totalorder %s29, 1
    %p388 = por %p386, %p387
    %p390 = scmp.ne.s32.totalorder %s375, %s389
    %p391 = scmp.eq.s32.totalorder %s29, 0
    %p392 = por %p390, %p391
    %s393 = ssub.s32 %s23, %s30
    %p394 = scmp.eq.s32.totalorder %s393, 0
    %s396 = sadd.s32 %s395, 1
    %s397 = scalar_select %p394, %s395, %s396
    %p400 = pneg %p394
    %p401 = scmp.eq.s32.totalorder %s23, 1
    %p402 = por %p400, %p401
    %p403 = scmp.ne.s32.totalorder %s395, %s398
    %p404 = scmp.eq.s32.totalorder %s23, 0
    %p405 = por %p403, %p404
    %p406 = scmp.ne.s32.totalorder %s395, %s398
    %p407 = scmp.eq.s32.totalorder %s28, 1
    %p408 = por %p406, %p407
    %p409 = scmp.ne.s32.totalorder %s398, %s399
    %p410 = scmp.eq.s32.totalorder %s28, 0
    %p411 = por %p409, %p410
    %p412 = scmp.ne.s32.totalorder %s398, %s399
    %p413 = scmp.eq.s32.totalorder %s29, 1
    %p414 = por %p412, %p413
    %p416 = scmp.ne.s32.totalorder %s399, %s415
    %p417 = scmp.eq.s32.totalorder %s29, 0
    %p418 = por %p416, %p417
    %p419 = scmp.le.s32.totalorder 1, %s23
    %p420 = scmp.lt.s32.totalorder %s23, 3
    %p421 = pnand %p419, %p420
    %p422 = pneg %p421
    // Predicated region
    $region9: #{_lambda_.3} parent=5 // pred_check
      _
    $region10: #{_lambda_.3} parent=5 // pred_check_branch
      %424 = sbr.rel (%p421) target = $region12
    $region11: #{_lambda_.3} parent=5 // pred_region
      %s425 = ssub.s32 %s23, 1
      // Predicated region
      $region13: #{_lambda_.3} parent=11 // pred_check
        %p426 = pneg %p70
      $region14: #{_lambda_.3} parent=11 // pred_check_branch
        %428 = sbr.rel (%p426) target = $region16
      $region15: #{_lambda_.3} parent=11 // pred_region
        _
      $region16: #{_lambda_.3} parent=11 // pred_fallthru
        _
      // Predicated region
      $region17: #{_lambda_.3} parent=11 // pred_check
        %p429 = pneg %p91
      $region18: #{_lambda_.3} parent=11 // pred_check_branch
        %431 = sbr.rel (%p429) target = $region20
      $region19: #{_lambda_.3} parent=11 // pred_region
        _
      $region20: #{_lambda_.3} parent=11 // pred_fallthru
        _
      // Predicated region
      $region21: #{_lambda_.3} parent=11 // pred_check
        %p432 = pneg %p112
      $region22: #{_lambda_.3} parent=11 // pred_check_branch
        %434 = sbr.rel (%p432) target = $region24
      $region23: #{_lambda_.3} parent=11 // pred_region
        _
      $region24: #{_lambda_.3} parent=11 // pred_fallthru
        _
      // Predicated region
      $region25: #{_lambda_.3} parent=11 // pred_check
        %p435 = pneg %p133
      $region26: #{_lambda_.3} parent=11 // pred_check_branch
        %437 = sbr.rel (%p435) target = $region28
      $region27: #{_lambda_.3} parent=11 // pred_region
        _
      $region28: #{_lambda_.3} parent=11 // pred_fallthru
        _
      // Predicated region
      $region29: #{_lambda_.3} parent=11 // pred_check
        %p438 = pneg %p154
      $region30: #{_lambda_.3} parent=11 // pred_check_branch
        %440 = sbr.rel (%p438) target = $region32
      $region31: #{_lambda_.3} parent=11 // pred_region
        _
      $region32: #{_lambda_.3} parent=11 // pred_fallthru
        _
      // Predicated region
      $region33: #{_lambda_.3} parent=11 // pred_check
        %p441 = pneg %p175
      $region34: #{_lambda_.3} parent=11 // pred_check_branch
        %443 = sbr.rel (%p441) target = $region36
      $region35: #{_lambda_.3} parent=11 // pred_region
        _
      $region36: #{_lambda_.3} parent=11 // pred_fallthru
        _
      // Predicated region
      $region37: #{_lambda_.3} parent=11 // pred_check
        %p444 = pneg %p196
      $region38: #{_lambda_.3} parent=11 // pred_check_branch
        %446 = sbr.rel (%p444) target = $region40
      $region39: #{_lambda_.3} parent=11 // pred_region
        _
      $region40: #{_lambda_.3} parent=11 // pred_fallthru
        _
      // Predicated region
      $region41: #{_lambda_.3} parent=11 // pred_check
        %p447 = pneg %p217
      $region42: #{_lambda_.3} parent=11 // pred_check_branch
        %449 = sbr.rel (%p447) target = $region44
      $region43: #{_lambda_.3} parent=11 // pred_region
        _
      $region44: #{_lambda_.3} parent=11 // pred_fallthru
        _
      // Predicated region
      $region45: #{_lambda_.3} parent=11 // pred_check
        %p450 = pneg %p238
      $region46: #{_lambda_.3} parent=11 // pred_check_branch
        %452 = sbr.rel (%p450) target = $region48
      $region47: #{_lambda_.3} parent=11 // pred_region
        _
      $region48: #{_lambda_.3} parent=11 // pred_fallthru
        _
      // Predicated region
      $region49: #{_lambda_.3} parent=11 // pred_check
        %p453 = pneg %p259
      $region50: #{_lambda_.3} parent=11 // pred_check_branch
        %455 = sbr.rel (%p453) target = $region52
      $region51: #{_lambda_.3} parent=11 // pred_region
        _
      $region52: #{_lambda_.3} parent=11 // pred_fallthru
        _
      // Predicated region
      $region53: #{_lambda_.3} parent=11 // pred_check
        %p456 = pneg %p280
      $region54: #{_lambda_.3} parent=11 // pred_check_branch
        %458 = sbr.rel (%p456) target = $region56
      $region55: #{_lambda_.3} parent=11 // pred_region
        _
      $region56: #{_lambda_.3} parent=11 // pred_fallthru
        _
      // Predicated region
      $region57: #{_lambda_.3} parent=11 // pred_check
        %p459 = pneg %p301
      $region58: #{_lambda_.3} parent=11 // pred_check_branch
        %461 = sbr.rel (%p459) target = $region60
      $region59: #{_lambda_.3} parent=11 // pred_region
        _
      $region60: #{_lambda_.3} parent=11 // pred_fallthru
        _
      // Predicated region
      $region61: #{_lambda_.3} parent=11 // pred_check
        %p462 = pneg %p322
      $region62: #{_lambda_.3} parent=11 // pred_check_branch
        %464 = sbr.rel (%p462) target = $region64
      $region63: #{_lambda_.3} parent=11 // pred_region
        _
      $region64: #{_lambda_.3} parent=11 // pred_fallthru
        _
      // Predicated region
      $region65: #{_lambda_.3} parent=11 // pred_check
        %p465 = pneg %p343
      $region66: #{_lambda_.3} parent=11 // pred_check_branch
        %467 = sbr.rel (%p465) target = $region68
      $region67: #{_lambda_.3} parent=11 // pred_region
        _
      $region68: #{_lambda_.3} parent=11 // pred_fallthru
        _
      // Predicated region
      $region69: #{_lambda_.3} parent=11 // pred_check
        %p468 = pneg %p364
      $region70: #{_lambda_.3} parent=11 // pred_check_branch
        %470 = sbr.rel (%p468) target = $region72
      $region71: #{_lambda_.3} parent=11 // pred_region
        _
      $region72: #{_lambda_.3} parent=11 // pred_fallthru
        _
      // Predicated region
      $region73: #{_lambda_.3} parent=11 // pred_check
        %p471 = pneg %p385
      $region74: #{_lambda_.3} parent=11 // pred_check_branch
        %473 = sbr.rel (%p471) target = $region76
      $region75: #{_lambda_.3} parent=11 // pred_region
        _
      $region76: #{_lambda_.3} parent=11 // pred_fallthru
        _
    $region12: #{_lambda_.3} parent=5 // pred_fallthru
      _
    %p474 = scmp.lt.s32.totalorder %s23, 2
    // Predicated region
    $region77: #{_lambda_.3} parent=5 // pred_check
      %p475 = pneg %p474
    $region78: #{_lambda_.3} parent=5 // pred_check_branch
      %477 = sbr.rel (%p475) target = $region80
    $region79: #{_lambda_.3} parent=5 // pred_region
      // Predicated region
      $region81: #{_lambda_.3} parent=79 // pred_check
        %p478 = pneg %p43
      $region82: #{_lambda_.3} parent=79 // pred_check_branch
        %480 = sbr.rel (%p478) target = $region84
      $region83: #{_lambda_.3} parent=79 // pred_region
        %p481 = scmp.lt.s32.totalorder %s23, 1
        %s482 = scalar_select %p481, %s23, 1
        %s483 = smul.addr %s482, 8
        %s484 = smul.addr %s483, 8
        %s485 = scalar_lea.vmem %s0, %s484
      $region84: #{_lambda_.3} parent=79 // pred_fallthru
        _
    $region80: #{_lambda_.3} parent=5 // pred_fallthru
      _
    %p486 = scmp.le.s32.totalorder 1, %s23
    %p487 = scmp.lt.s32.totalorder %s23, 3
    %p488 = pnand %p486, %p487
    %p489 = pneg %p488
    // Predicated region
    $region85: #{_lambda_.3} parent=5 // pred_check
      _
    $region86: #{_lambda_.3} parent=5 // pred_check_branch
      %491 = sbr.rel (%p488) target = $region88
    $region87: #{_lambda_.3} parent=5 // pred_region
      %s492 = ssub.s32 %s23, 1
      %p493 = scmp.lt.s32.totalorder %s28, 1
      %s494 = scalar_select %p493, %s28, 1
      %s495 = smul.addr %s494, 8
      %s496 = smul.addr %s495, 8
      %s497 = scalar_lea.vmem %s0, %s496
      %p498 = pneg %p49
      %p499 = pneg %p46
      %p500 = pneg %p70
      %p501 = pneg %p67
      %p502 = pneg %p91
      %p503 = pneg %p88
      %p504 = pneg %p112
      %p505 = pneg %p109
      %p506 = pneg %p133
      %p507 = pneg %p130
      %p508 = pneg %p154
      %p509 = pneg %p151
      %p510 = pneg %p175
      %p511 = pneg %p172
      %p512 = pneg %p196
      %p513 = pneg %p193
      %p514 = pneg %p217
      %p515 = pneg %p214
      %p516 = pneg %p238
      %p517 = pneg %p235
      %p518 = pneg %p259
      %p519 = pneg %p256
      %p520 = pneg %p280
      %p521 = pneg %p277
      %p522 = pneg %p301
      %p523 = pneg %p298
      %p524 = pneg %p322
      %p525 = pneg %p319
      %p526 = pneg %p343
      %p527 = pneg %p340
      %p528 = pneg %p364
      %p529 = pneg %p361
      %p530 = pneg %p385
      %p531 = pneg %p382
      %p532 = pneg %p411
      %p533 = pneg %p408
      %p534 = scmp.lt.s32.totalorder %s28, 1
      %s535 = scalar_select %p534, %s28, 1
      %s536 = smul.addr %s535, 8
      %s537 = smul.addr %s536, 8
      %s538 = scalar_lea.vmem %s17, %s537
      %p539 = scmp.lt.s32.totalorder %s28, 1
      %s540 = scalar_select %p539, %s28, 1
      %s541 = smul.addr %s540, 8
      %s542 = smul.addr %s541, 8
      %s543 = scalar_lea.vmem %s0, %s542
      %p544 = scmp.lt.s32.totalorder %s28, 1
      %s545 = scalar_select %p544, %s28, 1
      %s546 = smul.addr %s545, 8
      %s547 = smul.addr %s546, 8
      %s548 = scalar_lea.vmem %s17, %s547
      %v550 = vld [vmem:[%s543] sm:$0xff]
      %v551 = vld [vmem:[%s543 + $0x8] sm:$0xff]
      %v552 = vld [vmem:[%s543 + $0x10] sm:$0xff]
      %v553 = vld [vmem:[%s543 + $0x18] sm:$0xff]
      %v554 = vld [vmem:[%s543 + $0x20] sm:$0xff]
      %v555 = vld [vmem:[%s543 + $0x28] sm:$0xff]
      %v556 = vld [vmem:[%s543 + $0x30] sm:$0xff]
      %v557 = vld [vmem:[%s543 + $0x38] sm:$0xff]
      %v558 = vld [vmem:[%s1] sm:$0x3]
      %v559 = vld [vmem:[%s2] sm:$0x3]
      %v560 = vadd.f32 %v550, %v551
      %561 = vadd.xlane.f32.xlu0 %v560
      %v562 = vpop.xlane.xlu0 %561
      %v563 = vadd.f32 %v552, %v553
      %564 = vadd.xlane.f32.xlu0 %v563
      %v565 = vpop.xlane.xlu0 %564
      %v566 = vadd.f32 %v554, %v555
      %567 = vadd.xlane.f32.xlu0 %v566
      %v568 = vpop.xlane.xlu0 %567
      %v569 = vadd.f32 %v556, %v557
      %570 = vadd.xlane.f32.xlu0 %v569
      %v571 = vpop.xlane.xlu0 %570
      %v572 = vrcp.pop 256.0
      %v573 = vmul.f32 %v562, %v572
      %v574 = vmul.f32 %v565, %v572
      %v575 = vmul.f32 %v568, %v572
      %v576 = vmul.f32 %v571, %v572
      %v577 = vsub.f32 %v550, %v573
      %v578 = vsub.f32 %v551, %v573
      %v579 = vsub.f32 %v552, %v574
      %v580 = vsub.f32 %v553, %v574
      %v581 = vsub.f32 %v554, %v575
      %v582 = vsub.f32 %v555, %v575
      %v583 = vsub.f32 %v556, %v576
      %v584 = vsub.f32 %v557, %v576
      %v585 = vmul.f32 %v577, %v577
      %v586 = vmul.f32 %v578, %v578
      %v587 = vmul.f32 %v579, %v579
      %v588 = vmul.f32 %v580, %v580
      %v589 = vmul.f32 %v581, %v581
      %v590 = vmul.f32 %v582, %v582
      %v591 = vmul.f32 %v583, %v583
      %v592 = vmul.f32 %v584, %v584
      %v593 = vadd.f32 %v585, %v586
      %594 = vadd.xlane.f32.xlu0 %v593
      %v595 = vpop.xlane.xlu0 %594
      %v596 = vadd.f32 %v587, %v588
      %597 = vadd.xlane.f32.xlu0 %v596
      %v598 = vpop.xlane.xlu0 %597
      %v599 = vadd.f32 %v589, %v590
      %600 = vadd.xlane.f32.xlu0 %v599
      %v601 = vpop.xlane.xlu0 %600
      %v602 = vadd.f32 %v591, %v592
      %603 = vadd.xlane.f32.xlu0 %v602
      %v604 = vpop.xlane.xlu0 %603
      %v605 = vmul.f32 %v595, %v572
      %v606 = vmul.f32 %v598, %v572
      %v607 = vmul.f32 %v601, %v572
      %v608 = vmul.f32 %v604, %v572
      %v609 = vadd.f32 %v605, 1e-05
      %v610 = vadd.f32 %v606, 1e-05
      %v611 = vadd.f32 %v607, 1e-05
      %v612 = vadd.f32 %v608, 1e-05
      %v613 = vrsqrt.pop %v609
      %v614 = vrsqrt.pop %v610
      %v615 = vrsqrt.pop %v611
      %v616 = vrsqrt.pop %v612
      %v617 = vmul.f32 %v577, %v613
      %v618 = vmul.f32 %v578, %v613
      %v619 = vmul.f32 %v579, %v614
      %v620 = vmul.f32 %v580, %v614
      %v621 = vmul.f32 %v581, %v615
      %v622 = vmul.f32 %v582, %v615
      %v623 = vmul.f32 %v583, %v616
      %v624 = vmul.f32 %v584, %v616
      %v626 = vlaneseq
      %v627 = vshrl.u32 %v626, 7
      %v628 = vsub.s32 0, %v627
      %v629 = vrot.slane %v558, %v628
      %v630 = vlaneseq
      %v631 = vshrl.u32 %v630, 7
      %v632 = vsub.s32 1, %v631
      %v633 = vrot.slane %v558, %v632
      %v636 = vmul.f32 %v617, %v629
      %v637 = vmul.f32 %v618, %v633
      %v638 = vmul.f32 %v619, %v629
      %v639 = vmul.f32 %v620, %v633
      %v640 = vmul.f32 %v621, %v629
      %v641 = vmul.f32 %v622, %v633
      %v642 = vmul.f32 %v623, %v629
      %v643 = vmul.f32 %v624, %v633
      %v645 = vlaneseq
      %v646 = vshrl.u32 %v645, 7
      %v647 = vsub.s32 0, %v646
      %v648 = vrot.slane %v559, %v647
      %v649 = vlaneseq
      %v650 = vshrl.u32 %v649, 7
      %v651 = vsub.s32 1, %v650
      %v652 = vrot.slane %v559, %v651
      %v655 = vadd.f32 %v636, %v648
      %v656 = vadd.f32 %v637, %v652
      %v657 = vadd.f32 %v638, %v648
      %v658 = vadd.f32 %v639, %v652
      %v659 = vadd.f32 %v640, %v648
      %v660 = vadd.f32 %v641, %v652
      %v661 = vadd.f32 %v642, %v648
      %v662 = vadd.f32 %v643, %v652
      %v663 = vpack.c.bf16 %v657, %v655
      %v664 = vpack.c.bf16 %v658, %v656
      %v665 = vpack.c.bf16 %v661, %v659
      %v666 = vpack.c.bf16 %v662, %v660
      %v667 = vld [vmem:[%s3] sm:$0xff]
      %v668 = vld [vmem:[%s3 + $0x8] sm:$0xff]
      %v669 = vld [vmem:[%s3 + $0x10] sm:$0xff]
      %v670 = vld [vmem:[%s3 + $0x18] sm:$0xff]
      %v671 = vld [vmem:[%s3 + $0x20] sm:$0xff]
      %v672 = vld [vmem:[%s3 + $0x28] sm:$0xff]
      %v673 = vld [vmem:[%s3 + $0x30] sm:$0xff]
      %v674 = vld [vmem:[%s3 + $0x38] sm:$0xff]
      %v675 = vld [vmem:[%s3 + $0x40] sm:$0xff]
      %v676 = vld [vmem:[%s3 + $0x48] sm:$0xff]
      %v677 = vld [vmem:[%s3 + $0x50] sm:$0xff]
      %v678 = vld [vmem:[%s3 + $0x58] sm:$0xff]
      %v679 = vld [vmem:[%s3 + $0x60] sm:$0xff]
      %v680 = vld [vmem:[%s3 + $0x68] sm:$0xff]
      %v681 = vld [vmem:[%s3 + $0x70] sm:$0xff]
      %v682 = vld [vmem:[%s3 + $0x78] sm:$0xff]
      %v683 = vld [vmem:[%s3 + $0x80] sm:$0xff]
      %v684 = vld [vmem:[%s3 + $0x88] sm:$0xff]
      %v685 = vld [vmem:[%s3 + $0x90] sm:$0xff]
      %v686 = vld [vmem:[%s3 + $0x98] sm:$0xff]
      %v687 = vld [vmem:[%s3 + $0xa0] sm:$0xff]
      %v688 = vld [vmem:[%s3 + $0xa8] sm:$0xff]
      %v689 = vld [vmem:[%s3 + $0xb0] sm:$0xff]
      %v690 = vld [vmem:[%s3 + $0xb8] sm:$0xff]
      %v691 = vld [vmem:[%s3 + $0xc0] sm:$0xff]
      %v692 = vld [vmem:[%s3 + $0xc8] sm:$0xff]
      %v693 = vld [vmem:[%s3 + $0xd0] sm:$0xff]
      %v694 = vld [vmem:[%s3 + $0xd8] sm:$0xff]
      %v695 = vld [vmem:[%s3 + $0xe0] sm:$0xff]
      %v696 = vld [vmem:[%s3 + $0xe8] sm:$0xff]
      %v697 = vld [vmem:[%s3 + $0xf0] sm:$0xff]
      %v698 = vld [vmem:[%s3 + $0xf8] sm:$0xff]
      %v699 = vld [vmem:[%s6] sm:$0x3]
      %v701 = vlaneseq
      %v702 = vshrl.u32 %v701, 7
      %v703 = vsub.s32 0, %v702
      %v704 = vrot.slane %v699, %v703
      %v705 = vlaneseq
      %v706 = vshrl.u32 %v705, 7
      %v707 = vsub.s32 1, %v706
      %v708 = vrot.slane %v699, %v707
      %v743 = vunpack.c.l.b16 %v667
      %v744 = vunpack.c.h.b16 %v667
      %v745 = vunpack.c.l.b16 %v668
      %v746 = vunpack.c.h.b16 %v668
      %v747 = vunpack.c.l.b16 %v669
      %v748 = vunpack.c.h.b16 %v669
      %v749 = vunpack.c.l.b16 %v670
      %v750 = vunpack.c.h.b16 %v670
      %v751 = vunpack.c.l.b16 %v671
      %v752 = vunpack.c.h.b16 %v671
      %v753 = vunpack.c.l.b16 %v672
      %v754 = vunpack.c.h.b16 %v672
      %v755 = vunpack.c.l.b16 %v673
      %v756 = vunpack.c.h.b16 %v673
      %v757 = vunpack.c.l.b16 %v674
      %v758 = vunpack.c.h.b16 %v674
      %v759 = vunpack.c.l.b16 %v675
      %v760 = vunpack.c.h.b16 %v675
      %v761 = vunpack.c.l.b16 %v676
      %v762 = vunpack.c.h.b16 %v676
      %v763 = vunpack.c.l.b16 %v677
      %v764 = vunpack.c.h.b16 %v677
      %v765 = vunpack.c.l.b16 %v678
      %v766 = vunpack.c.h.b16 %v678
      %v767 = vunpack.c.l.b16 %v679
      %v768 = vunpack.c.h.b16 %v679
      %v769 = vunpack.c.l.b16 %v680
      %v770 = vunpack.c.h.b16 %v680
      %v771 = vunpack.c.l.b16 %v681
      %v772 = vunpack.c.h.b16 %v681
      %v773 = vunpack.c.l.b16 %v682
      %v774 = vunpack.c.h.b16 %v682
      %v775 = vunpack.c.l.b16 %v683
      %v776 = vunpack.c.h.b16 %v683
      %v777 = vunpack.c.l.b16 %v684
      %v778 = vunpack.c.h.b16 %v684
      %v779 = vunpack.c.l.b16 %v685
      %v780 = vunpack.c.h.b16 %v685
      %v781 = vunpack.c.l.b16 %v686
      %v782 = vunpack.c.h.b16 %v686
      %v783 = vunpack.c.l.b16 %v687
      %v784 = vunpack.c.h.b16 %v687
      %v785 = vunpack.c.l.b16 %v688
      %v786 = vunpack.c.h.b16 %v688
      %v787 = vunpack.c.l.b16 %v689
      %v788 = vunpack.c.h.b16 %v689
      %v789 = vunpack.c.l.b16 %v690
      %v790 = vunpack.c.h.b16 %v690
      %v791 = vunpack.c.l.b16 %v691
      %v792 = vunpack.c.h.b16 %v691
      %v793 = vunpack.c.l.b16 %v692
      %v794 = vunpack.c.h.b16 %v692
      %v795 = vunpack.c.l.b16 %v693
      %v796 = vunpack.c.h.b16 %v693
      %v797 = vunpack.c.l.b16 %v694
      %v798 = vunpack.c.h.b16 %v694
      %v799 = vunpack.c.l.b16 %v695
      %v800 = vunpack.c.h.b16 %v695
      %v801 = vunpack.c.l.b16 %v696
      %v802 = vunpack.c.h.b16 %v696
      %v803 = vunpack.c.l.b16 %v697
      %v804 = vunpack.c.h.b16 %v697
      %v805 = vunpack.c.l.b16 %v698
      %v806 = vunpack.c.h.b16 %v698
      %v807 = vpack.c.b16 %v745, %v743
      %v808 = vpack.c.b16 %v746, %v744
      %v809 = vpack.c.b16 %v749, %v747
      %v810 = vpack.c.b16 %v750, %v748
      %v811 = vpack.c.b16 %v753, %v751
      %v812 = vpack.c.b16 %v754, %v752
      %v813 = vpack.c.b16 %v757, %v755
      %v814 = vpack.c.b16 %v758, %v756
      %v815 = vpack.c.b16 %v761, %v759
      %v816 = vpack.c.b16 %v762, %v760
      %v817 = vpack.c.b16 %v765, %v763
      %v818 = vpack.c.b16 %v766, %v764
      %v819 = vpack.c.b16 %v769, %v767
      %v820 = vpack.c.b16 %v770, %v768
      %v821 = vpack.c.b16 %v773, %v771
      %v822 = vpack.c.b16 %v774, %v772
      %v823 = vpack.c.b16 %v777, %v775
      %v824 = vpack.c.b16 %v778, %v776
      %v825 = vpack.c.b16 %v781, %v779
      %v826 = vpack.c.b16 %v782, %v780
      %v827 = vpack.c.b16 %v785, %v783
      %v828 = vpack.c.b16 %v786, %v784
      %v829 = vpack.c.b16 %v789, %v787
      %v830 = vpack.c.b16 %v790, %v788
      %v831 = vpack.c.b16 %v793, %v791
      %v832 = vpack.c.b16 %v794, %v792
      %v833 = vpack.c.b16 %v797, %v795
      %v834 = vpack.c.b16 %v798, %v796
      %v835 = vpack.c.b16 %v801, %v799
      %v836 = vpack.c.b16 %v802, %v800
      %v837 = vpack.c.b16 %v805, %v803
      %v838 = vpack.c.b16 %v806, %v804
      %871 = vmatprep.subr.bf16.mxu0 %v808
      %872 = vmatpush1.bf16.msra.mxu0 %v807
      %873 = vmatprep.subr.bf16.mxu0 %v810
      %874 = vmatpush1.bf16.msra.mxu0 %v809
      %875 = vmatprep.subr.bf16.mxu0 %v812
      %876 = vmatpush1.bf16.msra.mxu0 %v811
      %877 = vmatprep.subr.bf16.mxu0 %v814
      %878 = vmatpush1.bf16.msra.mxu0 %v813
      %879 = vmatprep.subr.bf16.mxu0 %v816
      %880 = vmatpush1.bf16.msra.mxu0 %v815
      %881 = vmatprep.subr.bf16.mxu0 %v818
      %882 = vmatpush1.bf16.msra.mxu0 %v817
      %883 = vmatprep.subr.bf16.mxu0 %v820
      %884 = vmatpush1.bf16.msra.mxu0 %v819
      %885 = vmatprep.subr.bf16.mxu0 %v822
      %886 = vmatpush1.bf16.msra.mxu0 %v821
      %887 = vmatprep.subr.bf16.mxu0 %v824
      %888 = vmatpush1.bf16.msra.mxu0 %v823
      %889 = vmatprep.subr.bf16.mxu0 %v826
      %890 = vmatpush1.bf16.msra.mxu0 %v825
      %891 = vmatprep.subr.bf16.mxu0 %v828
      %892 = vmatpush1.bf16.msra.mxu0 %v827
      %893 = vmatprep.subr.bf16.mxu0 %v830
      %894 = vmatpush1.bf16.msra.mxu0 %v829
      %895 = vmatprep.subr.bf16.mxu0 %v832
      %896 = vmatpush1.bf16.msra.mxu0 %v831
      %897 = vmatprep.subr.bf16.mxu0 %v834
      %898 = vmatpush1.bf16.msra.mxu0 %v833
      %899 = vmatprep.subr.bf16.mxu0 %v836
      %900 = vmatpush1.bf16.msra.mxu0 %v835
      %901 = vmatprep.subr.bf16.mxu0 %v838
      %902 = vmatpush1.bf16.msra.mxu0 %v837
      %903 = vmatprep.mubr.bf16.mxu0 %v664
      %904 = vmatmul.mubr.bf16.gmra.mrb[0].mxu0 %v663
      %v905 = vpop.f32.mrb[0].mxu0
      %v906 = vadd.f32 %v704, %v905
      %v907 = vpop.f32.mrb[0].mxu0
      %v908 = vadd.f32 %v708, %v907
      %v909 = vpop.f32.mrb[0].mxu0
      %v910 = vadd.f32 %v704, %v909
      %v911 = vpop.f32.mrb[0].mxu0
      %v912 = vadd.f32 %v708, %v911
      %913 = vmatprep.mubr.bf16.mxu0 %v666
      %914 = vmatmul.mubr.bf16.gmra.mrb[0].mxu0 %v665
      %v915 = vpop.f32.mrb[0].mxu0
      %v916 = vadd.f32 %v704, %v915
      %v917 = vpop.f32.mrb[0].mxu0
      %v918 = vadd.f32 %v708, %v917
      %v919 = vpop.f32.mrb[0].mxu0
      %v920 = vadd.f32 %v704, %v919
      %v921 = vpop.f32.mrb[0].mxu0
      %v922 = vadd.f32 %v708, %v921
      %923 = vdwg.mxu0
      %v924 = vld [vmem:[%s4] sm:$0xff]
      %v925 = vld [vmem:[%s4 + $0x8] sm:$0xff]
      %v926 = vld [vmem:[%s4 + $0x10] sm:$0xff]
      %v927 = vld [vmem:[%s4 + $0x18] sm:$0xff]
      %v928 = vld [vmem:[%s4 + $0x20] sm:$0xff]
      %v929 = vld [vmem:[%s4 + $0x28] sm:$0xff]
      %v930 = vld [vmem:[%s4 + $0x30] sm:$0xff]
      %v931 = vld [vmem:[%s4 + $0x38] sm:$0xff]
      %v932 = vld [vmem:[%s4 + $0x40] sm:$0xff]
      %v933 = vld [vmem:[%s4 + $0x48] sm:$0xff]
      %v934 = vld [vmem:[%s4 + $0x50] sm:$0xff]
      %v935 = vld [vmem:[%s4 + $0x58] sm:$0xff]
      %v936 = vld [vmem:[%s4 + $0x60] sm:$0xff]
      %v937 = vld [vmem:[%s4 + $0x68] sm:$0xff]
      %v938 = vld [vmem:[%s4 + $0x70] sm:$0xff]
      %v939 = vld [vmem:[%s4 + $0x78] sm:$0xff]
      %v940 = vld [vmem:[%s4 + $0x80] sm:$0xff]
      %v941 = vld [vmem:[%s4 + $0x88] sm:$0xff]
      %v942 = vld [vmem:[%s4 + $0x90] sm:$0xff]
      %v943 = vld [vmem:[%s4 + $0x98] sm:$0xff]
      %v944 = vld [vmem:[%s4 + $0xa0] sm:$0xff]
      %v945 = vld [vmem:[%s4 + $0xa8] sm:$0xff]
      %v946 = vld [vmem:[%s4 + $0xb0] sm:$0xff]
      %v947 = vld [vmem:[%s4 + $0xb8] sm:$0xff]
      %v948 = vld [vmem:[%s4 + $0xc0] sm:$0xff]
      %v949 = vld [vmem:[%s4 + $0xc8] sm:$0xff]
      %v950 = vld [vmem:[%s4 + $0xd0] sm:$0xff]
      %v951 = vld [vmem:[%s4 + $0xd8] sm:$0xff]
      %v952 = vld [vmem:[%s4 + $0xe0] sm:$0xff]
      %v953 = vld [vmem:[%s4 + $0xe8] sm:$0xff]
      %v954 = vld [vmem:[%s4 + $0xf0] sm:$0xff]
      %v955 = vld [vmem:[%s4 + $0xf8] sm:$0xff]
      %v956 = vld [vmem:[%s7] sm:$0x3]
      %v958 = vlaneseq
      %v959 = vshrl.u32 %v958, 7
      %v960 = vsub.s32 0, %v959
      %v961 = vrot.slane %v956, %v960
      %v962 = vlaneseq
      %v963 = vshrl.u32 %v962, 7
      %v964 = vsub.s32 1, %v963
      %v965 = vrot.slane %v956, %v964
      %v1000 = vunpack.c.l.b16 %v924
      %v1001 = vunpack.c.h.b16 %v924
      %v1002 = vunpack.c.l.b16 %v925
      %v1003 = vunpack.c.h.b16 %v925
      %v1004 = vunpack.c.l.b16 %v926
      %v1005 = vunpack.c.h.b16 %v926
      %v1006 = vunpack.c.l.b16 %v927
      %v1007 = vunpack.c.h.b16 %v927
      %v1008 = vunpack.c.l.b16 %v928
      %v1009 = vunpack.c.h.b16 %v928
      %v1010 = vunpack.c.l.b16 %v929
      %v1011 = vunpack.c.h.b16 %v929
      %v1012 = vunpack.c.l.b16 %v930
      %v1013 = vunpack.c.h.b16 %v930
      %v1014 = vunpack.c.l.b16 %v931
      %v1015 = vunpack.c.h.b16 %v931
      %v1016 = vunpack.c.l.b16 %v932
      %v1017 = vunpack.c.h.b16 %v932
      %v1018 = vunpack.c.l.b16 %v933
      %v1019 = vunpack.c.h.b16 %v933
      %v1020 = vunpack.c.l.b16 %v934
      %v1021 = vunpack.c.h.b16 %v934
      %v1022 = vunpack.c.l.b16 %v935
      %v1023 = vunpack.c.h.b16 %v935
      %v1024 = vunpack.c.l.b16 %v936
      %v1025 = vunpack.c.h.b16 %v936
      %v1026 = vunpack.c.l.b16 %v937
      %v1027 = vunpack.c.h.b16 %v937
      %v1028 = vunpack.c.l.b16 %v938
      %v1029 = vunpack.c.h.b16 %v938
      %v1030 = vunpack.c.l.b16 %v939
      %v1031 = vunpack.c.h.b16 %v939
      %v1032 = vunpack.c.l.b16 %v940
      %v1033 = vunpack.c.h.b16 %v940
      %v1034 = vunpack.c.l.b16 %v941
      %v1035 = vunpack.c.h.b16 %v941
      %v1036 = vunpack.c.l.b16 %v942
      %v1037 = vunpack.c.h.b16 %v942
      %v1038 = vunpack.c.l.b16 %v943
      %v1039 = vunpack.c.h.b16 %v943
      %v1040 = vunpack.c.l.b16 %v944
      %v1041 = vunpack.c.h.b16 %v944
      %v1042 = vunpack.c.l.b16 %v945
      %v1043 = vunpack.c.h.b16 %v945
      %v1044 = vunpack.c.l.b16 %v946
      %v1045 = vunpack.c.h.b16 %v946
      %v1046 = vunpack.c.l.b16 %v947
      %v1047 = vunpack.c.h.b16 %v947
      %v1048 = vunpack.c.l.b16 %v948
      %v1049 = vunpack.c.h.b16 %v948
      %v1050 = vunpack.c.l.b16 %v949
      %v1051 = vunpack.c.h.b16 %v949
      %v1052 = vunpack.c.l.b16 %v950
      %v1053 = vunpack.c.h.b16 %v950
      %v1054 = vunpack.c.l.b16 %v951
      %v1055 = vunpack.c.h.b16 %v951
      %v1056 = vunpack.c.l.b16 %v952
      %v1057 = vunpack.c.h.b16 %v952
      %v1058 = vunpack.c.l.b16 %v953
      %v1059 = vunpack.c.h.b16 %v953
      %v1060 = vunpack.c.l.b16 %v954
      %v1061 = vunpack.c.h.b16 %v954
      %v1062 = vunpack.c.l.b16 %v955
      %v1063 = vunpack.c.h.b16 %v955
      %v1064 = vpack.c.b16 %v1002, %v1000
      %v1065 = vpack.c.b16 %v1003, %v1001
      %v1066 = vpack.c.b16 %v1006, %v1004
      %v1067 = vpack.c.b16 %v1007, %v1005
      %v1068 = vpack.c.b16 %v1010, %v1008
      %v1069 = vpack.c.b16 %v1011, %v1009
      %v1070 = vpack.c.b16 %v1014, %v1012
      %v1071 = vpack.c.b16 %v1015, %v1013
      %v1072 = vpack.c.b16 %v1018, %v1016
      %v1073 = vpack.c.b16 %v1019, %v1017
      %v1074 = vpack.c.b16 %v1022, %v1020
      %v1075 = vpack.c.b16 %v1023, %v1021
      %v1076 = vpack.c.b16 %v1026, %v1024
      %v1077 = vpack.c.b16 %v1027, %v1025
      %v1078 = vpack.c.b16 %v1030, %v1028
      %v1079 = vpack.c.b16 %v1031, %v1029
      %v1080 = vpack.c.b16 %v1034, %v1032
      %v1081 = vpack.c.b16 %v1035, %v1033
      %v1082 = vpack.c.b16 %v1038, %v1036
      %v1083 = vpack.c.b16 %v1039, %v1037
      %v1084 = vpack.c.b16 %v1042, %v1040
      %v1085 = vpack.c.b16 %v1043, %v1041
      %v1086 = vpack.c.b16 %v1046, %v1044
      %v1087 = vpack.c.b16 %v1047, %v1045
      %v1088 = vpack.c.b16 %v1050, %v1048
      %v1089 = vpack.c.b16 %v1051, %v1049
      %v1090 = vpack.c.b16 %v1054, %v1052
      %v1091 = vpack.c.b16 %v1055, %v1053
      %v1092 = vpack.c.b16 %v1058, %v1056
      %v1093 = vpack.c.b16 %v1059, %v1057
      %v1094 = vpack.c.b16 %v1062, %v1060
      %v1095 = vpack.c.b16 %v1063, %v1061
      %1128 = vmatprep.subr.bf16.mxu0 %v1065
      %1129 = vmatpush1.bf16.msra.mxu0 %v1064
      %1130 = vmatprep.subr.bf16.mxu0 %v1067
      %1131 = vmatpush1.bf16.msra.mxu0 %v1066
      %1132 = vmatprep.subr.bf16.mxu0 %v1069
      %1133 = vmatpush1.bf16.msra.mxu0 %v1068
      %1134 = vmatprep.subr.bf16.mxu0 %v1071
      %1135 = vmatpush1.bf16.msra.mxu0 %v1070
      %1136 = vmatprep.subr.bf16.mxu0 %v1073
      %1137 = vmatpush1.bf16.msra.mxu0 %v1072
      %1138 = vmatprep.subr.bf16.mxu0 %v1075
      %1139 = vmatpush1.bf16.msra.mxu0 %v1074
      %1140 = vmatprep.subr.bf16.mxu0 %v1077
      %1141 = vmatpush1.bf16.msra.mxu0 %v1076
      %1142 = vmatprep.subr.bf16.mxu0 %v1079
      %1143 = vmatpush1.bf16.msra.mxu0 %v1078
      %1144 = vmatprep.subr.bf16.mxu0 %v1081
      %1145 = vmatpush1.bf16.msra.mxu0 %v1080
      %1146 = vmatprep.subr.bf16.mxu0 %v1083
      %1147 = vmatpush1.bf16.msra.mxu0 %v1082
      %1148 = vmatprep.subr.bf16.mxu0 %v1085
      %1149 = vmatpush1.bf16.msra.mxu0 %v1084
      %1150 = vmatprep.subr.bf16.mxu0 %v1087
      %1151 = vmatpush1.bf16.msra.mxu0 %v1086
      %1152 = vmatprep.subr.bf16.mxu0 %v1089
      %1153 = vmatpush1.bf16.msra.mxu0 %v1088
      %1154 = vmatprep.subr.bf16.mxu0 %v1091
      %1155 = vmatpush1.bf16.msra.mxu0 %v1090
      %1156 = vmatprep.subr.bf16.mxu0 %v1093
      %1157 = vmatpush1.bf16.msra.mxu0 %v1092
      %1158 = vmatprep.subr.bf16.mxu0 %v1095
      %1159 = vmatpush1.bf16.msra.mxu0 %v1094
      %1160 = vmatprep.mubr.bf16.mxu0 %v664
      %1161 = vmatmul.mubr.bf16.gmra.mrb[0].mxu0 %v663
      %v1162 = vpop.f32.mrb[0].mxu0
      %v1163 = vadd.f32 %v961, %v1162
      %v1164 = vpop.f32.mrb[0].mxu0
      %v1165 = vadd.f32 %v965, %v1164
      %v1166 = vpop.f32.mrb[0].mxu0
      %v1167 = vadd.f32 %v961, %v1166
      %v1168 = vpop.f32.mrb[0].mxu0
      %v1169 = vadd.f32 %v965, %v1168
      %1170 = vmatprep.mubr.bf16.mxu0 %v666
      %1171 = vmatmul.mubr.bf16.gmra.mrb[0].mxu0 %v665
      %v1172 = vpop.f32.mrb[0].mxu0
      %v1173 = vadd.f32 %v961, %v1172
      %v1174 = vpop.f32.mrb[0].mxu0
      %v1175 = vadd.f32 %v965, %v1174
      %v1176 = vpop.f32.mrb[0].mxu0
      %v1177 = vadd.f32 %v961, %v1176
      %v1178 = vpop.f32.mrb[0].mxu0
      %v1179 = vadd.f32 %v965, %v1178
      %1180 = vdwg.mxu0
      %v1181 = vld [vmem:[%s5] sm:$0xff]
      %v1182 = vld [vmem:[%s5 + $0x8] sm:$0xff]
      %v1183 = vld [vmem:[%s5 + $0x10] sm:$0xff]
      %v1184 = vld [vmem:[%s5 + $0x18] sm:$0xff]
      %v1185 = vld [vmem:[%s5 + $0x20] sm:$0xff]
      %v1186 = vld [vmem:[%s5 + $0x28] sm:$0xff]
      %v1187 = vld [vmem:[%s5 + $0x30] sm:$0xff]
      %v1188 = vld [vmem:[%s5 + $0x38] sm:$0xff]
      %v1189 = vld [vmem:[%s5 + $0x40] sm:$0xff]
      %v1190 = vld [vmem:[%s5 + $0x48] sm:$0xff]
      %v1191 = vld [vmem:[%s5 + $0x50] sm:$0xff]
      %v1192 = vld [vmem:[%s5 + $0x58] sm:$0xff]
      %v1193 = vld [vmem:[%s5 + $0x60] sm:$0xff]
      %v1194 = vld [vmem:[%s5 + $0x68] sm:$0xff]
      %v1195 = vld [vmem:[%s5 + $0x70] sm:$0xff]
      %v1196 = vld [vmem:[%s5 + $0x78] sm:$0xff]
      %v1197 = vld [vmem:[%s5 + $0x80] sm:$0xff]
      %v1198 = vld [vmem:[%s5 + $0x88] sm:$0xff]
      %v1199 = vld [vmem:[%s5 + $0x90] sm:$0xff]
      %v1200 = vld [vmem:[%s5 + $0x98] sm:$0xff]
      %v1201 = vld [vmem:[%s5 + $0xa0] sm:$0xff]
      %v1202 = vld [vmem:[%s5 + $0xa8] sm:$0xff]
      %v1203 = vld [vmem:[%s5 + $0xb0] sm:$0xff]
      %v1204 = vld [vmem:[%s5 + $0xb8] sm:$0xff]
      %v1205 = vld [vmem:[%s5 + $0xc0] sm:$0xff]
      %v1206 = vld [vmem:[%s5 + $0xc8] sm:$0xff]
      %v1207 = vld [vmem:[%s5 + $0xd0] sm:$0xff]
      %v1208 = vld [vmem:[%s5 + $0xd8] sm:$0xff]
      %v1209 = vld [vmem:[%s5 + $0xe0] sm:$0xff]
      %v1210 = vld [vmem:[%s5 + $0xe8] sm:$0xff]
      %v1211 = vld [vmem:[%s5 + $0xf0] sm:$0xff]
      %v1212 = vld [vmem:[%s5 + $0xf8] sm:$0xff]
      %v1213 = vld [vmem:[%s8] sm:$0x3]
      %v1215 = vlaneseq
      %v1216 = vshrl.u32 %v1215, 7
      %v1217 = vsub.s32 0, %v1216
      %v1218 = vrot.slane %v1213, %v1217
      %v1219 = vlaneseq
      %v1220 = vshrl.u32 %v1219, 7
      %v1221 = vsub.s32 1, %v1220
      %v1222 = vrot.slane %v1213, %v1221
      %v1257 = vunpack.c.l.b16 %v1181
      %v1258 = vunpack.c.h.b16 %v1181
      %v1259 = vunpack.c.l.b16 %v1182
      %v1260 = vunpack.c.h.b16 %v1182
      %v1261 = vunpack.c.l.b16 %v1183
      %v1262 = vunpack.c.h.b16 %v1183
      %v1263 = vunpack.c.l.b16 %v1184
      %v1264 = vunpack.c.h.b16 %v1184
      %v1265 = vunpack.c.l.b16 %v1185
      %v1266 = vunpack.c.h.b16 %v1185
      %v1267 = vunpack.c.l.b16 %v1186
      %v1268 = vunpack.c.h.b16 %v1186
      %v1269 = vunpack.c.l.b16 %v1187
      %v1270 = vunpack.c.h.b16 %v1187
      %v1271 = vunpack.c.l.b16 %v1188
      %v1272 = vunpack.c.h.b16 %v1188
      %v1273 = vunpack.c.l.b16 %v1189
      %v1274 = vunpack.c.h.b16 %v1189
      %v1275 = vunpack.c.l.b16 %v1190
      %v1276 = vunpack.c.h.b16 %v1190
      %v1277 = vunpack.c.l.b16 %v1191
      %v1278 = vunpack.c.h.b16 %v1191
      %v1279 = vunpack.c.l.b16 %v1192
      %v1280 = vunpack.c.h.b16 %v1192
      %v1281 = vunpack.c.l.b16 %v1193
      %v1282 = vunpack.c.h.b16 %v1193
      %v1283 = vunpack.c.l.b16 %v1194
      %v1284 = vunpack.c.h.b16 %v1194
      %v1285 = vunpack.c.l.b16 %v1195
      %v1286 = vunpack.c.h.b16 %v1195
      %v1287 = vunpack.c.l.b16 %v1196
      %v1288 = vunpack.c.h.b16 %v1196
      %v1289 = vunpack.c.l.b16 %v1197
      %v1290 = vunpack.c.h.b16 %v1197
      %v1291 = vunpack.c.l.b16 %v1198
      %v1292 = vunpack.c.h.b16 %v1198
      %v1293 = vunpack.c.l.b16 %v1199
      %v1294 = vunpack.c.h.b16 %v1199
      %v1295 = vunpack.c.l.b16 %v1200
      %v1296 = vunpack.c.h.b16 %v1200
      %v1297 = vunpack.c.l.b16 %v1201
      %v1298 = vunpack.c.h.b16 %v1201
      %v1299 = vunpack.c.l.b16 %v1202
      %v1300 = vunpack.c.h.b16 %v1202
      %v1301 = vunpack.c.l.b16 %v1203
      %v1302 = vunpack.c.h.b16 %v1203
      %v1303 = vunpack.c.l.b16 %v1204
      %v1304 = vunpack.c.h.b16 %v1204
      %v1305 = vunpack.c.l.b16 %v1205
      %v1306 = vunpack.c.h.b16 %v1205
      %v1307 = vunpack.c.l.b16 %v1206
      %v1308 = vunpack.c.h.b16 %v1206
      %v1309 = vunpack.c.l.b16 %v1207
      %v1310 = vunpack.c.h.b16 %v1207
      %v1311 = vunpack.c.l.b16 %v1208
      %v1312 = vunpack.c.h.b16 %v1208
      %v1313 = vunpack.c.l.b16 %v1209
      %v1314 = vunpack.c.h.b16 %v1209
      %v1315 = vunpack.c.l.b16 %v1210
      %v1316 = vunpack.c.h.b16 %v1210
      %v1317 = vunpack.c.l.b16 %v1211
      %v1318 = vunpack.c.h.b16 %v1211
      %v1319 = vunpack.c.l.b16 %v1212
      %v1320 = vunpack.c.h.b16 %v1212
      %v1321 = vpack.c.b16 %v1259, %v1257
      %v1322 = vpack.c.b16 %v1260, %v1258
      %v1323 = vpack.c.b16 %v1263, %v1261
      %v1324 = vpack.c.b16 %v1264, %v1262
      %v1325 = vpack.c.b16 %v1267, %v1265
      %v1326 = vpack.c.b16 %v1268, %v1266
      %v1327 = vpack.c.b16 %v1271, %v1269
      %v1328 = vpack.c.b16 %v1272, %v1270
      %v1329 = vpack.c.b16 %v1275, %v1273
      %v1330 = vpack.c.b16 %v1276, %v1274
      %v1331 = vpack.c.b16 %v1279, %v1277
      %v1332 = vpack.c.b16 %v1280, %v1278
      %v1333 = vpack.c.b16 %v1283, %v1281
      %v1334 = vpack.c.b16 %v1284, %v1282
      %v1335 = vpack.c.b16 %v1287, %v1285
      %v1336 = vpack.c.b16 %v1288, %v1286
      %v1337 = vpack.c.b16 %v1291, %v1289
      %v1338 = vpack.c.b16 %v1292, %v1290
      %v1339 = vpack.c.b16 %v1295, %v1293
      %v1340 = vpack.c.b16 %v1296, %v1294
      %v1341 = vpack.c.b16 %v1299, %v1297
      %v1342 = vpack.c.b16 %v1300, %v1298
      %v1343 = vpack.c.b16 %v1303, %v1301
      %v1344 = vpack.c.b16 %v1304, %v1302
      %v1345 = vpack.c.b16 %v1307, %v1305
      %v1346 = vpack.c.b16 %v1308, %v1306
      %v1347 = vpack.c.b16 %v1311, %v1309
      %v1348 = vpack.c.b16 %v1312, %v1310
      %v1349 = vpack.c.b16 %v1315, %v1313
      %v1350 = vpack.c.b16 %v1316, %v1314
      %v1351 = vpack.c.b16 %v1319, %v1317
      %v1352 = vpack.c.b16 %v1320, %v1318
      %1385 = vmatprep.subr.bf16.mxu0 %v1322
      %1386 = vmatpush1.bf16.msra.mxu0 %v1321
      %1387 = vmatprep.subr.bf16.mxu0 %v1324
      %1388 = vmatpush1.bf16.msra.mxu0 %v1323
      %1389 = vmatprep.subr.bf16.mxu0 %v1326
      %1390 = vmatpush1.bf16.msra.mxu0 %v1325
      %1391 = vmatprep.subr.bf16.mxu0 %v1328
      %1392 = vmatpush1.bf16.msra.mxu0 %v1327
      %1393 = vmatprep.subr.bf16.mxu0 %v1330
      %1394 = vmatpush1.bf16.msra.mxu0 %v1329
      %1395 = vmatprep.subr.bf16.mxu0 %v1332
      %1396 = vmatpush1.bf16.msra.mxu0 %v1331
      %1397 = vmatprep.subr.bf16.mxu0 %v1334
      %1398 = vmatpush1.bf16.msra.mxu0 %v1333
      %1399 = vmatprep.subr.bf16.mxu0 %v1336
      %1400 = vmatpush1.bf16.msra.mxu0 %v1335
      %1401 = vmatprep.subr.bf16.mxu0 %v1338
      %1402 = vmatpush1.bf16.msra.mxu0 %v1337
      %1403 = vmatprep.subr.bf16.mxu0 %v1340
      %1404 = vmatpush1.bf16.msra.mxu0 %v1339
      %1405 = vmatprep.subr.bf16.mxu0 %v1342
      %1406 = vmatpush1.bf16.msra.mxu0 %v1341
      %1407 = vmatprep.subr.bf16.mxu0 %v1344
      %1408 = vmatpush1.bf16.msra.mxu0 %v1343
      %1409 = vmatprep.subr.bf16.mxu0 %v1346
      %1410 = vmatpush1.bf16.msra.mxu0 %v1345
      %1411 = vmatprep.subr.bf16.mxu0 %v1348
      %1412 = vmatpush1.bf16.msra.mxu0 %v1347
      %1413 = vmatprep.subr.bf16.mxu0 %v1350
      %1414 = vmatpush1.bf16.msra.mxu0 %v1349
      %1415 = vmatprep.subr.bf16.mxu0 %v1352
      %1416 = vmatpush1.bf16.msra.mxu0 %v1351
      %1417 = vmatprep.mubr.bf16.mxu0 %v664
      %1418 = vmatmul.mubr.bf16.gmra.mrb[0].mxu0 %v663
      %v1419 = vpop.f32.mrb[0].mxu0
      %v1420 = vadd.f32 %v1218, %v1419
      %v1421 = vpop.f32.mrb[0].mxu0
      %v1422 = vadd.f32 %v1222, %v1421
      %v1423 = vpop.f32.mrb[0].mxu0
      %v1424 = vadd.f32 %v1218, %v1423
      %v1425 = vpop.f32.mrb[0].mxu0
      %v1426 = vadd.f32 %v1222, %v1425
      %1427 = vmatprep.mubr.bf16.mxu0 %v666
      %1428 = vmatmul.mubr.bf16.gmra.mrb[0].mxu0 %v665
      %v1429 = vpop.f32.mrb[0].mxu0
      %v1430 = vadd.f32 %v1218, %v1429
      %v1431 = vpop.f32.mrb[0].mxu0
      %v1432 = vadd.f32 %v1222, %v1431
      %v1433 = vpop.f32.mrb[0].mxu0
      %v1434 = vadd.f32 %v1218, %v1433
      %v1435 = vpop.f32.mrb[0].mxu0
      %v1436 = vadd.f32 %v1222, %v1435
      %1437 = vdwg.mxu0
      %v1438 = vmul.f32 %v906, 0.088388346
      %v1439 = vmul.f32 %v908, 0.088388346
      %v1440 = vmul.f32 %v910, 0.088388346
      %v1441 = vmul.f32 %v912, 0.088388346
      %v1442 = vmul.f32 %v916, 0.088388346
      %v1443 = vmul.f32 %v918, 0.088388346
      %v1444 = vmul.f32 %v920, 0.088388346
      %v1445 = vmul.f32 %v922, 0.088388346
      %v1446 = vpack.c.bf16 %v1440, %v1438
      %v1447 = vpack.c.bf16 %v1441, %v1439
      %v1448 = vpack.c.bf16 %v1444, %v1442
      %v1449 = vpack.c.bf16 %v1445, %v1443
      %v1450 = vpack.c.bf16 %v1167, %v1163
      %v1451 = vpack.c.bf16 %v1169, %v1165
      %v1452 = vpack.c.bf16 %v1177, %v1173
      %v1453 = vpack.c.bf16 %v1179, %v1175
      %v1454 = vpack.c.bf16 %v1424, %v1420
      %v1455 = vpack.c.bf16 %v1426, %v1422
      %v1456 = vpack.c.bf16 %v1434, %v1430
      %v1457 = vpack.c.bf16 %v1436, %v1432
      %1458 = vmatprep.subr.bf16.mxu0 0
      %1459 = vmatpush1.bf16.xpose.msra.mxu0 %v1450
      %1460 = vmatprep.subr.bf16.mxu0 0
      %1461 = vmatpush1.bf16.xpose.msra.mxu0 %v1452
      %1462 = vmatprep.subr.bf16.mxu0 0
      %1463 = vmatpush1.bf16.xpose.msra.mxu0 0
      %1464 = vmatprep.subr.bf16.mxu0 0
      %1465 = vmatpush1.bf16.xpose.msra.mxu0 0
      %1466 = vmatprep.subr.bf16.mxu0 0
      %1467 = vmatpush1.bf16.xpose.msra.mxu0 0
      %1468 = vmatprep.subr.bf16.mxu0 0
      %1469 = vmatpush1.bf16.xpose.msra.mxu0 0
      %1470 = vmatprep.subr.bf16.mxu0 0
      %1471 = vmatpush1.bf16.xpose.msra.mxu0 0
      %1472 = vmatprep.subr.bf16.mxu0 0
      %1473 = vmatpush1.bf16.xpose.msra.mxu0 0
      %1474 = vmatprep.subr.bf16.mxu0 0
      %1475 = vmatpush1.bf16.xpose.msra.mxu0 0
      %1476 = vmatprep.subr.bf16.mxu0 0
      %1477 = vmatpush1.bf16.xpose.msra.mxu0 0
      %1478 = vmatprep.subr.bf16.mxu0 0
      %1479 = vmatpush1.bf16.xpose.msra.mxu0 0
      %1480 = vmatprep.subr.bf16.mxu0 0
      %1481 = vmatpush1.bf16.xpose.msra.mxu0 0
      %1482 = vmatprep.subr.bf16.mxu0 0
      %1483 = vmatpush1.bf16.xpose.msra.mxu0 0
      %1484 = vmatprep.subr.bf16.mxu0 0
      %1485 = vmatpush1.bf16.xpose.msra.mxu0 0
      %1486 = vmatprep.subr.bf16.mxu0 0
      %1487 = vmatpush1.bf16.xpose.msra.mxu0 0
      %1488 = vmatprep.subr.bf16.mxu0 0
      %1489 = vmatpush1.bf16.xpose.msra.mxu0 0
      %1490 = vmatprep.mubr.bf16.mxu0 0
      %1491 = vmatmul.mubr.bf16.gmra.mrb[0].mxu0 %v1446
      %v1492 = vpop.f32.mrb[0].mxu0
      %v1493 = vadd.f32 0.0, %v1492
      %v1494 = vpop.f32.mrb[0].mxu0
      %v1495 = vpop.f32.mrb[0].mxu0
      %v1496 = vadd.f32 0.0, %v1495
      %v1497 = vpop.f32.mrb[0].mxu0
      %1498 = vmatprep.mubr.bf16.mxu0 0
      %1499 = vmatmul.mubr.bf16.gmra.mrb[0].mxu0 %v1448
      %v1500 = vpop.f32.mrb[0].mxu0
      %v1501 = vadd.f32 0.0, %v1500
      %v1502 = vpop.f32.mrb[0].mxu0
      %v1503 = vpop.f32.mrb[0].mxu0
      %v1504 = vadd.f32 0.0, %v1503
      %v1505 = vpop.f32.mrb[0].mxu0
      %1506 = vdwg.mxu0
      %vm1507 = vcmask 261120
      %v1508 = vsel %vm1507, %v1493, -inf
      %1509 = vmax.xlane.f32.xlu0 %v1508
      %v1510 = vpop.xlane.xlu0 %1509
      %v1511 = vsel %vm1507, %v1496, -inf
      %1512 = vmax.xlane.f32.xlu0 %v1511
      %v1513 = vpop.xlane.xlu0 %1512
      %v1514 = vsel %vm1507, %v1501, -inf
      %1515 = vmax.xlane.f32.xlu0 %v1514
      %v1516 = vpop.xlane.xlu0 %1515
      %v1517 = vsel %vm1507, %v1504, -inf
      %1518 = vmax.xlane.f32.xlu0 %v1517
      %v1519 = vpop.xlane.xlu0 %1518
      %v1520 = vsub.f32 %v1493, %v1510
      %v1521 = vsub.f32 %v1496, %v1513
      %v1522 = vsub.f32 %v1501, %v1516
      %v1523 = vsub.f32 %v1504, %v1519
      %v1524 = vmul.f32 %v1520, 1.442695
      %v1525 = vpow.pop %v1524
      %v1526 = vmul.f32 %v1521, 1.442695
      %v1527 = vpow.pop %v1526
      %v1528 = vmul.f32 %v1522, 1.442695
      %v1529 = vpow.pop %v1528
      %v1530 = vmul.f32 %v1523, 1.442695
      %v1531 = vpow.pop %v1530
      %v1532 = vsel %vm1507, %v1525, 0.0
      %1533 = vadd.xlane.f32.xlu0 %v1532
      %v1534 = vpop.xlane.xlu0 %1533
      %v1535 = vsel %vm1507, %v1527, 0.0
      %1536 = vadd.xlane.f32.xlu0 %v1535
      %v1537 = vpop.xlane.xlu0 %1536
      %v1538 = vsel %vm1507, %v1529, 0.0
      %1539 = vadd.xlane.f32.xlu0 %v1538
      %v1540 = vpop.xlane.xlu0 %1539
      %v1541 = vsel %vm1507, %v1531, 0.0
      %1542 = vadd.xlane.f32.xlu0 %v1541
      %v1543 = vpop.xlane.xlu0 %1542
      %v1544 = vrcp.pop %v1534
      %v1545 = vrcp.pop %v1537
      %v1546 = vrcp.pop %v1540
      %v1547 = vrcp.pop %v1543
      %v1548 = vmul.f32 %v1525, %v1544
      %v1549 = vmul.f32 %v1527, %v1545
      %v1550 = vmul.f32 %v1529, %v1546
      %v1551 = vmul.f32 %v1531, %v1547
      %v1552 = vpack.c.bf16 %v1549, %v1548
      %v1553 = vpack.c.bf16 %v1551, %v1550
      %v1555 = vsel %vm1507, %v1552, 0
      %v1558 = vsel %vm1507, %v1553, 0
      %1560 = vmatprep.subr.bf16.mxu0 0
      %1561 = vmatpush1.bf16.msra.mxu0 %v1454
      %1562 = vmatprep.subr.bf16.mxu0 0
      %1563 = vmatpush1.bf16.msra.mxu0 %v1456
      %1564 = vmatprep.subr.bf16.mxu0 0
      %1565 = vmatpush1.bf16.msra.mxu0 0
      %1566 = vmatprep.subr.bf16.mxu0 0
      %1567 = vmatpush1.bf16.msra.mxu0 0
      %1568 = vmatprep.subr.bf16.mxu0 0
      %1569 = vmatpush1.bf16.msra.mxu0 0
      %1570 = vmatprep.subr.bf16.mxu0 0
      %1571 = vmatpush1.bf16.msra.mxu0 0
      %1572 = vmatprep.subr.bf16.mxu0 0
      %1573 = vmatpush1.bf16.msra.mxu0 0
      %1574 = vmatprep.subr.bf16.mxu0 0
      %1575 = vmatpush1.bf16.msra.mxu0 0
      %1576 = vmatprep.subr.bf16.mxu0 0
      %1577 = vmatpush1.bf16.msra.mxu0 0
      %1578 = vmatprep.subr.bf16.mxu0 0
      %1579 = vmatpush1.bf16.msra.mxu0 0
      %1580 = vmatprep.subr.bf16.mxu0 0
      %1581 = vmatpush1.bf16.msra.mxu0 0
      %1582 = vmatprep.subr.bf16.mxu0 0
      %1583 = vmatpush1.bf16.msra.mxu0 0
      %1584 = vmatprep.subr.bf16.mxu0 0
      %1585 = vmatpush1.bf16.msra.mxu0 0
      %1586 = vmatprep.subr.bf16.mxu0 0
      %1587 = vmatpush1.bf16.msra.mxu0 0
      %1588 = vmatprep.subr.bf16.mxu0 0
      %1589 = vmatpush1.bf16.msra.mxu0 0
      %1590 = vmatprep.subr.bf16.mxu0 0
      %1591 = vmatpush1.bf16.msra.mxu0 0
      %1592 = vmatprep.mubr.bf16.mxu0 0
      %1593 = vmatmul.mubr.bf16.gmra.mrb[0].mxu0 %v1555
      %v1594 = vpop.f32.mrb[0].mxu0
      %v1595 = vadd.f32 0.0, %v1594
      %v1596 = vpop.f32.mrb[0].mxu0
      %v1597 = vpop.f32.mrb[0].mxu0
      %v1598 = vadd.f32 0.0, %v1597
      %v1599 = vpop.f32.mrb[0].mxu0
      %1600 = vmatprep.mubr.bf16.mxu0 0
      %1601 = vmatmul.mubr.bf16.gmra.mrb[0].mxu0 %v1558
      %v1602 = vpop.f32.mrb[0].mxu0
      %v1603 = vadd.f32 0.0, %v1602
      %v1604 = vpop.f32.mrb[0].mxu0
      %v1605 = vpop.f32.mrb[0].mxu0
      %v1606 = vadd.f32 0.0, %v1605
      %v1607 = vpop.f32.mrb[0].mxu0
      %1608 = vdwg.mxu0
      %1609 = vst [vmem:[#allocation2] sm:$0xff] %v1595
      %1610 = vst [vmem:[#allocation2 + $0x10] sm:$0xff] %v1598
      %1611 = vst [vmem:[#allocation2 + $0x20] sm:$0xff] %v1603
      %1612 = vst [vmem:[#allocation2 + $0x30] sm:$0xff] %v1606
      %1613 = vmatprep.subr.bf16.mxu0 0
      %1614 = vmatpush1.bf16.xpose.msra.mxu0 %v1451
      %1615 = vmatprep.subr.bf16.mxu0 0
      %1616 = vmatpush1.bf16.xpose.msra.mxu0 %v1453
      %1617 = vmatprep.subr.bf16.mxu0 0
      %1618 = vmatpush1.bf16.xpose.msra.mxu0 0
      %1619 = vmatprep.subr.bf16.mxu0 0
      %1620 = vmatpush1.bf16.xpose.msra.mxu0 0
      %1621 = vmatprep.subr.bf16.mxu0 0
      %1622 = vmatpush1.bf16.xpose.msra.mxu0 0
      %1623 = vmatprep.subr.bf16.mxu0 0
      %1624 = vmatpush1.bf16.xpose.msra.mxu0 0
      %1625 = vmatprep.subr.bf16.mxu0 0
      %1626 = vmatpush1.bf16.xpose.msra.mxu0 0
      %1627 = vmatprep.subr.bf16.mxu0 0
      %1628 = vmatpush1.bf16.xpose.msra.mxu0 0
      %1629 = vmatprep.subr.bf16.mxu0 0
      %1630 = vmatpush1.bf16.xpose.msra.mxu0 0
      %1631 = vmatprep.subr.bf16.mxu0 0
      %1632 = vmatpush1.bf16.xpose.msra.mxu0 0
      %1633 = vmatprep.subr.bf16.mxu0 0
      %1634 = vmatpush1.bf16.xpose.msra.mxu0 0
      %1635 = vmatprep.subr.bf16.mxu0 0
      %1636 = vmatpush1.bf16.xpose.msra.mxu0 0
      %1637 = vmatprep.subr.bf16.mxu0 0
      %1638 = vmatpush1.bf16.xpose.msra.mxu0 0
      %1639 = vmatprep.subr.bf16.mxu0 0
      %1640 = vmatpush1.bf16.xpose.msra.mxu0 0
      %1641 = vmatprep.subr.bf16.mxu0 0
      %1642 = vmatpush1.bf16.xpose.msra.mxu0 0
      %1643 = vmatprep.subr.bf16.mxu0 0
      %1644 = vmatpush1.bf16.xpose.msra.mxu0 0
      %1645 = vmatprep.mubr.bf16.mxu0 0
      %1646 = vmatmul.mubr.bf16.gmra.mrb[0].mxu0 %v1447
      %v1647 = vpop.f32.mrb[0].mxu0
      %v1648 = vadd.f32 0.0, %v1647
      %v1649 = vpop.f32.mrb[0].mxu0
      %v1650 = vpop.f32.mrb[0].mxu0
      %v1651 = vadd.f32 0.0, %v1650
      %v1652 = vpop.f32.mrb[0].mxu0
      %1653 = vmatprep.mubr.bf16.mxu0 0
      %1654 = vmatmul.mubr.bf16.gmra.mrb[0].mxu0 %v1449
      %v1655 = vpop.f32.mrb[0].mxu0
      %v1656 = vadd.f32 0.0, %v1655
      %v1657 = vpop.f32.mrb[0].mxu0
      %v1658 = vpop.f32.mrb[0].mxu0
      %v1659 = vadd.f32 0.0, %v1658
      %v1660 = vpop.f32.mrb[0].mxu0
      %1661 = vdwg.mxu0
      %v1662 = vsel %vm1507, %v1648, -inf
      %1663 = vmax.xlane.f32.xlu0 %v1662
      %v1664 = vpop.xlane.xlu0 %1663
      %v1665 = vsel %vm1507, %v1651, -inf
      %1666 = vmax.xlane.f32.xlu0 %v1665
      %v1667 = vpop.xlane.xlu0 %1666
      %v1668 = vsel %vm1507, %v1656, -inf
      %1669 = vmax.xlane.f32.xlu0 %v1668
      %v1670 = vpop.xlane.xlu0 %1669
      %v1671 = vsel %vm1507, %v1659, -inf
      %1672 = vmax.xlane.f32.xlu0 %v1671
      %v1673 = vpop.xlane.xlu0 %1672
      %v1674 = vsub.f32 %v1648, %v1664
      %v1675 = vsub.f32 %v1651, %v1667
      %v1676 = vsub.f32 %v1656, %v1670
      %v1677 = vsub.f32 %v1659, %v1673
      %v1678 = vmul.f32 %v1674, 1.442695
      %v1679 = vpow.pop %v1678
      %v1680 = vmul.f32 %v1675, 1.442695
      %v1681 = vpow.pop %v1680
      %v1682 = vmul.f32 %v1676, 1.442695
      %v1683 = vpow.pop %v1682
      %v1684 = vmul.f32 %v1677, 1.442695
      %v1685 = vpow.pop %v1684
      %v1686 = vsel %vm1507, %v1679, 0.0
      %1687 = vadd.xlane.f32.xlu0 %v1686
      %v1688 = vpop.xlane.xlu0 %1687
      %v1689 = vsel %vm1507, %v1681, 0.0
      %1690 = vadd.xlane.f32.xlu0 %v1689
      %v1691 = vpop.xlane.xlu0 %1690
      %v1692 = vsel %vm1507, %v1683, 0.0
      %1693 = vadd.xlane.f32.xlu0 %v1692
      %v1694 = vpop.xlane.xlu0 %1693
      %v1695 = vsel %vm1507, %v1685, 0.0
      %1696 = vadd.xlane.f32.xlu0 %v1695
      %v1697 = vpop.xlane.xlu0 %1696
      %v1698 = vrcp.pop %v1688
      %v1699 = vrcp.pop %v1691
      %v1700 = vrcp.pop %v1694
      %v1701 = vrcp.pop %v1697
      %v1702 = vmul.f32 %v1679, %v1698
      %v1703 = vmul.f32 %v1681, %v1699
      %v1704 = vmul.f32 %v1683, %v1700
      %v1705 = vmul.f32 %v1685, %v1701
      %v1706 = vpack.c.bf16 %v1703, %v1702
      %v1707 = vpack.c.bf16 %v1705, %v1704
      %v1709 = vsel %vm1507, %v1706, 0
      %v1712 = vsel %vm1507, %v1707, 0
      %1714 = vmatprep.subr.bf16.mxu0 0
      %1715 = vmatpush1.bf16.msra.mxu0 %v1455
      %1716 = vmatprep.subr.bf16.mxu0 0
      %1717 = vmatpush1.bf16.msra.mxu0 %v1457
      %1718 = vmatprep.subr.bf16.mxu0 0
      %1719 = vmatpush1.bf16.msra.mxu0 0
      %1720 = vmatprep.subr.bf16.mxu0 0
      %1721 = vmatpush1.bf16.msra.mxu0 0
      %1722 = vmatprep.subr.bf16.mxu0 0
      %1723 = vmatpush1.bf16.msra.mxu0 0
      %1724 = vmatprep.subr.bf16.mxu0 0
      %1725 = vmatpush1.bf16.msra.mxu0 0
      %1726 = vmatprep.subr.bf16.mxu0 0
      %1727 = vmatpush1.bf16.msra.mxu0 0
      %1728 = vmatprep.subr.bf16.mxu0 0
      %1729 = vmatpush1.bf16.msra.mxu0 0
      %1730 = vmatprep.subr.bf16.mxu0 0
      %1731 = vmatpush1.bf16.msra.mxu0 0
      %1732 = vmatprep.subr.bf16.mxu0 0
      %1733 = vmatpush1.bf16.msra.mxu0 0
      %1734 = vmatprep.subr.bf16.mxu0 0
      %1735 = vmatpush1.bf16.msra.mxu0 0
      %1736 = vmatprep.subr.bf16.mxu0 0
      %1737 = vmatpush1.bf16.msra.mxu0 0
      %1738 = vmatprep.subr.bf16.mxu0 0
      %1739 = vmatpush1.bf16.msra.mxu0 0
      %1740 = vmatprep.subr.bf16.mxu0 0
      %1741 = vmatpush1.bf16.msra.mxu0 0
      %1742 = vmatprep.subr.bf16.mxu0 0
      %1743 = vmatpush1.bf16.msra.mxu0 0
      %1744 = vmatprep.subr.bf16.mxu0 0
      %1745 = vmatpush1.bf16.msra.mxu0 0
      %1746 = vmatprep.mubr.bf16.mxu0 0
      %1747 = vmatmul.mubr.bf16.gmra.mrb[0].mxu0 %v1709
      %v1748 = vpop.f32.mrb[0].mxu0
      %v1749 = vadd.f32 0.0, %v1748
      %v1750 = vpop.f32.mrb[0].mxu0
      %v1751 = vpop.f32.mrb[0].mxu0
      %v1752 = vadd.f32 0.0, %v1751
      %v1753 = vpop.f32.mrb[0].mxu0
      %1754 = vmatprep.mubr.bf16.mxu0 0
      %1755 = vmatmul.mubr.bf16.gmra.mrb[0].mxu0 %v1712
      %v1756 = vpop.f32.mrb[0].mxu0
      %v1757 = vadd.f32 0.0, %v1756
      %v1758 = vpop.f32.mrb[0].mxu0
      %v1759 = vpop.f32.mrb[0].mxu0
      %v1760 = vadd.f32 0.0, %v1759
      %v1761 = vpop.f32.mrb[0].mxu0
      %1762 = vdwg.mxu0
      %1763 = vst [vmem:[#allocation2 + $0x8] sm:$0xff] %v1749
      %1764 = vst [vmem:[#allocation2 + $0x18] sm:$0xff] %v1752
      %1765 = vst [vmem:[#allocation2 + $0x28] sm:$0xff] %v1757
      %1766 = vst [vmem:[#allocation2 + $0x38] sm:$0xff] %v1760
      %v1767 = vld [vmem:[#allocation2] sm:$0xff]
      %v1768 = vld [vmem:[#allocation2 + $0x8] sm:$0xff]
      %v1769 = vld [vmem:[#allocation2 + $0x10] sm:$0xff]
      %v1770 = vld [vmem:[#allocation2 + $0x18] sm:$0xff]
      %v1771 = vld [vmem:[#allocation2 + $0x20] sm:$0xff]
      %v1772 = vld [vmem:[#allocation2 + $0x28] sm:$0xff]
      %v1773 = vld [vmem:[#allocation2 + $0x30] sm:$0xff]
      %v1774 = vld [vmem:[#allocation2 + $0x38] sm:$0xff]
      %v1775 = vpack.c.bf16 %v1769, %v1767
      %v1776 = vpack.c.bf16 %v1770, %v1768
      %v1777 = vpack.c.bf16 %v1773, %v1771
      %v1778 = vpack.c.bf16 %v1774, %v1772
      %v1779 = vld [vmem:[%s9] sm:$0xff]
      %v1780 = vld [vmem:[%s9 + $0x8] sm:$0xff]
      %v1781 = vld [vmem:[%s9 + $0x10] sm:$0xff]
      %v1782 = vld [vmem:[%s9 + $0x18] sm:$0xff]
      %v1783 = vld [vmem:[%s9 + $0x20] sm:$0xff]
      %v1784 = vld [vmem:[%s9 + $0x28] sm:$0xff]
      %v1785 = vld [vmem:[%s9 + $0x30] sm:$0xff]
      %v1786 = vld [vmem:[%s9 + $0x38] sm:$0xff]
      %v1787 = vld [vmem:[%s9 + $0x40] sm:$0xff]
      %v1788 = vld [vmem:[%s9 + $0x48] sm:$0xff]
      %v1789 = vld [vmem:[%s9 + $0x50] sm:$0xff]
      %v1790 = vld [vmem:[%s9 + $0x58] sm:$0xff]
      %v1791 = vld [vmem:[%s9 + $0x60] sm:$0xff]
      %v1792 = vld [vmem:[%s9 + $0x68] sm:$0xff]
      %v1793 = vld [vmem:[%s9 + $0x70] sm:$0xff]
      %v1794 = vld [vmem:[%s9 + $0x78] sm:$0xff]
      %v1795 = vld [vmem:[%s9 + $0x80] sm:$0xff]
      %v1796 = vld [vmem:[%s9 + $0x88] sm:$0xff]
      %v1797 = vld [vmem:[%s9 + $0x90] sm:$0xff]
      %v1798 = vld [vmem:[%s9 + $0x98] sm:$0xff]
      %v1799 = vld [vmem:[%s9 + $0xa0] sm:$0xff]
      %v1800 = vld [vmem:[%s9 + $0xa8] sm:$0xff]
      %v1801 = vld [vmem:[%s9 + $0xb0] sm:$0xff]
      %v1802 = vld [vmem:[%s9 + $0xb8] sm:$0xff]
      %v1803 = vld [vmem:[%s9 + $0xc0] sm:$0xff]
      %v1804 = vld [vmem:[%s9 + $0xc8] sm:$0xff]
      %v1805 = vld [vmem:[%s9 + $0xd0] sm:$0xff]
      %v1806 = vld [vmem:[%s9 + $0xd8] sm:$0xff]
      %v1807 = vld [vmem:[%s9 + $0xe0] sm:$0xff]
      %v1808 = vld [vmem:[%s9 + $0xe8] sm:$0xff]
      %v1809 = vld [vmem:[%s9 + $0xf0] sm:$0xff]
      %v1810 = vld [vmem:[%s9 + $0xf8] sm:$0xff]
      %v1811 = vld [vmem:[%s10] sm:$0x3]
      %v1813 = vlaneseq
      %v1814 = vshrl.u32 %v1813, 7
      %v1815 = vsub.s32 0, %v1814
      %v1816 = vrot.slane %v1811, %v1815
      %v1817 = vlaneseq
      %v1818 = vshrl.u32 %v1817, 7
      %v1819 = vsub.s32 1, %v1818
      %v1820 = vrot.slane %v1811, %v1819
      %v1855 = vunpack.c.l.b16 %v1779
      %v1856 = vunpack.c.h.b16 %v1779
      %v1857 = vunpack.c.l.b16 %v1780
      %v1858 = vunpack.c.h.b16 %v1780
      %v1859 = vunpack.c.l.b16 %v1781
      %v1860 = vunpack.c.h.b16 %v1781
      %v1861 = vunpack.c.l.b16 %v1782
      %v1862 = vunpack.c.h.b16 %v1782
      %v1863 = vunpack.c.l.b16 %v1783
      %v1864 = vunpack.c.h.b16 %v1783
      %v1865 = vunpack.c.l.b16 %v1784
      %v1866 = vunpack.c.h.b16 %v1784
      %v1867 = vunpack.c.l.b16 %v1785
      %v1868 = vunpack.c.h.b16 %v1785
      %v1869 = vunpack.c.l.b16 %v1786
      %v1870 = vunpack.c.h.b16 %v1786
      %v1871 = vunpack.c.l.b16 %v1787
      %v1872 = vunpack.c.h.b16 %v1787
      %v1873 = vunpack.c.l.b16 %v1788
      %v1874 = vunpack.c.h.b16 %v1788
      %v1875 = vunpack.c.l.b16 %v1789
      %v1876 = vunpack.c.h.b16 %v1789
      %v1877 = vunpack.c.l.b16 %v1790
      %v1878 = vunpack.c.h.b16 %v1790
      %v1879 = vunpack.c.l.b16 %v1791
      %v1880 = vunpack.c.h.b16 %v1791
      %v1881 = vunpack.c.l.b16 %v1792
      %v1882 = vunpack.c.h.b16 %v1792
      %v1883 = vunpack.c.l.b16 %v1793
      %v1884 = vunpack.c.h.b16 %v1793
      %v1885 = vunpack.c.l.b16 %v1794
      %v1886 = vunpack.c.h.b16 %v1794
      %v1887 = vunpack.c.l.b16 %v1795
      %v1888 = vunpack.c.h.b16 %v1795
      %v1889 = vunpack.c.l.b16 %v1796
      %v1890 = vunpack.c.h.b16 %v1796
      %v1891 = vunpack.c.l.b16 %v1797
      %v1892 = vunpack.c.h.b16 %v1797
      %v1893 = vunpack.c.l.b16 %v1798
      %v1894 = vunpack.c.h.b16 %v1798
      %v1895 = vunpack.c.l.b16 %v1799
      %v1896 = vunpack.c.h.b16 %v1799
      %v1897 = vunpack.c.l.b16 %v1800
      %v1898 = vunpack.c.h.b16 %v1800
      %v1899 = vunpack.c.l.b16 %v1801
      %v1900 = vunpack.c.h.b16 %v1801
      %v1901 = vunpack.c.l.b16 %v1802
      %v1902 = vunpack.c.h.b16 %v1802
      %v1903 = vunpack.c.l.b16 %v1803
      %v1904 = vunpack.c.h.b16 %v1803
      %v1905 = vunpack.c.l.b16 %v1804
      %v1906 = vunpack.c.h.b16 %v1804
      %v1907 = vunpack.c.l.b16 %v1805
      %v1908 = vunpack.c.h.b16 %v1805
      %v1909 = vunpack.c.l.b16 %v1806
      %v1910 = vunpack.c.h.b16 %v1806
      %v1911 = vunpack.c.l.b16 %v1807
      %v1912 = vunpack.c.h.b16 %v1807
      %v1913 = vunpack.c.l.b16 %v1808
      %v1914 = vunpack.c.h.b16 %v1808
      %v1915 = vunpack.c.l.b16 %v1809
      %v1916 = vunpack.c.h.b16 %v1809
      %v1917 = vunpack.c.l.b16 %v1810
      %v1918 = vunpack.c.h.b16 %v1810
      %v1919 = vpack.c.b16 %v1857, %v1855
      %v1920 = vpack.c.b16 %v1858, %v1856
      %v1921 = vpack.c.b16 %v1861, %v1859
      %v1922 = vpack.c.b16 %v1862, %v1860
      %v1923 = vpack.c.b16 %v1865, %v1863
      %v1924 = vpack.c.b16 %v1866, %v1864
      %v1925 = vpack.c.b16 %v1869, %v1867
      %v1926 = vpack.c.b16 %v1870, %v1868
      %v1927 = vpack.c.b16 %v1873, %v1871
      %v1928 = vpack.c.b16 %v1874, %v1872
      %v1929 = vpack.c.b16 %v1877, %v1875
      %v1930 = vpack.c.b16 %v1878, %v1876
      %v1931 = vpack.c.b16 %v1881, %v1879
      %v1932 = vpack.c.b16 %v1882, %v1880
      %v1933 = vpack.c.b16 %v1885, %v1883
      %v1934 = vpack.c.b16 %v1886, %v1884
      %v1935 = vpack.c.b16 %v1889, %v1887
      %v1936 = vpack.c.b16 %v1890, %v1888
      %v1937 = vpack.c.b16 %v1893, %v1891
      %v1938 = vpack.c.b16 %v1894, %v1892
      %v1939 = vpack.c.b16 %v1897, %v1895
      %v1940 = vpack.c.b16 %v1898, %v1896
      %v1941 = vpack.c.b16 %v1901, %v1899
      %v1942 = vpack.c.b16 %v1902, %v1900
      %v1943 = vpack.c.b16 %v1905, %v1903
      %v1944 = vpack.c.b16 %v1906, %v1904
      %v1945 = vpack.c.b16 %v1909, %v1907
      %v1946 = vpack.c.b16 %v1910, %v1908
      %v1947 = vpack.c.b16 %v1913, %v1911
      %v1948 = vpack.c.b16 %v1914, %v1912
      %v1949 = vpack.c.b16 %v1917, %v1915
      %v1950 = vpack.c.b16 %v1918, %v1916
      %1983 = vmatprep.subr.bf16.mxu0 %v1920
      %1984 = vmatpush1.bf16.msra.mxu0 %v1919
      %1985 = vmatprep.subr.bf16.mxu0 %v1922
      %1986 = vmatpush1.bf16.msra.mxu0 %v1921
      %1987 = vmatprep.subr.bf16.mxu0 %v1924
      %1988 = vmatpush1.bf16.msra.mxu0 %v1923
      %1989 = vmatprep.subr.bf16.mxu0 %v1926
      %1990 = vmatpush1.bf16.msra.mxu0 %v1925
      %1991 = vmatprep.subr.bf16.mxu0 %v1928
      %1992 = vmatpush1.bf16.msra.mxu0 %v1927
      %1993 = vmatprep.subr.bf16.mxu0 %v1930
      %1994 = vmatpush1.bf16.msra.mxu0 %v1929
      %1995 = vmatprep.subr.bf16.mxu0 %v1932
      %1996 = vmatpush1.bf16.msra.mxu0 %v1931
      %1997 = vmatprep.subr.bf16.mxu0 %v1934
      %1998 = vmatpush1.bf16.msra.mxu0 %v1933
      %1999 = vmatprep.subr.bf16.mxu0 %v1936
      %2000 = vmatpush1.bf16.msra.mxu0 %v1935
      %2001 = vmatprep.subr.bf16.mxu0 %v1938
      %2002 = vmatpush1.bf16.msra.mxu0 %v1937
      %2003 = vmatprep.subr.bf16.mxu0 %v1940
      %2004 = vmatpush1.bf16.msra.mxu0 %v1939
      %2005 = vmatprep.subr.bf16.mxu0 %v1942
      %2006 = vmatpush1.bf16.msra.mxu0 %v1941
      %2007 = vmatprep.subr.bf16.mxu0 %v1944
      %2008 = vmatpush1.bf16.msra.mxu0 %v1943
      %2009 = vmatprep.subr.bf16.mxu0 %v1946
      %2010 = vmatpush1.bf16.msra.mxu0 %v1945
      %2011 = vmatprep.subr.bf16.mxu0 %v1948
      %2012 = vmatpush1.bf16.msra.mxu0 %v1947
      %2013 = vmatprep.subr.bf16.mxu0 %v1950
      %2014 = vmatpush1.bf16.msra.mxu0 %v1949
      %2015 = vmatprep.mubr.bf16.mxu0 %v1776
      %2016 = vmatmul.mubr.bf16.gmra.mrb[0].mxu0 %v1775
      %v2017 = vpop.f32.mrb[0].mxu0
      %v2018 = vadd.f32 %v1816, %v2017
      %v2019 = vpop.f32.mrb[0].mxu0
      %v2020 = vadd.f32 %v1820, %v2019
      %v2021 = vpop.f32.mrb[0].mxu0
      %v2022 = vadd.f32 %v1816, %v2021
      %v2023 = vpop.f32.mrb[0].mxu0
      %v2024 = vadd.f32 %v1820, %v2023
      %2025 = vmatprep.mubr.bf16.mxu0 %v1778
      %2026 = vmatmul.mubr.bf16.gmra.mrb[0].mxu0 %v1777
      %v2027 = vpop.f32.mrb[0].mxu0
      %v2028 = vadd.f32 %v1816, %v2027
      %v2029 = vpop.f32.mrb[0].mxu0
      %v2030 = vadd.f32 %v1820, %v2029
      %v2031 = vpop.f32.mrb[0].mxu0
      %v2032 = vadd.f32 %v1816, %v2031
      %v2033 = vpop.f32.mrb[0].mxu0
      %v2034 = vadd.f32 %v1820, %v2033
      %2035 = vdwg.mxu0
      %v2036 = vadd.f32 %v550, %v2018
      %v2037 = vadd.f32 %v551, %v2020
      %v2038 = vadd.f32 %v552, %v2022
      %v2039 = vadd.f32 %v553, %v2024
      %v2040 = vadd.f32 %v554, %v2028
      %v2041 = vadd.f32 %v555, %v2030
      %v2042 = vadd.f32 %v556, %v2032
      %v2043 = vadd.f32 %v557, %v2034
      %v2044 = vld [vmem:[%s11] sm:$0x3]
      %v2045 = vld [vmem:[%s12] sm:$0x3]
      %v2046 = vadd.f32 %v2036, %v2037
      %2047 = vadd.xlane.f32.xlu0 %v2046
      %v2048 = vpop.xlane.xlu0 %2047
      %v2049 = vadd.f32 %v2038, %v2039
      %2050 = vadd.xlane.f32.xlu0 %v2049
      %v2051 = vpop.xlane.xlu0 %2050
      %v2052 = vadd.f32 %v2040, %v2041
      %2053 = vadd.xlane.f32.xlu0 %v2052
      %v2054 = vpop.xlane.xlu0 %2053
      %v2055 = vadd.f32 %v2042, %v2043
      %2056 = vadd.xlane.f32.xlu0 %v2055
      %v2057 = vpop.xlane.xlu0 %2056
      %v2058 = vmul.f32 %v2048, %v572
      %v2059 = vmul.f32 %v2051, %v572
      %v2060 = vmul.f32 %v2054, %v572
      %v2061 = vmul.f32 %v2057, %v572
      %v2062 = vsub.f32 %v2036, %v2058
      %v2063 = vsub.f32 %v2037, %v2058
      %v2064 = vsub.f32 %v2038, %v2059
      %v2065 = vsub.f32 %v2039, %v2059
      %v2066 = vsub.f32 %v2040, %v2060
      %v2067 = vsub.f32 %v2041, %v2060
      %v2068 = vsub.f32 %v2042, %v2061
      %v2069 = vsub.f32 %v2043, %v2061
      %v2070 = vmul.f32 %v2062, %v2062
      %v2071 = vmul.f32 %v2063, %v2063
      %v2072 = vmul.f32 %v2064, %v2064
      %v2073 = vmul.f32 %v2065, %v2065
      %v2074 = vmul.f32 %v2066, %v2066
      %v2075 = vmul.f32 %v2067, %v2067
      %v2076 = vmul.f32 %v2068, %v2068
      %v2077 = vmul.f32 %v2069, %v2069
      %v2078 = vadd.f32 %v2070, %v2071
      %2079 = vadd.xlane.f32.xlu0 %v2078
      %v2080 = vpop.xlane.xlu0 %2079
      %v2081 = vadd.f32 %v2072, %v2073
      %2082 = vadd.xlane.f32.xlu0 %v2081
      %v2083 = vpop.xlane.xlu0 %2082
      %v2084 = vadd.f32 %v2074, %v2075
      %2085 = vadd.xlane.f32.xlu0 %v2084
      %v2086 = vpop.xlane.xlu0 %2085
      %v2087 = vadd.f32 %v2076, %v2077
      %2088 = vadd.xlane.f32.xlu0 %v2087
      %v2089 = vpop.xlane.xlu0 %2088
      %v2090 = vmul.f32 %v2080, %v572
      %v2091 = vmul.f32 %v2083, %v572
      %v2092 = vmul.f32 %v2086, %v572
      %v2093 = vmul.f32 %v2089, %v572
      %v2094 = vadd.f32 %v2090, 1e-05
      %v2095 = vadd.f32 %v2091, 1e-05
      %v2096 = vadd.f32 %v2092, 1e-05
      %v2097 = vadd.f32 %v2093, 1e-05
      %v2098 = vrsqrt.pop %v2094
      %v2099 = vrsqrt.pop %v2095
      %v2100 = vrsqrt.pop %v2096
      %v2101 = vrsqrt.pop %v2097
      %v2102 = vmul.f32 %v2062, %v2098
      %v2103 = vmul.f32 %v2063, %v2098
      %v2104 = vmul.f32 %v2064, %v2099
      %v2105 = vmul.f32 %v2065, %v2099
      %v2106 = vmul.f32 %v2066, %v2100
      %v2107 = vmul.f32 %v2067, %v2100
      %v2108 = vmul.f32 %v2068, %v2101
      %v2109 = vmul.f32 %v2069, %v2101
      %v2111 = vlaneseq
      %v2112 = vshrl.u32 %v2111, 7
      %v2113 = vsub.s32 0, %v2112
      %v2114 = vrot.slane %v2044, %v2113
      %v2115 = vlaneseq
      %v2116 = vshrl.u32 %v2115, 7
      %v2117 = vsub.s32 1, %v2116
      %v2118 = vrot.slane %v2044, %v2117
      %v2121 = vmul.f32 %v2102, %v2114
      %v2122 = vmul.f32 %v2103, %v2118
      %v2123 = vmul.f32 %v2104, %v2114
      %v2124 = vmul.f32 %v2105, %v2118
      %v2125 = vmul.f32 %v2106, %v2114
      %v2126 = vmul.f32 %v2107, %v2118
      %v2127 = vmul.f32 %v2108, %v2114
      %v2128 = vmul.f32 %v2109, %v2118
      %v2130 = vlaneseq
      %v2131 = vshrl.u32 %v2130, 7
      %v2132 = vsub.s32 0, %v2131
      %v2133 = vrot.slane %v2045, %v2132
      %v2134 = vlaneseq
      %v2135 = vshrl.u32 %v2134, 7
      %v2136 = vsub.s32 1, %v2135
      %v2137 = vrot.slane %v2045, %v2136
      %v2140 = vadd.f32 %v2121, %v2133
      %v2141 = vadd.f32 %v2122, %v2137
      %v2142 = vadd.f32 %v2123, %v2133
      %v2143 = vadd.f32 %v2124, %v2137
      %v2144 = vadd.f32 %v2125, %v2133
      %v2145 = vadd.f32 %v2126, %v2137
      %v2146 = vadd.f32 %v2127, %v2133
      %v2147 = vadd.f32 %v2128, %v2137
      %v2148 = vpack.c.bf16 %v2142, %v2140
      %v2149 = vpack.c.bf16 %v2143, %v2141
      %v2150 = vpack.c.bf16 %v2146, %v2144
      %v2151 = vpack.c.bf16 %v2147, %v2145
      %v2152 = vld [vmem:[%s13] sm:$0xff]
      %v2153 = vld [vmem:[%s13 + $0x8] sm:$0xff]
      %v2154 = vld [vmem:[%s13 + $0x10] sm:$0xff]
      %v2155 = vld [vmem:[%s13 + $0x18] sm:$0xff]
      %v2156 = vld [vmem:[%s13 + $0x20] sm:$0xff]
      %v2157 = vld [vmem:[%s13 + $0x28] sm:$0xff]
      %v2158 = vld [vmem:[%s13 + $0x30] sm:$0xff]
      %v2159 = vld [vmem:[%s13 + $0x38] sm:$0xff]
      %v2160 = vld [vmem:[%s13 + $0x40] sm:$0xff]
      %v2161 = vld [vmem:[%s13 + $0x48] sm:$0xff]
      %v2162 = vld [vmem:[%s13 + $0x50] sm:$0xff]
      %v2163 = vld [vmem:[%s13 + $0x58] sm:$0xff]
      %v2164 = vld [vmem:[%s13 + $0x60] sm:$0xff]
      %v2165 = vld [vmem:[%s13 + $0x68] sm:$0xff]
      %v2166 = vld [vmem:[%s13 + $0x70] sm:$0xff]
      %v2167 = vld [vmem:[%s13 + $0x78] sm:$0xff]
      %v2168 = vld [vmem:[%s13 + $0x80] sm:$0xff]
      %v2169 = vld [vmem:[%s13 + $0x88] sm:$0xff]
      %v2170 = vld [vmem:[%s13 + $0x90] sm:$0xff]
      %v2171 = vld [vmem:[%s13 + $0x98] sm:$0xff]
      %v2172 = vld [vmem:[%s13 + $0xa0] sm:$0xff]
      %v2173 = vld [vmem:[%s13 + $0xa8] sm:$0xff]
      %v2174 = vld [vmem:[%s13 + $0xb0] sm:$0xff]
      %v2175 = vld [vmem:[%s13 + $0xb8] sm:$0xff]
      %v2176 = vld [vmem:[%s13 + $0xc0] sm:$0xff]
      %v2177 = vld [vmem:[%s13 + $0xc8] sm:$0xff]
      %v2178 = vld [vmem:[%s13 + $0xd0] sm:$0xff]
      %v2179 = vld [vmem:[%s13 + $0xd8] sm:$0xff]
      %v2180 = vld [vmem:[%s13 + $0xe0] sm:$0xff]
      %v2181 = vld [vmem:[%s13 + $0xe8] sm:$0xff]
      %v2182 = vld [vmem:[%s13 + $0xf0] sm:$0xff]
      %v2183 = vld [vmem:[%s13 + $0xf8] sm:$0xff]
      %v2184 = vld [vmem:[%s14] sm:$0x3]
      %v2186 = vlaneseq
      %v2187 = vshrl.u32 %v2186, 7
      %v2188 = vsub.s32 0, %v2187
      %v2189 = vrot.slane %v2184, %v2188
      %v2190 = vlaneseq
      %v2191 = vshrl.u32 %v2190, 7
      %v2192 = vsub.s32 1, %v2191
      %v2193 = vrot.slane %v2184, %v2192
      %v2228 = vunpack.c.l.b16 %v2152
      %v2229 = vunpack.c.h.b16 %v2152
      %v2230 = vunpack.c.l.b16 %v2153
      %v2231 = vunpack.c.h.b16 %v2153
      %v2232 = vunpack.c.l.b16 %v2154
      %v2233 = vunpack.c.h.b16 %v2154
      %v2234 = vunpack.c.l.b16 %v2155
      %v2235 = vunpack.c.h.b16 %v2155
      %v2236 = vunpack.c.l.b16 %v2156
      %v2237 = vunpack.c.h.b16 %v2156
      %v2238 = vunpack.c.l.b16 %v2157
      %v2239 = vunpack.c.h.b16 %v2157
      %v2240 = vunpack.c.l.b16 %v2158
      %v2241 = vunpack.c.h.b16 %v2158
      %v2242 = vunpack.c.l.b16 %v2159
      %v2243 = vunpack.c.h.b16 %v2159
      %v2244 = vunpack.c.l.b16 %v2160
      %v2245 = vunpack.c.h.b16 %v2160
      %v2246 = vunpack.c.l.b16 %v2161
      %v2247 = vunpack.c.h.b16 %v2161
      %v2248 = vunpack.c.l.b16 %v2162
      %v2249 = vunpack.c.h.b16 %v2162
      %v2250 = vunpack.c.l.b16 %v2163
      %v2251 = vunpack.c.h.b16 %v2163
      %v2252 = vunpack.c.l.b16 %v2164
      %v2253 = vunpack.c.h.b16 %v2164
      %v2254 = vunpack.c.l.b16 %v2165
      %v2255 = vunpack.c.h.b16 %v2165
      %v2256 = vunpack.c.l.b16 %v2166
      %v2257 = vunpack.c.h.b16 %v2166
      %v2258 = vunpack.c.l.b16 %v2167
      %v2259 = vunpack.c.h.b16 %v2167
      %v2260 = vunpack.c.l.b16 %v2168
      %v2261 = vunpack.c.h.b16 %v2168
      %v2262 = vunpack.c.l.b16 %v2169
      %v2263 = vunpack.c.h.b16 %v2169
      %v2264 = vunpack.c.l.b16 %v2170
      %v2265 = vunpack.c.h.b16 %v2170
      %v2266 = vunpack.c.l.b16 %v2171
      %v2267 = vunpack.c.h.b16 %v2171
      %v2268 = vunpack.c.l.b16 %v2172
      %v2269 = vunpack.c.h.b16 %v2172
      %v2270 = vunpack.c.l.b16 %v2173
      %v2271 = vunpack.c.h.b16 %v2173
      %v2272 = vunpack.c.l.b16 %v2174
      %v2273 = vunpack.c.h.b16 %v2174
      %v2274 = vunpack.c.l.b16 %v2175
      %v2275 = vunpack.c.h.b16 %v2175
      %v2276 = vunpack.c.l.b16 %v2176
      %v2277 = vunpack.c.h.b16 %v2176
      %v2278 = vunpack.c.l.b16 %v2177
      %v2279 = vunpack.c.h.b16 %v2177
      %v2280 = vunpack.c.l.b16 %v2178
      %v2281 = vunpack.c.h.b16 %v2178
      %v2282 = vunpack.c.l.b16 %v2179
      %v2283 = vunpack.c.h.b16 %v2179
      %v2284 = vunpack.c.l.b16 %v2180
      %v2285 = vunpack.c.h.b16 %v2180
      %v2286 = vunpack.c.l.b16 %v2181
      %v2287 = vunpack.c.h.b16 %v2181
      %v2288 = vunpack.c.l.b16 %v2182
      %v2289 = vunpack.c.h.b16 %v2182
      %v2290 = vunpack.c.l.b16 %v2183
      %v2291 = vunpack.c.h.b16 %v2183
      %v2292 = vpack.c.b16 %v2230, %v2228
      %v2293 = vpack.c.b16 %v2231, %v2229
      %v2294 = vpack.c.b16 %v2234, %v2232
      %v2295 = vpack.c.b16 %v2235, %v2233
      %v2296 = vpack.c.b16 %v2238, %v2236
      %v2297 = vpack.c.b16 %v2239, %v2237
      %v2298 = vpack.c.b16 %v2242, %v2240
      %v2299 = vpack.c.b16 %v2243, %v2241
      %v2300 = vpack.c.b16 %v2246, %v2244
      %v2301 = vpack.c.b16 %v2247, %v2245
      %v2302 = vpack.c.b16 %v2250, %v2248
      %v2303 = vpack.c.b16 %v2251, %v2249
      %v2304 = vpack.c.b16 %v2254, %v2252
      %v2305 = vpack.c.b16 %v2255, %v2253
      %v2306 = vpack.c.b16 %v2258, %v2256
      %v2307 = vpack.c.b16 %v2259, %v2257
      %v2308 = vpack.c.b16 %v2262, %v2260
      %v2309 = vpack.c.b16 %v2263, %v2261
      %v2310 = vpack.c.b16 %v2266, %v2264
      %v2311 = vpack.c.b16 %v2267, %v2265
      %v2312 = vpack.c.b16 %v2270, %v2268
      %v2313 = vpack.c.b16 %v2271, %v2269
      %v2314 = vpack.c.b16 %v2274, %v2272
      %v2315 = vpack.c.b16 %v2275, %v2273
      %v2316 = vpack.c.b16 %v2278, %v2276
      %v2317 = vpack.c.b16 %v2279, %v2277
      %v2318 = vpack.c.b16 %v2282, %v2280
      %v2319 = vpack.c.b16 %v2283, %v2281
      %v2320 = vpack.c.b16 %v2286, %v2284
      %v2321 = vpack.c.b16 %v2287, %v2285
      %v2322 = vpack.c.b16 %v2290, %v2288
      %v2323 = vpack.c.b16 %v2291, %v2289
      %2356 = vmatprep.subr.bf16.mxu0 %v2293
      %2357 = vmatpush1.bf16.msra.mxu0 %v2292
      %2358 = vmatprep.subr.bf16.mxu0 %v2295
      %2359 = vmatpush1.bf16.msra.mxu0 %v2294
      %2360 = vmatprep.subr.bf16.mxu0 %v2297
      %2361 = vmatpush1.bf16.msra.mxu0 %v2296
      %2362 = vmatprep.subr.bf16.mxu0 %v2299
      %2363 = vmatpush1.bf16.msra.mxu0 %v2298
      %2364 = vmatprep.subr.bf16.mxu0 %v2301
      %2365 = vmatpush1.bf16.msra.mxu0 %v2300
      %2366 = vmatprep.subr.bf16.mxu0 %v2303
      %2367 = vmatpush1.bf16.msra.mxu0 %v2302
      %2368 = vmatprep.subr.bf16.mxu0 %v2305
      %2369 = vmatpush1.bf16.msra.mxu0 %v2304
      %2370 = vmatprep.subr.bf16.mxu0 %v2307
      %2371 = vmatpush1.bf16.msra.mxu0 %v2306
      %2372 = vmatprep.subr.bf16.mxu0 %v2309
      %2373 = vmatpush1.bf16.msra.mxu0 %v2308
      %2374 = vmatprep.subr.bf16.mxu0 %v2311
      %2375 = vmatpush1.bf16.msra.mxu0 %v2310
      %2376 = vmatprep.subr.bf16.mxu0 %v2313
      %2377 = vmatpush1.bf16.msra.mxu0 %v2312
      %2378 = vmatprep.subr.bf16.mxu0 %v2315
      %2379 = vmatpush1.bf16.msra.mxu0 %v2314
      %2380 = vmatprep.subr.bf16.mxu0 %v2317
      %2381 = vmatpush1.bf16.msra.mxu0 %v2316
      %2382 = vmatprep.subr.bf16.mxu0 %v2319
      %2383 = vmatpush1.bf16.msra.mxu0 %v2318
      %2384 = vmatprep.subr.bf16.mxu0 %v2321
      %2385 = vmatpush1.bf16.msra.mxu0 %v2320
      %2386 = vmatprep.subr.bf16.mxu0 %v2323
      %2387 = vmatpush1.bf16.msra.mxu0 %v2322
      %2388 = vmatprep.mubr.bf16.mxu0 %v2149
      %2389 = vmatmul.mubr.bf16.gmra.mrb[0].mxu0 %v2148
      %v2390 = vpop.f32.mrb[0].mxu0
      %v2391 = vadd.f32 %v2189, %v2390
      %v2392 = vpop.f32.mrb[0].mxu0
      %v2393 = vadd.f32 %v2193, %v2392
      %v2394 = vpop.f32.mrb[0].mxu0
      %v2395 = vadd.f32 %v2189, %v2394
      %v2396 = vpop.f32.mrb[0].mxu0
      %v2397 = vadd.f32 %v2193, %v2396
      %2398 = vmatprep.mubr.bf16.mxu0 %v2151
      %2399 = vmatmul.mubr.bf16.gmra.mrb[0].mxu0 %v2150
      %v2400 = vpop.f32.mrb[0].mxu0
      %v2401 = vadd.f32 %v2189, %v2400
      %v2402 = vpop.f32.mrb[0].mxu0
      %v2403 = vadd.f32 %v2193, %v2402
      %v2404 = vpop.f32.mrb[0].mxu0
      %v2405 = vadd.f32 %v2189, %v2404
      %v2406 = vpop.f32.mrb[0].mxu0
      %v2407 = vadd.f32 %v2193, %v2406
      %2408 = vdwg.mxu0
      %v2409 = vmul.f32 %v2391, 0.5
      %v2410 = vmul.f32 %v2393, 0.5
      %v2411 = vmul.f32 %v2395, 0.5
      %v2412 = vmul.f32 %v2397, 0.5
      %v2413 = vmul.f32 %v2401, 0.5
      %v2414 = vmul.f32 %v2403, 0.5
      %v2415 = vmul.f32 %v2405, 0.5
      %v2416 = vmul.f32 %v2407, 0.5
      %v2417 = vmul.f32 %v2391, %v2391
      %v2418 = vmul.f32 %v2393, %v2393
      %v2419 = vmul.f32 %v2395, %v2395
      %v2420 = vmul.f32 %v2397, %v2397
      %v2421 = vmul.f32 %v2401, %v2401
      %v2422 = vmul.f32 %v2403, %v2403
      %v2423 = vmul.f32 %v2405, %v2405
      %v2424 = vmul.f32 %v2407, %v2407
      %v2425 = vmul.f32 %v2417, %v2391
      %v2426 = vmul.f32 %v2418, %v2393
      %v2427 = vmul.f32 %v2419, %v2395
      %v2428 = vmul.f32 %v2420, %v2397
      %v2429 = vmul.f32 %v2421, %v2401
      %v2430 = vmul.f32 %v2422, %v2403
      %v2431 = vmul.f32 %v2423, %v2405
      %v2432 = vmul.f32 %v2424, %v2407
      %v2433 = vmul.f32 %v2425, 0.044715
      %v2434 = vmul.f32 %v2426, 0.044715
      %v2435 = vmul.f32 %v2427, 0.044715
      %v2436 = vmul.f32 %v2428, 0.044715
      %v2437 = vmul.f32 %v2429, 0.044715
      %v2438 = vmul.f32 %v2430, 0.044715
      %v2439 = vmul.f32 %v2431, 0.044715
      %v2440 = vmul.f32 %v2432, 0.044715
      %v2441 = vadd.f32 %v2391, %v2433
      %v2442 = vadd.f32 %v2393, %v2434
      %v2443 = vadd.f32 %v2395, %v2435
      %v2444 = vadd.f32 %v2397, %v2436
      %v2445 = vadd.f32 %v2401, %v2437
      %v2446 = vadd.f32 %v2403, %v2438
      %v2447 = vadd.f32 %v2405, %v2439
      %v2448 = vadd.f32 %v2407, %v2440
      %v2449 = vmul.f32 %v2441, 0.7978846
      %v2450 = vmul.f32 %v2442, 0.7978846
      %v2451 = vmul.f32 %v2443, 0.7978846
      %v2452 = vmul.f32 %v2444, 0.7978846
      %v2453 = vmul.f32 %v2445, 0.7978846
      %v2454 = vmul.f32 %v2446, 0.7978846
      %v2455 = vmul.f32 %v2447, 0.7978846
      %v2456 = vmul.f32 %v2448, 0.7978846
      %v2457 = vtanh.pop %v2449
      %v2458 = vtanh.pop %v2450
      %v2459 = vtanh.pop %v2451
      %v2460 = vtanh.pop %v2452
      %v2461 = vtanh.pop %v2453
      %v2462 = vtanh.pop %v2454
      %v2463 = vtanh.pop %v2455
      %v2464 = vtanh.pop %v2456
      %v2465 = vadd.f32 %v2457, 1.0
      %v2466 = vadd.f32 %v2458, 1.0
      %v2467 = vadd.f32 %v2459, 1.0
      %v2468 = vadd.f32 %v2460, 1.0
      %v2469 = vadd.f32 %v2461, 1.0
      %v2470 = vadd.f32 %v2462, 1.0
      %v2471 = vadd.f32 %v2463, 1.0
      %v2472 = vadd.f32 %v2464, 1.0
      %v2473 = vmul.f32 %v2409, %v2465
      %v2474 = vmul.f32 %v2410, %v2466
      %v2475 = vmul.f32 %v2411, %v2467
      %v2476 = vmul.f32 %v2412, %v2468
      %v2477 = vmul.f32 %v2413, %v2469
      %v2478 = vmul.f32 %v2414, %v2470
      %v2479 = vmul.f32 %v2415, %v2471
      %v2480 = vmul.f32 %v2416, %v2472
      %v2481 = vpack.c.bf16 %v2475, %v2473
      %v2482 = vpack.c.bf16 %v2476, %v2474
      %v2483 = vpack.c.bf16 %v2479, %v2477
      %v2484 = vpack.c.bf16 %v2480, %v2478
      %v2485 = vld [vmem:[%s15] sm:$0xff]
      %v2486 = vld [vmem:[%s15 + $0x8] sm:$0xff]
      %v2487 = vld [vmem:[%s15 + $0x10] sm:$0xff]
      %v2488 = vld [vmem:[%s15 + $0x18] sm:$0xff]
      %v2489 = vld [vmem:[%s15 + $0x20] sm:$0xff]
      %v2490 = vld [vmem:[%s15 + $0x28] sm:$0xff]
      %v2491 = vld [vmem:[%s15 + $0x30] sm:$0xff]
      %v2492 = vld [vmem:[%s15 + $0x38] sm:$0xff]
      %v2493 = vld [vmem:[%s15 + $0x40] sm:$0xff]
      %v2494 = vld [vmem:[%s15 + $0x48] sm:$0xff]
      %v2495 = vld [vmem:[%s15 + $0x50] sm:$0xff]
      %v2496 = vld [vmem:[%s15 + $0x58] sm:$0xff]
      %v2497 = vld [vmem:[%s15 + $0x60] sm:$0xff]
      %v2498 = vld [vmem:[%s15 + $0x68] sm:$0xff]
      %v2499 = vld [vmem:[%s15 + $0x70] sm:$0xff]
      %v2500 = vld [vmem:[%s15 + $0x78] sm:$0xff]
      %v2501 = vld [vmem:[%s15 + $0x80] sm:$0xff]
      %v2502 = vld [vmem:[%s15 + $0x88] sm:$0xff]
      %v2503 = vld [vmem:[%s15 + $0x90] sm:$0xff]
      %v2504 = vld [vmem:[%s15 + $0x98] sm:$0xff]
      %v2505 = vld [vmem:[%s15 + $0xa0] sm:$0xff]
      %v2506 = vld [vmem:[%s15 + $0xa8] sm:$0xff]
      %v2507 = vld [vmem:[%s15 + $0xb0] sm:$0xff]
      %v2508 = vld [vmem:[%s15 + $0xb8] sm:$0xff]
      %v2509 = vld [vmem:[%s15 + $0xc0] sm:$0xff]
      %v2510 = vld [vmem:[%s15 + $0xc8] sm:$0xff]
      %v2511 = vld [vmem:[%s15 + $0xd0] sm:$0xff]
      %v2512 = vld [vmem:[%s15 + $0xd8] sm:$0xff]
      %v2513 = vld [vmem:[%s15 + $0xe0] sm:$0xff]
      %v2514 = vld [vmem:[%s15 + $0xe8] sm:$0xff]
      %v2515 = vld [vmem:[%s15 + $0xf0] sm:$0xff]
      %v2516 = vld [vmem:[%s15 + $0xf8] sm:$0xff]
      %v2517 = vld [vmem:[%s16] sm:$0x3]
      %v2519 = vlaneseq
      %v2520 = vshrl.u32 %v2519, 7
      %v2521 = vsub.s32 0, %v2520
      %v2522 = vrot.slane %v2517, %v2521
      %v2523 = vlaneseq
      %v2524 = vshrl.u32 %v2523, 7
      %v2525 = vsub.s32 1, %v2524
      %v2526 = vrot.slane %v2517, %v2525
      %v2561 = vunpack.c.l.b16 %v2485
      %v2562 = vunpack.c.h.b16 %v2485
      %v2563 = vunpack.c.l.b16 %v2486
      %v2564 = vunpack.c.h.b16 %v2486
      %v2565 = vunpack.c.l.b16 %v2487
      %v2566 = vunpack.c.h.b16 %v2487
      %v2567 = vunpack.c.l.b16 %v2488
      %v2568 = vunpack.c.h.b16 %v2488
      %v2569 = vunpack.c.l.b16 %v2489
      %v2570 = vunpack.c.h.b16 %v2489
      %v2571 = vunpack.c.l.b16 %v2490
      %v2572 = vunpack.c.h.b16 %v2490
      %v2573 = vunpack.c.l.b16 %v2491
      %v2574 = vunpack.c.h.b16 %v2491
      %v2575 = vunpack.c.l.b16 %v2492
      %v2576 = vunpack.c.h.b16 %v2492
      %v2577 = vunpack.c.l.b16 %v2493
      %v2578 = vunpack.c.h.b16 %v2493
      %v2579 = vunpack.c.l.b16 %v2494
      %v2580 = vunpack.c.h.b16 %v2494
      %v2581 = vunpack.c.l.b16 %v2495
      %v2582 = vunpack.c.h.b16 %v2495
      %v2583 = vunpack.c.l.b16 %v2496
      %v2584 = vunpack.c.h.b16 %v2496
      %v2585 = vunpack.c.l.b16 %v2497
      %v2586 = vunpack.c.h.b16 %v2497
      %v2587 = vunpack.c.l.b16 %v2498
      %v2588 = vunpack.c.h.b16 %v2498
      %v2589 = vunpack.c.l.b16 %v2499
      %v2590 = vunpack.c.h.b16 %v2499
      %v2591 = vunpack.c.l.b16 %v2500
      %v2592 = vunpack.c.h.b16 %v2500
      %v2593 = vunpack.c.l.b16 %v2501
      %v2594 = vunpack.c.h.b16 %v2501
      %v2595 = vunpack.c.l.b16 %v2502
      %v2596 = vunpack.c.h.b16 %v2502
      %v2597 = vunpack.c.l.b16 %v2503
      %v2598 = vunpack.c.h.b16 %v2503
      %v2599 = vunpack.c.l.b16 %v2504
      %v2600 = vunpack.c.h.b16 %v2504
      %v2601 = vunpack.c.l.b16 %v2505
      %v2602 = vunpack.c.h.b16 %v2505
      %v2603 = vunpack.c.l.b16 %v2506
      %v2604 = vunpack.c.h.b16 %v2506
      %v2605 = vunpack.c.l.b16 %v2507
      %v2606 = vunpack.c.h.b16 %v2507
      %v2607 = vunpack.c.l.b16 %v2508
      %v2608 = vunpack.c.h.b16 %v2508
      %v2609 = vunpack.c.l.b16 %v2509
      %v2610 = vunpack.c.h.b16 %v2509
      %v2611 = vunpack.c.l.b16 %v2510
      %v2612 = vunpack.c.h.b16 %v2510
      %v2613 = vunpack.c.l.b16 %v2511
      %v2614 = vunpack.c.h.b16 %v2511
      %v2615 = vunpack.c.l.b16 %v2512
      %v2616 = vunpack.c.h.b16 %v2512
      %v2617 = vunpack.c.l.b16 %v2513
      %v2618 = vunpack.c.h.b16 %v2513
      %v2619 = vunpack.c.l.b16 %v2514
      %v2620 = vunpack.c.h.b16 %v2514
      %v2621 = vunpack.c.l.b16 %v2515
      %v2622 = vunpack.c.h.b16 %v2515
      %v2623 = vunpack.c.l.b16 %v2516
      %v2624 = vunpack.c.h.b16 %v2516
      %v2625 = vpack.c.b16 %v2563, %v2561
      %v2626 = vpack.c.b16 %v2564, %v2562
      %v2627 = vpack.c.b16 %v2567, %v2565
      %v2628 = vpack.c.b16 %v2568, %v2566
      %v2629 = vpack.c.b16 %v2571, %v2569
      %v2630 = vpack.c.b16 %v2572, %v2570
      %v2631 = vpack.c.b16 %v2575, %v2573
      %v2632 = vpack.c.b16 %v2576, %v2574
      %v2633 = vpack.c.b16 %v2579, %v2577
      %v2634 = vpack.c.b16 %v2580, %v2578
      %v2635 = vpack.c.b16 %v2583, %v2581
      %v2636 = vpack.c.b16 %v2584, %v2582
      %v2637 = vpack.c.b16 %v2587, %v2585
      %v2638 = vpack.c.b16 %v2588, %v2586
      %v2639 = vpack.c.b16 %v2591, %v2589
      %v2640 = vpack.c.b16 %v2592, %v2590
      %v2641 = vpack.c.b16 %v2595, %v2593
      %v2642 = vpack.c.b16 %v2596, %v2594
      %v2643 = vpack.c.b16 %v2599, %v2597
      %v2644 = vpack.c.b16 %v2600, %v2598
      %v2645 = vpack.c.b16 %v2603, %v2601
      %v2646 = vpack.c.b16 %v2604, %v2602
      %v2647 = vpack.c.b16 %v2607, %v2605
      %v2648 = vpack.c.b16 %v2608, %v2606
      %v2649 = vpack.c.b16 %v2611, %v2609
      %v2650 = vpack.c.b16 %v2612, %v2610
      %v2651 = vpack.c.b16 %v2615, %v2613
      %v2652 = vpack.c.b16 %v2616, %v2614
      %v2653 = vpack.c.b16 %v2619, %v2617
      %v2654 = vpack.c.b16 %v2620, %v2618
      %v2655 = vpack.c.b16 %v2623, %v2621
      %v2656 = vpack.c.b16 %v2624, %v2622
      %2689 = vmatprep.subr.bf16.mxu0 %v2626
      %2690 = vmatpush1.bf16.msra.mxu0 %v2625
      %2691 = vmatprep.subr.bf16.mxu0 %v2628
      %2692 = vmatpush1.bf16.msra.mxu0 %v2627
      %2693 = vmatprep.subr.bf16.mxu0 %v2630
      %2694 = vmatpush1.bf16.msra.mxu0 %v2629
      %2695 = vmatprep.subr.bf16.mxu0 %v2632
      %2696 = vmatpush1.bf16.msra.mxu0 %v2631
      %2697 = vmatprep.subr.bf16.mxu0 %v2634
      %2698 = vmatpush1.bf16.msra.mxu0 %v2633
      %2699 = vmatprep.subr.bf16.mxu0 %v2636
      %2700 = vmatpush1.bf16.msra.mxu0 %v2635
      %2701 = vmatprep.subr.bf16.mxu0 %v2638
      %2702 = vmatpush1.bf16.msra.mxu0 %v2637
      %2703 = vmatprep.subr.bf16.mxu0 %v2640
      %2704 = vmatpush1.bf16.msra.mxu0 %v2639
      %2705 = vmatprep.subr.bf16.mxu0 %v2642
      %2706 = vmatpush1.bf16.msra.mxu0 %v2641
      %2707 = vmatprep.subr.bf16.mxu0 %v2644
      %2708 = vmatpush1.bf16.msra.mxu0 %v2643
      %2709 = vmatprep.subr.bf16.mxu0 %v2646
      %2710 = vmatpush1.bf16.msra.mxu0 %v2645
      %2711 = vmatprep.subr.bf16.mxu0 %v2648
      %2712 = vmatpush1.bf16.msra.mxu0 %v2647
      %2713 = vmatprep.subr.bf16.mxu0 %v2650
      %2714 = vmatpush1.bf16.msra.mxu0 %v2649
      %2715 = vmatprep.subr.bf16.mxu0 %v2652
      %2716 = vmatpush1.bf16.msra.mxu0 %v2651
      %2717 = vmatprep.subr.bf16.mxu0 %v2654
      %2718 = vmatpush1.bf16.msra.mxu0 %v2653
      %2719 = vmatprep.subr.bf16.mxu0 %v2656
      %2720 = vmatpush1.bf16.msra.mxu0 %v2655
      %2721 = vmatprep.mubr.bf16.mxu0 %v2482
      %2722 = vmatmul.mubr.bf16.gmra.mrb[0].mxu0 %v2481
      %v2723 = vpop.f32.mrb[0].mxu0
      %v2724 = vadd.f32 %v2522, %v2723
      %v2725 = vpop.f32.mrb[0].mxu0
      %v2726 = vadd.f32 %v2526, %v2725
      %v2727 = vpop.f32.mrb[0].mxu0
      %v2728 = vadd.f32 %v2522, %v2727
      %v2729 = vpop.f32.mrb[0].mxu0
      %v2730 = vadd.f32 %v2526, %v2729
      %2731 = vmatprep.mubr.bf16.mxu0 %v2484
      %2732 = vmatmul.mubr.bf16.gmra.mrb[0].mxu0 %v2483
      %v2733 = vpop.f32.mrb[0].mxu0
      %v2734 = vadd.f32 %v2522, %v2733
      %v2735 = vpop.f32.mrb[0].mxu0
      %v2736 = vadd.f32 %v2526, %v2735
      %v2737 = vpop.f32.mrb[0].mxu0
      %v2738 = vadd.f32 %v2522, %v2737
      %v2739 = vpop.f32.mrb[0].mxu0
      %v2740 = vadd.f32 %v2526, %v2739
      %2741 = vdwg.mxu0
      %v2742 = vadd.f32 %v2036, %v2724
      %v2743 = vadd.f32 %v2037, %v2726
      %v2744 = vadd.f32 %v2038, %v2728
      %v2745 = vadd.f32 %v2039, %v2730
      %v2746 = vadd.f32 %v2040, %v2734
      %v2747 = vadd.f32 %v2041, %v2736
      %v2748 = vadd.f32 %v2042, %v2738
      %v2749 = vadd.f32 %v2043, %v2740
      %2750 = vst [vmem:[%s548] sm:$0xff] %v2742
      %2751 = vst [vmem:[%s548 + $0x8] sm:$0xff] %v2743
      %2752 = vst [vmem:[%s548 + $0x10] sm:$0xff] %v2744
      %2753 = vst [vmem:[%s548 + $0x18] sm:$0xff] %v2745
      %2754 = vst [vmem:[%s548 + $0x20] sm:$0xff] %v2746
      %2755 = vst [vmem:[%s548 + $0x28] sm:$0xff] %v2747
      %2756 = vst [vmem:[%s548 + $0x30] sm:$0xff] %v2748
      %2757 = vst [vmem:[%s548 + $0x38] sm:$0xff] %v2749
      %p2758 = scmp.lt.s32.totalorder %s28, 1
      %s2759 = scalar_select %p2758, %s28, 1
      %s2760 = smul.addr %s2759, 8
      %s2761 = smul.addr %s2760, 8
      %s2762 = scalar_lea.vmem %s17, %s2761
      // Predicated region
      $region89: #{_lambda_.3} parent=87 // pred_check
        %p2763 = pneg %p408
      $region90: #{_lambda_.3} parent=87 // pred_check_branch
        %2765 = sbr.rel (%p2763) target = $region92
      $region91: #{_lambda_.3} parent=87 // pred_region
        _
      $region92: #{_lambda_.3} parent=87 // pred_fallthru
        _
    $region88: #{_lambda_.3} parent=5 // pred_fallthru
      _
    %p2766 = scmp.le.s32.totalorder 2, %s23
    // Predicated region
    $region93: #{_lambda_.3} parent=5 // pred_check
      %p2767 = pneg %p2766
    $region94: #{_lambda_.3} parent=5 // pred_check_branch
      %2769 = sbr.rel (%p2767) target = $region96
    $region95: #{_lambda_.3} parent=5 // pred_region
      %s2770 = ssub.s32 %s23, 2
      // Predicated region
      $region97: #{_lambda_.3} parent=95 // pred_check
        %p2771 = pneg %p414
      $region98: #{_lambda_.3} parent=95 // pred_check_branch
        %2773 = sbr.rel (%p2771) target = $region100
      $region99: #{_lambda_.3} parent=95 // pred_region
        %p2774 = scmp.lt.s32.totalorder %s29, 1
        %s2775 = scalar_select %p2774, %s29, 1
        %s2776 = smul.addr %s2775, 8
        %s2777 = smul.addr %s2776, 8
        %s2778 = scalar_lea.vmem %s17, %s2777
      $region100: #{_lambda_.3} parent=95 // pred_fallthru
        _
    $region96: #{_lambda_.3} parent=5 // pred_fallthru
      _
  $region6: #{_lambda_.3} parent=0 // loop_footer
    %s27 = sadd.s32 1, %s23
  $region7: #{_lambda_.3} parent=0 // loop_footer_branch
    %22 = sbr.rel target = $region3
  $region8: #{_lambda_.3} parent=0 // loop_exit
    _

</llo_original>
